<compile_context>
chip_gen: v5e
topology: v5e:2x2
jax: 0.10.0
libtpu: 0.0.40
codegen_flags: <defaults>
</compile_context>

<pallas_src>
import jax
import jax.numpy as jnp
from jax import lax
from jax.experimental import pallas as pl
from jax.experimental.pallas import tpu as pltpu

POOL = 2
KSIZE = 5
LANE = 128      # lane width for conv2 / linear outputs
C1_LANES = 8    # conv1 output channels padded to 8 lanes (6 real)


def _round_up(x, m):
    return (x + m - 1) // m * m


# ---------------------------------------------------------------------------
# Kernels
# ---------------------------------------------------------------------------
def _conv_relu_pool_kernel(p_ref, w_ref, b_ref, o_ref):
    # p_ref: (4, 1, P, F) im2col patches (one pool-window group per leading idx)
    # w_ref: (F, C)       flattened conv weight, zero-padded output channels
    # b_ref: (1, C)       zero-padded bias
    # o_ref: (1, P, C)    pooled + biased + ReLU'd output for this sample
    w = w_ref[...]
    z01 = jnp.maximum(
        jnp.dot(p_ref[0, 0], w, preferred_element_type=jnp.float32),
        jnp.dot(p_ref[1, 0], w, preferred_element_type=jnp.float32))
    z23 = jnp.maximum(
        jnp.dot(p_ref[2, 0], w, preferred_element_type=jnp.float32),
        jnp.dot(p_ref[3, 0], w, preferred_element_type=jnp.float32))
    pooled = jnp.maximum(z01, z23)                       # 2x2 max-pool
    # bias + ReLU once, after the max (exact: both monotone)
    o_ref[0] = jnp.maximum(pooled + b_ref[...], 0.0).astype(o_ref.dtype)


def _conv_relu_pool_linear_kernel(p_ref, w_ref, b_ref, wl_ref, bl_ref, o_ref):
    # p_ref : (4, 1, P, F)    conv2 im2col patches (pool-window grouped)
    # w_ref : (F, 128)        conv2 weight, zero-padded output channels
    # b_ref : (1, 128)        conv2 bias (padded)
    # wl_ref: (25, C2, 128)   linear weight re-stacked as (pooled pos, c2, cls)
    # bl_ref: (1, 128)        linear bias (padded)
    # o_ref : (1, 1, 128)     class logits for this sample (padded lanes)
    w = w_ref[...]
    z01 = jnp.maximum(
        jnp.dot(p_ref[0, 0], w, preferred_element_type=jnp.float32),
        jnp.dot(p_ref[1, 0], w, preferred_element_type=jnp.float32))
    z23 = jnp.maximum(
        jnp.dot(p_ref[2, 0], w, preferred_element_type=jnp.float32),
        jnp.dot(p_ref[3, 0], w, preferred_element_type=jnp.float32))
    pooled = jnp.maximum(jnp.maximum(z01, z23) + b_ref[...], 0.0)   # (P, 128)

    # Flatten(400) + Linear fused: one tiny matmul per pooled position keeps
    # everything in VMEM (avoids a sublane->lane reshape of (25,16)->(1,400)).
    n_pos, c2, _ = wl_ref.shape
    acc = bl_ref[...]                                               # (1, 128)
    for p in range(n_pos):                                          # static unroll (25)
        acc = acc + jnp.dot(pooled[p:p + 1, 0:c2], wl_ref[p],
                            preferred_element_type=jnp.float32)
    o_ref[0] = acc.astype(o_ref.dtype)


# ---------------------------------------------------------------------------
# pallas_call wrappers (one grid step per sample, batch axis parallel)
# ---------------------------------------------------------------------------
def _conv_relu_pool_call(patches, w, b):
    G, N, P, F = patches.shape
    C = w.shape[1]
    return pl.pallas_call(
        _conv_relu_pool_kernel,
        out_shape=jax.ShapeDtypeStruct((N, P, C), jnp.float32),
        grid_spec=pltpu.PrefetchScalarGridSpec(
            num_scalar_prefetch=0,
            grid=(N,),
            in_specs=[
                pl.BlockSpec((G, 1, P, F), lambda i: (0, i, 0, 0)),
                pl.BlockSpec((F, C), lambda i: (0, 0)),
                pl.BlockSpec((1, C), lambda i: (0, 0)),
            ],
            out_specs=pl.BlockSpec((1, P, C), lambda i: (i, 0, 0)),
        ),
        compiler_params=pltpu.CompilerParams(
            dimension_semantics=("parallel",)),
    )(patches, w, b)


def _conv_relu_pool_linear_call(patches, w, b, wl, bl):
    G, N, P, F = patches.shape
    C = w.shape[1]
    return pl.pallas_call(
        _conv_relu_pool_linear_kernel,
        out_shape=jax.ShapeDtypeStruct((N, 1, C), jnp.float32),
        grid_spec=pltpu.PrefetchScalarGridSpec(
            num_scalar_prefetch=0,
            grid=(N,),
            in_specs=[
                pl.BlockSpec((G, 1, P, F), lambda i: (0, i, 0, 0)),
                pl.BlockSpec((F, C), lambda i: (0, 0)),
                pl.BlockSpec((1, C), lambda i: (0, 0)),
                pl.BlockSpec(wl.shape, lambda i: (0, 0, 0)),
                pl.BlockSpec((1, C), lambda i: (0, 0)),
            ],
            out_specs=pl.BlockSpec((1, 1, C), lambda i: (i, 0, 0)),
        ),
        compiler_params=pltpu.CompilerParams(
            dimension_semantics=("parallel",)),
    )(patches, w, b, wl, bl)


# ---------------------------------------------------------------------------
# XLA-side glue: pool-grouped im2col from an NHWC activation
# ---------------------------------------------------------------------------
def _im2col_pool_grouped_nhwc(y, k, p_pad):
    """y: (N, H, W, C) -> (4, N, p_pad, k*k*C).

    Group g = (dy, dx) holds, at row r = ph*Wp + pw, the patch for pre-pool
    output position (2*ph+dy, 2*pw+dx). Feature order is (ky, kx, ci)."""
    N, H, W, C = y.shape
    Ho, Wo = H - k + 1, W - k + 1
    Hp, Wp = Ho // POOL, Wo // POOL
    F = k * k * C
    cols = [y[:, ky:ky + Ho, kx:kx + Wo, :]
            for ky in range(k) for kx in range(k)]
    cols = jnp.stack(cols, axis=3)                      # (N, Ho, Wo, k*k, C)
    cols = cols.reshape(N, Ho, Wo, F)                   # feature = (ky*k+kx)*C + ci
    cols = cols.reshape(N, Hp, POOL, Wp, POOL, F)       # oy = 2*ph+dy, ox = 2*pw+dx
    cols = jnp.transpose(cols, (2, 4, 0, 1, 3, 5))      # (dy, dx, N, Hp, Wp, F)
    cols = cols.reshape(POOL * POOL, N, Hp * Wp, F)
    P = Hp * Wp
    if p_pad > P:  # zero rows, never read back (sliced / skipped downstream)
        cols = jnp.pad(cols, ((0, 0), (0, 0), (0, p_pad - P), (0, 0)))
    return cols


# ---------------------------------------------------------------------------
# Parameter preparation (run ONCE, outside the per-forward path)
# ---------------------------------------------------------------------------
def prepare_params(params):
    w1, b1, w2, b2, wl, bl = params

    def prep_conv(w, b, lane):
        co, ci, k, _ = w.shape
        wf = jnp.transpose(w, (2, 3, 1, 0)).reshape(ci * k * k, co)   # (ky,kx,ci) rows
        wf = jnp.pad(wf, ((0, 0), (0, lane - co)))
        bf = jnp.pad(b.reshape(1, co), ((0, 0), (0, lane - co)))
        return wf.astype(jnp.float32), bf.astype(jnp.float32)

    # conv1: output lanes padded to 8 (6 real channels)
    w1e, b1e = prep_conv(w1, b1, C1_LANES)                            # (75, 8), (1, 8)
    # conv2: input-channel dim padded to match conv1's 8 stored lanes
    w2p = jnp.pad(w2, ((0, 0), (0, C1_LANES - w2.shape[1]), (0, 0), (0, 0)))
    w2e, b2e = prep_conv(w2p, b2, LANE)                               # (200, 128), (1, 128)

    # Linear: fold torch's channel-major flatten (c2*25 + p) into a one-time
    # permutation -> (pooled position, c2, class) stack.
    n_cls, fin = wl.shape
    c2 = w2.shape[0]
    p2 = fin // c2
    wls = jnp.transpose(wl.reshape(n_cls, c2, p2), (2, 1, 0))         # (25, 16, n_cls)
    wls = jnp.pad(wls, ((0, 0), (0, 0), (0, LANE - n_cls))).astype(jnp.float32)
    ble = jnp.pad(bl.reshape(1, n_cls),
                  ((0, 0), (0, LANE - n_cls))).astype(jnp.float32)
    return (w1e, b1e, w2e, b2e, wls, ble)


# ---------------------------------------------------------------------------
# Forward
# ---------------------------------------------------------------------------
def simple_model_forward(x, prep, *, n_classes):
    w1e, b1e, w2e, b2e, wls, ble = prep
    N, _, H, W = x.shape

    # ---- conv1 block -------------------------------------------------------
    x_nhwc = jnp.transpose(x, (0, 2, 3, 1))                           # (N,32,32,3)
    h1p = (H - KSIZE + 1) // POOL
    w1p = (W - KSIZE + 1) // POOL
    p1_pad = _round_up(h1p * w1p, 8)                                  # 200
    p1 = _im2col_pool_grouped_nhwc(x_nhwc, KSIZE, p1_pad)             # (4,N,200,75)
    y1 = _conv_relu_pool_call(p1, w1e, b1e)                           # (N,200,8)

    # ---- conv2 block + flatten + linear (single fused kernel) --------------
    y1 = y1[:, :h1p * w1p, :].reshape(N, h1p, w1p, C1_LANES)          # (N,14,14,8) HWC
    h2p = (h1p - KSIZE + 1) // POOL
    w2p_ = (w1p - KSIZE + 1) // POOL
    p2_pad = _round_up(h2p * w2p_, 8)                                 # 32
    p2 = _im2col_pool_grouped_nhwc(y1, KSIZE, p2_pad)                 # (4,N,32,200)
    out = _conv_relu_pool_linear_call(p2, w2e, b2e, wls, ble)         # (N,1,128)
    return out[:, 0, :n_classes]


# ---------------------------------------------------------------------------
# Reference + self-check
# ---------------------------------------------------------------------------
def _reference(x, w1, b1, w2, b2, wl, bl):
    def block(y, w, b):
        y = lax.conv_general_dilated(y, w, window_strides=(1, 1), padding="VALID",
                                     dimension_numbers=("NCHW", "OIHW", "NCHW"))
        y = jnp.maximum(y + b.reshape(1, -1, 1, 1), 0.0)
        return lax.reduce_window(y, -jnp.inf, lax.max,
                                 (1, 1, POOL, POOL), (1, 1, POOL, POOL), "VALID")
    y = block(block(x, w1, b1), w2, b2)
    y = y.reshape(y.shape[0], -1)
    return y @ wl.T + bl


if __name__ == "__main__":
    key = jax.random.PRNGKey(0)
    ks = jax.random.split(key, 7)
    N, n_classes = 2, 10
    x = jax.random.normal(ks[0], (N, 3, 32, 32), dtype=jnp.float32)

    def uinit(k, shape, fan_in):
        bound = 1.0 / (fan_in ** 0.5)
        return jax.random.uniform(k, shape, jnp.float32, -bound, bound)

    w1 = uinit(ks[1], (6, 3, 5, 5), 3 * 5 * 5)
    b1 = uinit(ks[2], (6,), 3 * 5 * 5)
    w2 = uinit(ks[3], (16, 6, 5, 5), 6 * 5 * 5)
    b2 = uinit(ks[4], (16,), 6 * 5 * 5)
    wl = uinit(ks[5], (n_classes, 400), 400)
    bl = uinit(ks[6], (n_classes,), 400)
    params = (w1, b1, w2, b2, wl, bl)

    prep = prepare_params(params)                       # once, outside the forward
    fwd = jax.jit(simple_model_forward, static_argnames=("n_classes",))
    out = fwd(x, prep, n_classes=n_classes)
    out = jax.block_until_ready(out)

    ref = _reference(x, *params)
    assert out.shape == (N, n_classes)
    if not jnp.allclose(out, ref, atol=1e-3, rtol=1e-3):
        err = float(jnp.max(jnp.abs(out - ref)))
        raise AssertionError(f"Pallas kernel mismatch vs JAX reference (max abs err={err})")
    print("KERNEL_OK")
</pallas_src>

<mosaic_0001>
module attributes {stable_mosaic.version = 11 : i64} {
  func.func @_conv_relu_pool_kernel(%arg0: i32, %arg1: memref<4x1x200x75xf32, #tpu.memory_space<vmem>>, %arg2: memref<75x8xf32, #tpu.memory_space<vmem>>, %arg3: memref<1x8xf32, #tpu.memory_space<vmem>>, %arg4: memref<1x200x8xf32, #tpu.memory_space<vmem>>) attributes {dimension_semantics = [#tpu.dimension_semantics<parallel>], iteration_bounds = array<i64: 2>, scalar_prefetch = 0 : i64, scratch_operands = 0 : i64, tpu.core_type = #tpu.core_type<tc>, window_params = [{transform_indices = @transform_0, window_bounds = array<i64: 4, 1, 200, 75>}, {pipeline_mode = #tpu.pipeline_mode<synchronous>, transform_indices = @transform_1, window_bounds = array<i64: 75, 8>}, {pipeline_mode = #tpu.pipeline_mode<synchronous>, transform_indices = @transform_2, window_bounds = array<i64: 1, 8>}, {transform_indices = @transform_3, window_bounds = array<i64: 1, 200, 8>}]} {
    %c0 = arith.constant 0 : index
    %c0_0 = arith.constant 0 : index
    %0 = vector.load %arg2[%c0, %c0_0] : memref<75x8xf32, #tpu.memory_space<vmem>>, vector<75x8xf32>
    %c0_1 = arith.constant 0 : index
    %c0_2 = arith.constant 0 : index
    %c0_3 = arith.constant 0 : index
    %c0_4 = arith.constant 0 : index
    %1 = vector.load %arg1[%c0_1, %c0_2, %c0_3, %c0_4] : memref<4x1x200x75xf32, #tpu.memory_space<vmem>>, vector<1x1x200x75xf32>
    %2 = vector.shape_cast %1 : vector<1x1x200x75xf32> to vector<200x75xf32>
    %cst = arith.constant dense<0.000000e+00> : vector<200x8xf32>
    %3 = tpu.matmul %2, %0, %cst {dimension_numbers = #tpu.dot_dimension_numbers<[1], [0], [0], [1], [0, 0, 1, 1], [], []>} : vector<200x75xf32>, vector<75x8xf32>, vector<200x8xf32> -> vector<200x8xf32>
    %c1 = arith.constant 1 : index
    %c0_5 = arith.constant 0 : index
    %c0_6 = arith.constant 0 : index
    %c0_7 = arith.constant 0 : index
    %4 = vector.load %arg1[%c1, %c0_5, %c0_6, %c0_7] : memref<4x1x200x75xf32, #tpu.memory_space<vmem>>, vector<1x1x200x75xf32>
    %5 = vector.shape_cast %4 : vector<1x1x200x75xf32> to vector<200x75xf32>
    %cst_8 = arith.constant dense<0.000000e+00> : vector<200x8xf32>
    %6 = tpu.matmul %5, %0, %cst_8 {dimension_numbers = #tpu.dot_dimension_numbers<[1], [0], [0], [1], [0, 0, 1, 1], [], []>} : vector<200x75xf32>, vector<75x8xf32>, vector<200x8xf32> -> vector<200x8xf32>
    %7 = arith.maximumf %3, %6 : vector<200x8xf32>
    %c2 = arith.constant 2 : index
    %c0_9 = arith.constant 0 : index
    %c0_10 = arith.constant 0 : index
    %c0_11 = arith.constant 0 : index
    %8 = vector.load %arg1[%c2, %c0_9, %c0_10, %c0_11] : memref<4x1x200x75xf32, #tpu.memory_space<vmem>>, vector<1x1x200x75xf32>
    %9 = vector.shape_cast %8 : vector<1x1x200x75xf32> to vector<200x75xf32>
    %cst_12 = arith.constant dense<0.000000e+00> : vector<200x8xf32>
    %10 = tpu.matmul %9, %0, %cst_12 {dimension_numbers = #tpu.dot_dimension_numbers<[1], [0], [0], [1], [0, 0, 1, 1], [], []>} : vector<200x75xf32>, vector<75x8xf32>, vector<200x8xf32> -> vector<200x8xf32>
    %c3 = arith.constant 3 : index
    %c0_13 = arith.constant 0 : index
    %c0_14 = arith.constant 0 : index
    %c0_15 = arith.constant 0 : index
    %11 = vector.load %arg1[%c3, %c0_13, %c0_14, %c0_15] : memref<4x1x200x75xf32, #tpu.memory_space<vmem>>, vector<1x1x200x75xf32>
    %12 = vector.shape_cast %11 : vector<1x1x200x75xf32> to vector<200x75xf32>
    %cst_16 = arith.constant dense<0.000000e+00> : vector<200x8xf32>
    %13 = tpu.matmul %12, %0, %cst_16 {dimension_numbers = #tpu.dot_dimension_numbers<[1], [0], [0], [1], [0, 0, 1, 1], [], []>} : vector<200x75xf32>, vector<75x8xf32>, vector<200x8xf32> -> vector<200x8xf32>
    %14 = arith.maximumf %10, %13 : vector<200x8xf32>
    %15 = arith.maximumf %7, %14 : vector<200x8xf32>
    %c0_17 = arith.constant 0 : index
    %c0_18 = arith.constant 0 : index
    %16 = vector.load %arg3[%c0_17, %c0_18] : memref<1x8xf32, #tpu.memory_space<vmem>>, vector<1x8xf32>
    %17 = vector.broadcast %16 : vector<1x8xf32> to vector<200x8xf32>
    %18 = arith.addf %15, %17 : vector<200x8xf32>
    %cst_19 = arith.constant 0.000000e+00 : f32
    %19 = vector.broadcast %cst_19 : f32 to vector<200x8xf32>
    %20 = arith.maximumf %18, %19 : vector<200x8xf32>
    %c0_20 = arith.constant 0 : index
    %c0_21 = arith.constant 0 : index
    %c0_22 = arith.constant 0 : index
    %21 = vector.load %arg4[%c0_20, %c0_21, %c0_22] : memref<1x200x8xf32, #tpu.memory_space<vmem>>, vector<1x200x8xf32>
    %22 = vector.shape_cast %21 : vector<1x200x8xf32> to vector<200x8xf32>
    %23 = vector.shape_cast %20 : vector<200x8xf32> to vector<1x200x8xf32>
    tpu.vector_store %arg4[%c0_20, %c0_21, %c0_22], %23 {strides = array<i32>} : memref<1x200x8xf32, #tpu.memory_space<vmem>>, vector<1x200x8xf32>,
    return
  }
  func.func @transform_0(%arg0: i32) -> (i32, i32, i32, i32) {
    %c0_i32 = arith.constant 0 : i32
    %c0_i32_0 = arith.constant 0 : i32
    %c0_i32_1 = arith.constant 0 : i32
    %c0_i32_2 = arith.constant 0 : i32
    return %c0_i32, %arg0, %c0_i32_0, %c0_i32_1 : i32, i32, i32, i32
  }
  func.func @transform_1(%arg0: i32) -> (i32, i32) {
    %c0_i32 = arith.constant 0 : i32
    %c0_i32_0 = arith.constant 0 : i32
    %c0_i32_1 = arith.constant 0 : i32
    return %c0_i32, %c0_i32_0 : i32, i32
  }
  func.func @transform_2(%arg0: i32) -> (i32, i32) {
    %c0_i32 = arith.constant 0 : i32
    %c0_i32_0 = arith.constant 0 : i32
    %c0_i32_1 = arith.constant 0 : i32
    return %c0_i32, %c0_i32_0 : i32, i32
  }
  func.func @transform_3(%arg0: i32) -> (i32, i32, i32) {
    %c0_i32 = arith.constant 0 : i32
    %c0_i32_0 = arith.constant 0 : i32
    %c0_i32_1 = arith.constant 0 : i32
    return %arg0, %c0_i32, %c0_i32_0 : i32, i32, i32
  }
}

module attributes {stable_mosaic.version = 11 : i64} {
  func.func @_conv_relu_pool_linear_kernel(%arg0: i32, %arg1: memref<4x1x32x200xf32, #tpu.memory_space<vmem>>, %arg2: memref<200x128xf32, #tpu.memory_space<vmem>>, %arg3: memref<1x128xf32, #tpu.memory_space<vmem>>, %arg4: memref<25x16x128xf32, #tpu.memory_space<vmem>>, %arg5: memref<1x128xf32, #tpu.memory_space<vmem>>, %arg6: memref<1x1x128xf32, #tpu.memory_space<vmem>>) attributes {dimension_semantics = [#tpu.dimension_semantics<parallel>], iteration_bounds = array<i64: 2>, scalar_prefetch = 0 : i64, scratch_operands = 0 : i64, tpu.core_type = #tpu.core_type<tc>, window_params = [{transform_indices = @transform_0, window_bounds = array<i64: 4, 1, 32, 200>}, {pipeline_mode = #tpu.pipeline_mode<synchronous>, transform_indices = @transform_1, window_bounds = array<i64: 200, 128>}, {pipeline_mode = #tpu.pipeline_mode<synchronous>, transform_indices = @transform_2, window_bounds = array<i64: 1, 128>}, {pipeline_mode = #tpu.pipeline_mode<synchronous>, transform_indices = @transform_3, window_bounds = array<i64: 25, 16, 128>}, {pipeline_mode = #tpu.pipeline_mode<synchronous>, transform_indices = @transform_4, window_bounds = array<i64: 1, 128>}, {transform_indices = @transform_5, window_bounds = array<i64: 1, 1, 128>}]} {
    %c0 = arith.constant 0 : index
    %c0_0 = arith.constant 0 : index
    %0 = vector.load %arg2[%c0, %c0_0] : memref<200x128xf32, #tpu.memory_space<vmem>>, vector<200x128xf32>
    %c0_1 = arith.constant 0 : index
    %c0_2 = arith.constant 0 : index
    %c0_3 = arith.constant 0 : index
    %c0_4 = arith.constant 0 : index
    %1 = vector.load %arg1[%c0_1, %c0_2, %c0_3, %c0_4] : memref<4x1x32x200xf32, #tpu.memory_space<vmem>>, vector<1x1x32x200xf32>
    %2 = vector.shape_cast %1 : vector<1x1x32x200xf32> to vector<32x200xf32>
    %cst = arith.constant dense<0.000000e+00> : vector<32x128xf32>
    %3 = tpu.matmul %2, %0, %cst {dimension_numbers = #tpu.dot_dimension_numbers<[1], [0], [0], [1], [0, 0, 1, 1], [], []>} : vector<32x200xf32>, vector<200x128xf32>, vector<32x128xf32> -> vector<32x128xf32>
    %c1 = arith.constant 1 : index
    %c0_5 = arith.constant 0 : index
    %c0_6 = arith.constant 0 : index
    %c0_7 = arith.constant 0 : index
    %4 = vector.load %arg1[%c1, %c0_5, %c0_6, %c0_7] : memref<4x1x32x200xf32, #tpu.memory_space<vmem>>, vector<1x1x32x200xf32>
    %5 = vector.shape_cast %4 : vector<1x1x32x200xf32> to vector<32x200xf32>
    %cst_8 = arith.constant dense<0.000000e+00> : vector<32x128xf32>
    %6 = tpu.matmul %5, %0, %cst_8 {dimension_numbers = #tpu.dot_dimension_numbers<[1], [0], [0], [1], [0, 0, 1, 1], [], []>} : vector<32x200xf32>, vector<200x128xf32>, vector<32x128xf32> -> vector<32x128xf32>
    %7 = arith.maximumf %3, %6 : vector<32x128xf32>
    %c2 = arith.constant 2 : index
    %c0_9 = arith.constant 0 : index
    %c0_10 = arith.constant 0 : index
    %c0_11 = arith.constant 0 : index
    %8 = vector.load %arg1[%c2, %c0_9, %c0_10, %c0_11] : memref<4x1x32x200xf32, #tpu.memory_space<vmem>>, vector<1x1x32x200xf32>
    %9 = vector.shape_cast %8 : vector<1x1x32x200xf32> to vector<32x200xf32>
    %cst_12 = arith.constant dense<0.000000e+00> : vector<32x128xf32>
    %10 = tpu.matmul %9, %0, %cst_12 {dimension_numbers = #tpu.dot_dimension_numbers<[1], [0], [0], [1], [0, 0, 1, 1], [], []>} : vector<32x200xf32>, vector<200x128xf32>, vector<32x128xf32> -> vector<32x128xf32>
    %c3 = arith.constant 3 : index
    %c0_13 = arith.constant 0 : index
    %c0_14 = arith.constant 0 : index
    %c0_15 = arith.constant 0 : index
    %11 = vector.load %arg1[%c3, %c0_13, %c0_14, %c0_15] : memref<4x1x32x200xf32, #tpu.memory_space<vmem>>, vector<1x1x32x200xf32>
    %12 = vector.shape_cast %11 : vector<1x1x32x200xf32> to vector<32x200xf32>
    %cst_16 = arith.constant dense<0.000000e+00> : vector<32x128xf32>
    %13 = tpu.matmul %12, %0, %cst_16 {dimension_numbers = #tpu.dot_dimension_numbers<[1], [0], [0], [1], [0, 0, 1, 1], [], []>} : vector<32x200xf32>, vector<200x128xf32>, vector<32x128xf32> -> vector<32x128xf32>
    %14 = arith.maximumf %10, %13 : vector<32x128xf32>
    %15 = arith.maximumf %7, %14 : vector<32x128xf32>
    %c0_17 = arith.constant 0 : index
    %c0_18 = arith.constant 0 : index
    %16 = vector.load %arg3[%c0_17, %c0_18] : memref<1x128xf32, #tpu.memory_space<vmem>>, vector<1x128xf32>
    %17 = vector.broadcast %16 : vector<1x128xf32> to vector<32x128xf32>
    %18 = arith.addf %15, %17 : vector<32x128xf32>
    %cst_19 = arith.constant 0.000000e+00 : f32
    %19 = vector.broadcast %cst_19 : f32 to vector<32x128xf32>
    %20 = arith.maximumf %18, %19 : vector<32x128xf32>
    %c0_20 = arith.constant 0 : index
    %c0_21 = arith.constant 0 : index
    %21 = vector.load %arg5[%c0_20, %c0_21] : memref<1x128xf32, #tpu.memory_space<vmem>>, vector<1x128xf32>
    %22 = vector.extract_strided_slice %20 {offsets = [0, 0], sizes = [1, 16], strides = [1, 1]} : vector<32x128xf32> to vector<1x16xf32>
    %c0_22 = arith.constant 0 : index
    %c0_23 = arith.constant 0 : index
    %c0_24 = arith.constant 0 : index
    %23 = vector.load %arg4[%c0_22, %c0_23, %c0_24] : memref<25x16x128xf32, #tpu.memory_space<vmem>>, vector<1x16x128xf32>
    %24 = vector.shape_cast %23 : vector<1x16x128xf32> to vector<16x128xf32>
    %cst_25 = arith.constant dense<0.000000e+00> : vector<1x128xf32>
    %25 = tpu.matmul %22, %24, %cst_25 {dimension_numbers = #tpu.dot_dimension_numbers<[1], [0], [0], [1], [0, 0, 1, 1], [], []>} : vector<1x16xf32>, vector<16x128xf32>, vector<1x128xf32> -> vector<1x128xf32>
    %26 = arith.addf %21, %25 : vector<1x128xf32>
    %27 = vector.extract_strided_slice %20 {offsets = [1, 0], sizes = [1, 16], strides = [1, 1]} : vector<32x128xf32> to vector<1x16xf32>
    %c1_26 = arith.constant 1 : index
    %c0_27 = arith.constant 0 : index
    %c0_28 = arith.constant 0 : index
    %28 = vector.load %arg4[%c1_26, %c0_27, %c0_28] : memref<25x16x128xf32, #tpu.memory_space<vmem>>, vector<1x16x128xf32>
    %29 = vector.shape_cast %28 : vector<1x16x128xf32> to vector<16x128xf32>
    %cst_29 = arith.constant dense<0.000000e+00> : vector<1x128xf32>
    %30 = tpu.matmul %27, %29, %cst_29 {dimension_numbers = #tpu.dot_dimension_numbers<[1], [0], [0], [1], [0, 0, 1, 1], [], []>} : vector<1x16xf32>, vector<16x128xf32>, vector<1x128xf32> -> vector<1x128xf32>
    %31 = arith.addf %26, %30 : vector<1x128xf32>
    %32 = vector.extract_strided_slice %20 {offsets = [2, 0], sizes = [1, 16], strides = [1, 1]} : vector<32x128xf32> to vector<1x16xf32>
    %c2_30 = arith.constant 2 : index
    %c0_31 = arith.constant 0 : index
    %c0_32 = arith.constant 0 : index
    %33 = vector.load %arg4[%c2_30, %c0_31, %c0_32] : memref<25x16x128xf32, #tpu.memory_space<vmem>>, vector<1x16x128xf32>
    %34 = vector.shape_cast %33 : vector<1x16x128xf32> to vector<16x128xf32>
    %cst_33 = arith.constant dense<0.000000e+00> : vector<1x128xf32>
    %35 = tpu.matmul %32, %34, %cst_33 {dimension_numbers = #tpu.dot_dimension_numbers<[1], [0], [0], [1], [0, 0, 1, 1], [], []>} : vector<1x16xf32>, vector<16x128xf32>, vector<1x128xf32> -> vector<1x128xf32>
    %36 = arith.addf %31, %35 : vector<1x128xf32>
    %37 = vector.extract_strided_slice %20 {offsets = [3, 0], sizes = [1, 16], strides = [1, 1]} : vector<32x128xf32> to vector<1x16xf32>
    %c3_34 = arith.constant 3 : index
    %c0_35 = arith.constant 0 : index
    %c0_36 = arith.constant 0 : index
    %38 = vector.load %arg4[%c3_34, %c0_35, %c0_36] : memref<25x16x128xf32, #tpu.memory_space<vmem>>, vector<1x16x128xf32>
    %39 = vector.shape_cast %38 : vector<1x16x128xf32> to vector<16x128xf32>
    %cst_37 = arith.constant dense<0.000000e+00> : vector<1x128xf32>
    %40 = tpu.matmul %37, %39, %cst_37 {dimension_numbers = #tpu.dot_dimension_numbers<[1], [0], [0], [1], [0, 0, 1, 1], [], []>} : vector<1x16xf32>, vector<16x128xf32>, vector<1x128xf32> -> vector<1x128xf32>
    %41 = arith.addf %36, %40 : vector<1x128xf32>
    %42 = vector.extract_strided_slice %20 {offsets = [4, 0], sizes = [1, 16], strides = [1, 1]} : vector<32x128xf32> to vector<1x16xf32>
    %c4 = arith.constant 4 : index
    %c0_38 = arith.constant 0 : index
    %c0_39 = arith.constant 0 : index
    %43 = vector.load %arg4[%c4, %c0_38, %c0_39] : memref<25x16x128xf32, #tpu.memory_space<vmem>>, vector<1x16x128xf32>
    %44 = vector.shape_cast %43 : vector<1x16x128xf32> to vector<16x128xf32>
    %cst_40 = arith.constant dense<0.000000e+00> : vector<1x128xf32>
    %45 = tpu.matmul %42, %44, %cst_40 {dimension_numbers = #tpu.dot_dimension_numbers<[1], [0], [0], [1], [0, 0, 1, 1], [], []>} : vector<1x16xf32>, vector<16x128xf32>, vector<1x128xf32> -> vector<1x128xf32>
    %46 = arith.addf %41, %45 : vector<1x128xf32>
    %47 = vector.extract_strided_slice %20 {offsets = [5, 0], sizes = [1, 16], strides = [1, 1]} : vector<32x128xf32> to vector<1x16xf32>
    %c5 = arith.constant 5 : index
    %c0_41 = arith.constant 0 : index
    %c0_42 = arith.constant 0 : index
    %48 = vector.load %arg4[%c5, %c0_41, %c0_42] : memref<25x16x128xf32, #tpu.memory_space<vmem>>, vector<1x16x128xf32>
    %49 = vector.shape_cast %48 : vector<1x16x128xf32> to vector<16x128xf32>
    %cst_43 = arith.constant dense<0.000000e+00> : vector<1x128xf32>
    %50 = tpu.matmul %47, %49, %cst_43 {dimension_numbers = #tpu.dot_dimension_numbers<[1], [0], [0], [1], [0, 0, 1, 1], [], []>} : vector<1x16xf32>, vector<16x128xf32>, vector<1x128xf32> -> vector<1x128xf32>
    %51 = arith.addf %46, %50 : vector<1x128xf32>
    %52 = vector.extract_strided_slice %20 {offsets = [6, 0], sizes = [1, 16], strides = [1, 1]} : vector<32x128xf32> to vector<1x16xf32>
    %c6 = arith.constant 6 : index
    %c0_44 = arith.constant 0 : index
    %c0_45 = arith.constant 0 : index
    %53 = vector.load %arg4[%c6, %c0_44, %c0_45] : memref<25x16x128xf32, #tpu.memory_space<vmem>>, vector<1x16x128xf32>
    %54 = vector.shape_cast %53 : vector<1x16x128xf32> to vector<16x128xf32>
    %cst_46 = arith.constant dense<0.000000e+00> : vector<1x128xf32>
    %55 = tpu.matmul %52, %54, %cst_46 {dimension_numbers = #tpu.dot_dimension_numbers<[1], [0], [0], [1], [0, 0, 1, 1], [], []>} : vector<1x16xf32>, vector<16x128xf32>, vector<1x128xf32> -> vector<1x128xf32>
    %56 = arith.addf %51, %55 : vector<1x128xf32>
    %57 = vector.extract_strided_slice %20 {offsets = [7, 0], sizes = [1, 16], strides = [1, 1]} : vector<32x128xf32> to vector<1x16xf32>
    %c7 = arith.constant 7 : index
    %c0_47 = arith.constant 0 : index
    %c0_48 = arith.constant 0 : index
    %58 = vector.load %arg4[%c7, %c0_47, %c0_48] : memref<25x16x128xf32, #tpu.memory_space<vmem>>, vector<1x16x128xf32>
    %59 = vector.shape_cast %58 : vector<1x16x128xf32> to vector<16x128xf32>
    %cst_49 = arith.constant dense<0.000000e+00> : vector<1x128xf32>
    %60 = tpu.matmul %57, %59, %cst_49 {dimension_numbers = #tpu.dot_dimension_numbers<[1], [0], [0], [1], [0, 0, 1, 1], [], []>} : vector<1x16xf32>, vector<16x128xf32>, vector<1x128xf32> -> vector<1x128xf32>
    %61 = arith.addf %56, %60 : vector<1x128xf32>
    %62 = vector.extract_strided_slice %20 {offsets = [8, 0], sizes = [1, 16], strides = [1, 1]} : vector<32x128xf32> to vector<1x16xf32>
    %c8 = arith.constant 8 : index
    %c0_50 = arith.constant 0 : index
    %c0_51 = arith.constant 0 : index
    %63 = vector.load %arg4[%c8, %c0_50, %c0_51] : memref<25x16x128xf32, #tpu.memory_space<vmem>>, vector<1x16x128xf32>
    %64 = vector.shape_cast %63 : vector<1x16x128xf32> to vector<16x128xf32>
    %cst_52 = arith.constant dense<0.000000e+00> : vector<1x128xf32>
    %65 = tpu.matmul %62, %64, %cst_52 {dimension_numbers = #tpu.dot_dimension_numbers<[1], [0], [0], [1], [0, 0, 1, 1], [], []>} : vector<1x16xf32>, vector<16x128xf32>, vector<1x128xf32> -> vector<1x128xf32>
    %66 = arith.addf %61, %65 : vector<1x128xf32>
    %67 = vector.extract_strided_slice %20 {offsets = [9, 0], sizes = [1, 16], strides = [1, 1]} : vector<32x128xf32> to vector<1x16xf32>
    %c9 = arith.constant 9 : index
    %c0_53 = arith.constant 0 : index
    %c0_54 = arith.constant 0 : index
    %68 = vector.load %arg4[%c9, %c0_53, %c0_54] : memref<25x16x128xf32, #tpu.memory_space<vmem>>, vector<1x16x128xf32>
    %69 = vector.shape_cast %68 : vector<1x16x128xf32> to vector<16x128xf32>
    %cst_55 = arith.constant dense<0.000000e+00> : vector<1x128xf32>
    %70 = tpu.matmul %67, %69, %cst_55 {dimension_numbers = #tpu.dot_dimension_numbers<[1], [0], [0], [1], [0, 0, 1, 1], [], []>} : vector<1x16xf32>, vector<16x128xf32>, vector<1x128xf32> -> vector<1x128xf32>
    %71 = arith.addf %66, %70 : vector<1x128xf32>
    %72 = vector.extract_strided_slice %20 {offsets = [10, 0], sizes = [1, 16], strides = [1, 1]} : vector<32x128xf32> to vector<1x16xf32>
    %c10 = arith.constant 10 : index
    %c0_56 = arith.constant 0 : index
    %c0_57 = arith.constant 0 : index
    %73 = vector.load %arg4[%c10, %c0_56, %c0_57] : memref<25x16x128xf32, #tpu.memory_space<vmem>>, vector<1x16x128xf32>
    %74 = vector.shape_cast %73 : vector<1x16x128xf32> to vector<16x128xf32>
    %cst_58 = arith.constant dense<0.000000e+00> : vector<1x128xf32>
    %75 = tpu.matmul %72, %74, %cst_58 {dimension_numbers = #tpu.dot_dimension_numbers<[1], [0], [0], [1], [0, 0, 1, 1], [], []>} : vector<1x16xf32>, vector<16x128xf32>, vector<1x128xf32> -> vector<1x128xf32>
    %76 = arith.addf %71, %75 : vector<1x128xf32>
    %77 = vector.extract_strided_slice %20 {offsets = [11, 0], sizes = [1, 16], strides = [1, 1]} : vector<32x128xf32> to vector<1x16xf32>
    %c11 = arith.constant 11 : index
    %c0_59 = arith.constant 0 : index
    %c0_60 = arith.constant 0 : index
    %78 = vector.load %arg4[%c11, %c0_59, %c0_60] : memref<25x16x128xf32, #tpu.memory_space<vmem>>, vector<1x16x128xf32>
    %79 = vector.shape_cast %78 : vector<1x16x128xf32> to vector<16x128xf32>
    %cst_61 = arith.constant dense<0.000000e+00> : vector<1x128xf32>
    %80 = tpu.matmul %77, %79, %cst_61 {dimension_numbers = #tpu.dot_dimension_numbers<[1], [0], [0], [1], [0, 0, 1, 1], [], []>} : vector<1x16xf32>, vector<16x128xf32>, vector<1x128xf32> -> vector<1x128xf32>
    %81 = arith.addf %76, %80 : vector<1x128xf32>
    %82 = vector.extract_strided_slice %20 {offsets = [12, 0], sizes = [1, 16], strides = [1, 1]} : vector<32x128xf32> to vector<1x16xf32>
    %c12 = arith.constant 12 : index
    %c0_62 = arith.constant 0 : index
    %c0_63 = arith.constant 0 : index
    %83 = vector.load %arg4[%c12, %c0_62, %c0_63] : memref<25x16x128xf32, #tpu.memory_space<vmem>>, vector<1x16x128xf32>
    %84 = vector.shape_cast %83 : vector<1x16x128xf32> to vector<16x128xf32>
    %cst_64 = arith.constant dense<0.000000e+00> : vector<1x128xf32>
    %85 = tpu.matmul %82, %84, %cst_64 {dimension_numbers = #tpu.dot_dimension_numbers<[1], [0], [0], [1], [0, 0, 1, 1], [], []>} : vector<1x16xf32>, vector<16x128xf32>, vector<1x128xf32> -> vector<1x128xf32>
    %86 = arith.addf %81, %85 : vector<1x128xf32>
    %87 = vector.extract_strided_slice %20 {offsets = [13, 0], sizes = [1, 16], strides = [1, 1]} : vector<32x128xf32> to vector<1x16xf32>
    %c13 = arith.constant 13 : index
    %c0_65 = arith.constant 0 : index
    %c0_66 = arith.constant 0 : index
    %88 = vector.load %arg4[%c13, %c0_65, %c0_66] : memref<25x16x128xf32, #tpu.memory_space<vmem>>, vector<1x16x128xf32>
    %89 = vector.shape_cast %88 : vector<1x16x128xf32> to vector<16x128xf32>
    %cst_67 = arith.constant dense<0.000000e+00> : vector<1x128xf32>
    %90 = tpu.matmul %87, %89, %cst_67 {dimension_numbers = #tpu.dot_dimension_numbers<[1], [0], [0], [1], [0, 0, 1, 1], [], []>} : vector<1x16xf32>, vector<16x128xf32>, vector<1x128xf32> -> vector<1x128xf32>
    %91 = arith.addf %86, %90 : vector<1x128xf32>
    %92 = vector.extract_strided_slice %20 {offsets = [14, 0], sizes = [1, 16], strides = [1, 1]} : vector<32x128xf32> to vector<1x16xf32>
    %c14 = arith.constant 14 : index
    %c0_68 = arith.constant 0 : index
    %c0_69 = arith.constant 0 : index
    %93 = vector.load %arg4[%c14, %c0_68, %c0_69] : memref<25x16x128xf32, #tpu.memory_space<vmem>>, vector<1x16x128xf32>
    %94 = vector.shape_cast %93 : vector<1x16x128xf32> to vector<16x128xf32>
    %cst_70 = arith.constant dense<0.000000e+00> : vector<1x128xf32>
    %95 = tpu.matmul %92, %94, %cst_70 {dimension_numbers = #tpu.dot_dimension_numbers<[1], [0], [0], [1], [0, 0, 1, 1], [], []>} : vector<1x16xf32>, vector<16x128xf32>, vector<1x128xf32> -> vector<1x128xf32>
    %96 = arith.addf %91, %95 : vector<1x128xf32>
    %97 = vector.extract_strided_slice %20 {offsets = [15, 0], sizes = [1, 16], strides = [1, 1]} : vector<32x128xf32> to vector<1x16xf32>
    %c15 = arith.constant 15 : index
    %c0_71 = arith.constant 0 : index
    %c0_72 = arith.constant 0 : index
    %98 = vector.load %arg4[%c15, %c0_71, %c0_72] : memref<25x16x128xf32, #tpu.memory_space<vmem>>, vector<1x16x128xf32>
    %99 = vector.shape_cast %98 : vector<1x16x128xf32> to vector<16x128xf32>
    %cst_73 = arith.constant dense<0.000000e+00> : vector<1x128xf32>
    %100 = tpu.matmul %97, %99, %cst_73 {dimension_numbers = #tpu.dot_dimension_numbers<[1], [0], [0], [1], [0, 0, 1, 1], [], []>} : vector<1x16xf32>, vector<16x128xf32>, vector<1x128xf32> -> vector<1x128xf32>
    %101 = arith.addf %96, %100 : vector<1x128xf32>
    %102 = vector.extract_strided_slice %20 {offsets = [16, 0], sizes = [1, 16], strides = [1, 1]} : vector<32x128xf32> to vector<1x16xf32>
    %c16 = arith.constant 16 : index
    %c0_74 = arith.constant 0 : index
    %c0_75 = arith.constant 0 : index
    %103 = vector.load %arg4[%c16, %c0_74, %c0_75] : memref<25x16x128xf32, #tpu.memory_space<vmem>>, vector<1x16x128xf32>
    %104 = vector.shape_cast %103 : vector<1x16x128xf32> to vector<16x128xf32>
    %cst_76 = arith.constant dense<0.000000e+00> : vector<1x128xf32>
    %105 = tpu.matmul %102, %104, %cst_76 {dimension_numbers = #tpu.dot_dimension_numbers<[1], [0], [0], [1], [0, 0, 1, 1], [], []>} : vector<1x16xf32>, vector<16x128xf32>, vector<1x128xf32> -> vector<1x128xf32>
    %106 = arith.addf %101, %105 : vector<1x128xf32>
    %107 = vector.extract_strided_slice %20 {offsets = [17, 0], sizes = [1, 16], strides = [1, 1]} : vector<32x128xf32> to vector<1x16xf32>
    %c17 = arith.constant 17 : index
    %c0_77 = arith.constant 0 : index
    %c0_78 = arith.constant 0 : index
    %108 = vector.load %arg4[%c17, %c0_77, %c0_78] : memref<25x16x128xf32, #tpu.memory_space<vmem>>, vector<1x16x128xf32>
    %109 = vector.shape_cast %108 : vector<1x16x128xf32> to vector<16x128xf32>
    %cst_79 = arith.constant dense<0.000000e+00> : vector<1x128xf32>
    %110 = tpu.matmul %107, %109, %cst_79 {dimension_numbers = #tpu.dot_dimension_numbers<[1], [0], [0], [1], [0, 0, 1, 1], [], []>} : vector<1x16xf32>, vector<16x128xf32>, vector<1x128xf32> -> vector<1x128xf32>
    %111 = arith.addf %106, %110 : vector<1x128xf32>
    %112 = vector.extract_strided_slice %20 {offsets = [18, 0], sizes = [1, 16], strides = [1, 1]} : vector<32x128xf32> to vector<1x16xf32>
    %c18 = arith.constant 18 : index
    %c0_80 = arith.constant 0 : index
    %c0_81 = arith.constant 0 : index
    %113 = vector.load %arg4[%c18, %c0_80, %c0_81] : memref<25x16x128xf32, #tpu.memory_space<vmem>>, vector<1x16x128xf32>
    %114 = vector.shape_cast %113 : vector<1x16x128xf32> to vector<16x128xf32>
    %cst_82 = arith.constant dense<0.000000e+00> : vector<1x128xf32>
    %115 = tpu.matmul %112, %114, %cst_82 {dimension_numbers = #tpu.dot_dimension_numbers<[1], [0], [0], [1], [0, 0, 1, 1], [], []>} : vector<1x16xf32>, vector<16x128xf32>, vector<1x128xf32> -> vector<1x128xf32>
    %116 = arith.addf %111, %115 : vector<1x128xf32>
    %117 = vector.extract_strided_slice %20 {offsets = [19, 0], sizes = [1, 16], strides = [1, 1]} : vector<32x128xf32> to vector<1x16xf32>
    %c19 = arith.constant 19 : index
    %c0_83 = arith.constant 0 : index
    %c0_84 = arith.constant 0 : index
    %118 = vector.load %arg4[%c19, %c0_83, %c0_84] : memref<25x16x128xf32, #tpu.memory_space<vmem>>, vector<1x16x128xf32>
    %119 = vector.shape_cast %118 : vector<1x16x128xf32> to vector<16x128xf32>
    %cst_85 = arith.constant dense<0.000000e+00> : vector<1x128xf32>
    %120 = tpu.matmul %117, %119, %cst_85 {dimension_numbers = #tpu.dot_dimension_numbers<[1], [0], [0], [1], [0, 0, 1, 1], [], []>} : vector<1x16xf32>, vector<16x128xf32>, vector<1x128xf32> -> vector<1x128xf32>
    %121 = arith.addf %116, %120 : vector<1x128xf32>
    %122 = vector.extract_strided_slice %20 {offsets = [20, 0], sizes = [1, 16], strides = [1, 1]} : vector<32x128xf32> to vector<1x16xf32>
    %c20 = arith.constant 20 : index
    %c0_86 = arith.constant 0 : index
    %c0_87 = arith.constant 0 : index
    %123 = vector.load %arg4[%c20, %c0_86, %c0_87] : memref<25x16x128xf32, #tpu.memory_space<vmem>>, vector<1x16x128xf32>
    %124 = vector.shape_cast %123 : vector<1x16x128xf32> to vector<16x128xf32>
    %cst_88 = arith.constant dense<0.000000e+00> : vector<1x128xf32>
    %125 = tpu.matmul %122, %124, %cst_88 {dimension_numbers = #tpu.dot_dimension_numbers<[1], [0], [0], [1], [0, 0, 1, 1], [], []>} : vector<1x16xf32>, vector<16x128xf32>, vector<1x128xf32> -> vector<1x128xf32>
    %126 = arith.addf %121, %125 : vector<1x128xf32>
    %127 = vector.extract_strided_slice %20 {offsets = [21, 0], sizes = [1, 16], strides = [1, 1]} : vector<32x128xf32> to vector<1x16xf32>
    %c21 = arith.constant 21 : index
    %c0_89 = arith.constant 0 : index
    %c0_90 = arith.constant 0 : index
    %128 = vector.load %arg4[%c21, %c0_89, %c0_90] : memref<25x16x128xf32, #tpu.memory_space<vmem>>, vector<1x16x128xf32>
    %129 = vector.shape_cast %128 : vector<1x16x128xf32> to vector<16x128xf32>
    %cst_91 = arith.constant dense<0.000000e+00> : vector<1x128xf32>
    %130 = tpu.matmul %127, %129, %cst_91 {dimension_numbers = #tpu.dot_dimension_numbers<[1], [0], [0], [1], [0, 0, 1, 1], [], []>} : vector<1x16xf32>, vector<16x128xf32>, vector<1x128xf32> -> vector<1x128xf32>
    %131 = arith.addf %126, %130 : vector<1x128xf32>
    %132 = vector.extract_strided_slice %20 {offsets = [22, 0], sizes = [1, 16], strides = [1, 1]} : vector<32x128xf32> to vector<1x16xf32>
    %c22 = arith.constant 22 : index
    %c0_92 = arith.constant 0 : index
    %c0_93 = arith.constant 0 : index
    %133 = vector.load %arg4[%c22, %c0_92, %c0_93] : memref<25x16x128xf32, #tpu.memory_space<vmem>>, vector<1x16x128xf32>
    %134 = vector.shape_cast %133 : vector<1x16x128xf32> to vector<16x128xf32>
    %cst_94 = arith.constant dense<0.000000e+00> : vector<1x128xf32>
    %135 = tpu.matmul %132, %134, %cst_94 {dimension_numbers = #tpu.dot_dimension_numbers<[1], [0], [0], [1], [0, 0, 1, 1], [], []>} : vector<1x16xf32>, vector<16x128xf32>, vector<1x128xf32> -> vector<1x128xf32>
    %136 = arith.addf %131, %135 : vector<1x128xf32>
    %137 = vector.extract_strided_slice %20 {offsets = [23, 0], sizes = [1, 16], strides = [1, 1]} : vector<32x128xf32> to vector<1x16xf32>
    %c23 = arith.constant 23 : index
    %c0_95 = arith.constant 0 : index
    %c0_96 = arith.constant 0 : index
    %138 = vector.load %arg4[%c23, %c0_95, %c0_96] : memref<25x16x128xf32, #tpu.memory_space<vmem>>, vector<1x16x128xf32>
    %139 = vector.shape_cast %138 : vector<1x16x128xf32> to vector<16x128xf32>
    %cst_97 = arith.constant dense<0.000000e+00> : vector<1x128xf32>
    %140 = tpu.matmul %137, %139, %cst_97 {dimension_numbers = #tpu.dot_dimension_numbers<[1], [0], [0], [1], [0, 0, 1, 1], [], []>} : vector<1x16xf32>, vector<16x128xf32>, vector<1x128xf32> -> vector<1x128xf32>
    %141 = arith.addf %136, %140 : vector<1x128xf32>
    %142 = vector.extract_strided_slice %20 {offsets = [24, 0], sizes = [1, 16], strides = [1, 1]} : vector<32x128xf32> to vector<1x16xf32>
    %c24 = arith.constant 24 : index
    %c0_98 = arith.constant 0 : index
    %c0_99 = arith.constant 0 : index
    %143 = vector.load %arg4[%c24, %c0_98, %c0_99] : memref<25x16x128xf32, #tpu.memory_space<vmem>>, vector<1x16x128xf32>
    %144 = vector.shape_cast %143 : vector<1x16x128xf32> to vector<16x128xf32>
    %cst_100 = arith.constant dense<0.000000e+00> : vector<1x128xf32>
    %145 = tpu.matmul %142, %144, %cst_100 {dimension_numbers = #tpu.dot_dimension_numbers<[1], [0], [0], [1], [0, 0, 1, 1], [], []>} : vector<1x16xf32>, vector<16x128xf32>, vector<1x128xf32> -> vector<1x128xf32>
    %146 = arith.addf %141, %145 : vector<1x128xf32>
    %c0_101 = arith.constant 0 : index
    %c0_102 = arith.constant 0 : index
    %c0_103 = arith.constant 0 : index
    %147 = vector.load %arg6[%c0_101, %c0_102, %c0_103] : memref<1x1x128xf32, #tpu.memory_space<vmem>>, vector<1x1x128xf32>
    %148 = vector.shape_cast %147 : vector<1x1x128xf32> to vector<1x128xf32>
    %149 = vector.shape_cast %146 : vector<1x128xf32> to vector<1x1x128xf32>
    tpu.vector_store %arg6[%c0_101, %c0_102, %c0_103], %149 {strides = array<i32>} : memref<1x1x128xf32, #tpu.memory_space<vmem>>, vector<1x1x128xf32>,
    return
  }
  func.func @transform_0(%arg0: i32) -> (i32, i32, i32, i32) {
    %c0_i32 = arith.constant 0 : i32
    %c0_i32_0 = arith.constant 0 : i32
    %c0_i32_1 = arith.constant 0 : i32
    %c0_i32_2 = arith.constant 0 : i32
    return %c0_i32, %arg0, %c0_i32_0, %c0_i32_1 : i32, i32, i32, i32
  }
  func.func @transform_1(%arg0: i32) -> (i32, i32) {
    %c0_i32 = arith.constant 0 : i32
    %c0_i32_0 = arith.constant 0 : i32
    %c0_i32_1 = arith.constant 0 : i32
    return %c0_i32, %c0_i32_0 : i32, i32
  }
  func.func @transform_2(%arg0: i32) -> (i32, i32) {
    %c0_i32 = arith.constant 0 : i32
    %c0_i32_0 = arith.constant 0 : i32
    %c0_i32_1 = arith.constant 0 : i32
    return %c0_i32, %c0_i32_0 : i32, i32
  }
  func.func @transform_3(%arg0: i32) -> (i32, i32, i32) {
    %c0_i32 = arith.constant 0 : i32
    %c0_i32_0 = arith.constant 0 : i32
    %c0_i32_1 = arith.constant 0 : i32
    %c0_i32_2 = arith.constant 0 : i32
    return %c0_i32, %c0_i32_0, %c0_i32_1 : i32, i32, i32
  }
  func.func @transform_4(%arg0: i32) -> (i32, i32) {
    %c0_i32 = arith.constant 0 : i32
    %c0_i32_0 = arith.constant 0 : i32
    %c0_i32_1 = arith.constant 0 : i32
    return %c0_i32, %c0_i32_0 : i32, i32
  }
  func.func @transform_5(%arg0: i32) -> (i32, i32, i32) {
    %c0_i32 = arith.constant 0 : i32
    %c0_i32_0 = arith.constant 0 : i32
    %c0_i32_1 = arith.constant 0 : i32
    return %arg0, %c0_i32, %c0_i32_0 : i32, i32, i32
  }
}

</mosaic_0001>

<llo_original>
// kernel: simple_model_forward.2
$region0: #{simple_model_forward.2}
  #allocation0 [shape = 'u32[]', space=smem, size = 0x4, offset = 0x4, fixed_abs, tag = 'smem constant byte address 0x4 - core index']
  #allocation1 [shape = 'u32[72,128]{1,0:T(1,128)}', space=vmem, size = 0x9000, scoped, tag = 'internal scratch']
  %s0 = inlined_call_operand.vmem [shape: f32[4,2,200,75], index: 0, kind: input, shape index: {}]
  %s1 = inlined_call_operand.vmem [shape: f32[75,8], index: 1, kind: input, shape index: {}]
  %s2 = inlined_call_operand.vmem [shape: f32[1,8], index: 2, kind: input, shape index: {}]
  %s3 = inlined_call_operand.vmem [shape: f32[2,200,8], index: 3, kind: output, shape index: {}]
  %s4 = sld [smem:[#allocation0]]
  $region83: #{simple_model_forward.2} parent=0
    _
  %s6 = ssub.s32 1, %s4
  %s7 = scalar_select 0, %s6, %s4
  $region1: #{simple_model_forward.2} parent=0
    #allocation2 [shape = 'u8[819200]{0}', space=vmem, size = 0xc8000, scoped, tag = 'input window, operand 0']
    loop: start=0, step=1, limit=4
    $region2: #{simple_model_forward.2} parent=1 // loop_pre_header
      _
    $region3: #{simple_model_forward.2} parent=1 // loop_header
      %s9 = sphi 0, %s13
      %p10 = scmp.ge.s32.totalorder %s9, 4
      %s19 = sphi 0, %s21
      %s22 = sphi 0, %s19
      %s23 = sphi 0, %s22
      %s39 = sphi 0, %s23
      %s43 = sphi 0, %s43
      %s45 = sphi 0, %s43
      %s46 = sphi 0, %s45
      %s60 = sphi 0, %s46
      %s64 = sphi 0, %s64
      %s66 = sphi 0, %s64
      %s67 = sphi 0, %s66
      %s81 = sphi 0, %s67
      %s87 = sphi 0, %s89
      %s90 = sphi 0, %s87
      %s91 = sphi 0, %s90
      %s107 = sphi 0, %s91
    $region4: #{simple_model_forward.2} parent=1 // loop_header_branch
      %12 = sbr.rel (%p10) target = $region8
    $region5: #{simple_model_forward.2} parent=1 // loop_body
      %s14 = ssub.s32 %s9, 1
      %s15 = ssub.s32 %s9, 2
      %s16 = sadd.s32 %s9, 1
      %s17 = ssub.s32 %s9, %s16
      %p18 = scmp.eq.s32.totalorder %s17, 0
      %s20 = sadd.s32 %s19, 1
      %s21 = scalar_select %p18, %s19, %s20
      %p24 = pneg %p18
      %p25 = scmp.eq.s32.totalorder %s9, 1
      %p26 = por %p24, %p25
      %p27 = scmp.ne.s32.totalorder %s19, %s22
      %p28 = scmp.eq.s32.totalorder %s9, 0
      %p29 = por %p27, %p28
      %p30 = scmp.ne.s32.totalorder %s19, %s22
      %p31 = scmp.eq.s32.totalorder %s14, 1
      %p32 = por %p30, %p31
      %p33 = scmp.ne.s32.totalorder %s22, %s23
      %p34 = scmp.eq.s32.totalorder %s14, 0
      %p35 = por %p33, %p34
      %p36 = scmp.ne.s32.totalorder %s22, %s23
      %p37 = scmp.eq.s32.totalorder %s15, 1
      %p38 = por %p36, %p37
      %p40 = scmp.ne.s32.totalorder %s23, %s39
      %p41 = scmp.eq.s32.totalorder %s15, 0
      %p42 = por %p40, %p41
      %s44 = sadd.s32 %s43, 1
      %p47 = scmp.eq.s32.totalorder %s9, 1
      %p48 = scmp.ne.s32.totalorder %s43, %s45
      %p49 = scmp.eq.s32.totalorder %s9, 0
      %p50 = por %p48, %p49
      %p51 = scmp.ne.s32.totalorder %s43, %s45
      %p52 = scmp.eq.s32.totalorder %s14, 1
      %p53 = por %p51, %p52
      %p54 = scmp.ne.s32.totalorder %s45, %s46
      %p55 = scmp.eq.s32.totalorder %s14, 0
      %p56 = por %p54, %p55
      %p57 = scmp.ne.s32.totalorder %s45, %s46
      %p58 = scmp.eq.s32.totalorder %s15, 1
      %p59 = por %p57, %p58
      %p61 = scmp.ne.s32.totalorder %s46, %s60
      %p62 = scmp.eq.s32.totalorder %s15, 0
      %p63 = por %p61, %p62
      %s65 = sadd.s32 %s64, 1
      %p68 = scmp.eq.s32.totalorder %s9, 1
      %p69 = scmp.ne.s32.totalorder %s64, %s66
      %p70 = scmp.eq.s32.totalorder %s9, 0
      %p71 = por %p69, %p70
      %p72 = scmp.ne.s32.totalorder %s64, %s66
      %p73 = scmp.eq.s32.totalorder %s14, 1
      %p74 = por %p72, %p73
      %p75 = scmp.ne.s32.totalorder %s66, %s67
      %p76 = scmp.eq.s32.totalorder %s14, 0
      %p77 = por %p75, %p76
      %p78 = scmp.ne.s32.totalorder %s66, %s67
      %p79 = scmp.eq.s32.totalorder %s15, 1
      %p80 = por %p78, %p79
      %p82 = scmp.ne.s32.totalorder %s67, %s81
      %p83 = scmp.eq.s32.totalorder %s15, 0
      %p84 = por %p82, %p83
      %s85 = ssub.s32 %s9, %s16
      %p86 = scmp.eq.s32.totalorder %s85, 0
      %s88 = sadd.s32 %s87, 1
      %s89 = scalar_select %p86, %s87, %s88
      %p92 = pneg %p86
      %p93 = scmp.eq.s32.totalorder %s9, 1
      %p94 = por %p92, %p93
      %p95 = scmp.ne.s32.totalorder %s87, %s90
      %p96 = scmp.eq.s32.totalorder %s9, 0
      %p97 = por %p95, %p96
      %p98 = scmp.ne.s32.totalorder %s87, %s90
      %p99 = scmp.eq.s32.totalorder %s14, 1
      %p100 = por %p98, %p99
      %p101 = scmp.ne.s32.totalorder %s90, %s91
      %p102 = scmp.eq.s32.totalorder %s14, 0
      %p103 = por %p101, %p102
      %p104 = scmp.ne.s32.totalorder %s90, %s91
      %p105 = scmp.eq.s32.totalorder %s15, 1
      %p106 = por %p104, %p105
      %p108 = scmp.ne.s32.totalorder %s91, %s107
      %p109 = scmp.eq.s32.totalorder %s15, 0
      %p110 = por %p108, %p109
      %p111 = scmp.le.s32.totalorder 1, %s9
      %p112 = scmp.lt.s32.totalorder %s9, 3
      %p113 = pnand %p111, %p112
      %p114 = pneg %p113
      // Predicated region
      $region9: #{simple_model_forward.2} parent=5 // pred_check
        _
      $region10: #{simple_model_forward.2} parent=5 // pred_check_branch
        %116 = sbr.rel (%p113) target = $region12
      $region11: #{simple_model_forward.2} parent=5 // pred_region
        %s117 = ssub.s32 %s9, 1
        // Predicated region
        $region13: #{simple_model_forward.2} parent=11 // pred_check
          %p118 = pneg %p56
        $region14: #{simple_model_forward.2} parent=11 // pred_check_branch
          %120 = sbr.rel (%p118) target = $region16
        $region15: #{simple_model_forward.2} parent=11 // pred_region
          _
        $region16: #{simple_model_forward.2} parent=11 // pred_fallthru
          _
        // Predicated region
        $region17: #{simple_model_forward.2} parent=11 // pred_check
          %p121 = pneg %p77
        $region18: #{simple_model_forward.2} parent=11 // pred_check_branch
          %123 = sbr.rel (%p121) target = $region20
        $region19: #{simple_model_forward.2} parent=11 // pred_region
          _
        $region20: #{simple_model_forward.2} parent=11 // pred_fallthru
          _
      $region12: #{simple_model_forward.2} parent=5 // pred_fallthru
        _
      %p124 = scmp.lt.s32.totalorder %s9, 2
      // Predicated region
      $region21: #{simple_model_forward.2} parent=5 // pred_check
        %p125 = pneg %p124
      $region22: #{simple_model_forward.2} parent=5 // pred_check_branch
        %127 = sbr.rel (%p125) target = $region24
      $region23: #{simple_model_forward.2} parent=5 // pred_region
        // Predicated region
        $region25: #{simple_model_forward.2} parent=23 // pred_check
          %p128 = pneg %p29
        $region26: #{simple_model_forward.2} parent=23 // pred_check_branch
          %130 = sbr.rel (%p128) target = $region28
        $region27: #{simple_model_forward.2} parent=23 // pred_region
          %s131 = sand.u32 %s19, 1
          %s132 = sand.u32 %s19, 1
          %s133 = smul.addr %s132, 800
          %s134 = scalar_lea.vmem [#allocation2], %s133
          %s135 = smul.addr %s9, 25
          %s136 = smul.addr %s135, 8
          %s137 = scalar_lea.vmem %s0, %s136
          // Predicated region
          $region29: #{simple_model_forward.2} parent=27 // pred_check
            _
          $region30: #{simple_model_forward.2} parent=27 // pred_check_branch
            %139 = sbr.rel (0) target = $region32
          $region31: #{simple_model_forward.2} parent=27 // pred_region
            // Predicated region
            $region33: #{simple_model_forward.2} parent=31 // pred_check
              _
            $region34: #{simple_model_forward.2} parent=31 // pred_check_branch
              %141 = sbr.rel (0) target = $region36
            $region35: #{simple_model_forward.2} parent=31 // pred_region
              // Predicated region
              $region48: #{simple_model_forward.2} parent=35 // pred_check
                _
              $region49: #{simple_model_forward.2} parent=35 // pred_check_branch
                %355 = sbr.rel (0) target = $region51
              $region50: #{simple_model_forward.2} parent=35 // pred_region
                loop: start=0, step=1, limit=1
                $region52: #{simple_model_forward.2} parent=50 // loop_pre_header
                  _
                $region53: #{simple_model_forward.2} parent=50 // loop_header
                  %s357 = sphi 0, %s361
                  %p358 = scmp.ge.s32.totalorder %s357, 1
                  %s362 = sphi %s137, %s137
                  %s363 = sphi %s134, %s134
                $region54: #{simple_model_forward.2} parent=50 // loop_header_branch
                  %360 = sbr.rel (%p358) target = $region58
                $region55: #{simple_model_forward.2} parent=50 // loop_body
                  %v364 = vld [vmem:[%s362] sm:$0xff]
                  %365 = vst [vmem:[%s363] sm:$0xff] %v364
                  %v366 = vld [vmem:[%s362 + $0x8] sm:$0xff]
                  %367 = vst [vmem:[%s363 + $0x8] sm:$0xff] %v366
                  %v368 = vld [vmem:[%s362 + $0x10] sm:$0xff]
                  %369 = vst [vmem:[%s363 + $0x10] sm:$0xff] %v368
                  %v370 = vld [vmem:[%s362 + $0x18] sm:$0xff]
                  %371 = vst [vmem:[%s363 + $0x18] sm:$0xff] %v370
                  %v372 = vld [vmem:[%s362 + $0x20] sm:$0xff]
                  %373 = vst [vmem:[%s363 + $0x20] sm:$0xff] %v372
                  %v374 = vld [vmem:[%s362 + $0x28] sm:$0xff]
                  %375 = vst [vmem:[%s363 + $0x28] sm:$0xff] %v374
                  %v376 = vld [vmem:[%s362 + $0x30] sm:$0xff]
                  %377 = vst [vmem:[%s363 + $0x30] sm:$0xff] %v376
                  %v378 = vld [vmem:[%s362 + $0x38] sm:$0xff]
                  %379 = vst [vmem:[%s363 + $0x38] sm:$0xff] %v378
                  %v380 = vld [vmem:[%s362 + $0x40] sm:$0xff]
                  %381 = vst [vmem:[%s363 + $0x40] sm:$0xff] %v380
                  %v382 = vld [vmem:[%s362 + $0x48] sm:$0xff]
                  %383 = vst [vmem:[%s363 + $0x48] sm:$0xff] %v382
                  %v384 = vld [vmem:[%s362 + $0x50] sm:$0xff]
                  %385 = vst [vmem:[%s363 + $0x50] sm:$0xff] %v384
                  %v386 = vld [vmem:[%s362 + $0x58] sm:$0xff]
                  %387 = vst [vmem:[%s363 + $0x58] sm:$0xff] %v386
                  %v388 = vld [vmem:[%s362 + $0x60] sm:$0xff]
                  %389 = vst [vmem:[%s363 + $0x60] sm:$0xff] %v388
                  %v390 = vld [vmem:[%s362 + $0x68] sm:$0xff]
                  %391 = vst [vmem:[%s363 + $0x68] sm:$0xff] %v390
                  %v392 = vld [vmem:[%s362 + $0x70] sm:$0xff]
                  %393 = vst [vmem:[%s363 + $0x70] sm:$0xff] %v392
                  %v394 = vld [vmem:[%s362 + $0x78] sm:$0xff]
                  %395 = vst [vmem:[%s363 + $0x78] sm:$0xff] %v394
                  %v396 = vld [vmem:[%s362 + $0x80] sm:$0xff]
                  %397 = vst [vmem:[%s363 + $0x80] sm:$0xff] %v396
                  %v398 = vld [vmem:[%s362 + $0x88] sm:$0xff]
                  %399 = vst [vmem:[%s363 + $0x88] sm:$0xff] %v398
                  %v400 = vld [vmem:[%s362 + $0x90] sm:$0xff]
                  %401 = vst [vmem:[%s363 + $0x90] sm:$0xff] %v400
                  %v402 = vld [vmem:[%s362 + $0x98] sm:$0xff]
                  %403 = vst [vmem:[%s363 + $0x98] sm:$0xff] %v402
                  %v404 = vld [vmem:[%s362 + $0xa0] sm:$0xff]
                  %405 = vst [vmem:[%s363 + $0xa0] sm:$0xff] %v404
                  %v406 = vld [vmem:[%s362 + $0xa8] sm:$0xff]
                  %407 = vst [vmem:[%s363 + $0xa8] sm:$0xff] %v406
                  %v408 = vld [vmem:[%s362 + $0xb0] sm:$0xff]
                  %409 = vst [vmem:[%s363 + $0xb0] sm:$0xff] %v408
                  %v410 = vld [vmem:[%s362 + $0xb8] sm:$0xff]
                  %411 = vst [vmem:[%s363 + $0xb8] sm:$0xff] %v410
                  %v412 = vld [vmem:[%s362 + $0xc0] sm:$0xff]
                  %413 = vst [vmem:[%s363 + $0xc0] sm:$0xff] %v412
                  %v414 = vld [vmem:[%s362 + $0x190] sm:$0xff]
                  %415 = vst [vmem:[%s363 + $0xc8] sm:$0xff] %v414
                  %v416 = vld [vmem:[%s362 + $0x198] sm:$0xff]
                  %417 = vst [vmem:[%s363 + $0xd0] sm:$0xff] %v416
                  %v418 = vld [vmem:[%s362 + $0x1a0] sm:$0xff]
                  %419 = vst [vmem:[%s363 + $0xd8] sm:$0xff] %v418
                  %v420 = vld [vmem:[%s362 + $0x1a8] sm:$0xff]
                  %421 = vst [vmem:[%s363 + $0xe0] sm:$0xff] %v420
                  %v422 = vld [vmem:[%s362 + $0x1b0] sm:$0xff]
                  %423 = vst [vmem:[%s363 + $0xe8] sm:$0xff] %v422
                  %v424 = vld [vmem:[%s362 + $0x1b8] sm:$0xff]
                  %425 = vst [vmem:[%s363 + $0xf0] sm:$0xff] %v424
                  %v426 = vld [vmem:[%s362 + $0x1c0] sm:$0xff]
                  %427 = vst [vmem:[%s363 + $0xf8] sm:$0xff] %v426
                  %v428 = vld [vmem:[%s362 + $0x1c8] sm:$0xff]
                  %429 = vst [vmem:[%s363 + $0x100] sm:$0xff] %v428
                  %v430 = vld [vmem:[%s362 + $0x1d0] sm:$0xff]
                  %431 = vst [vmem:[%s363 + $0x108] sm:$0xff] %v430
                  %v432 = vld [vmem:[%s362 + $0x1d8] sm:$0xff]
                  %433 = vst [vmem:[%s363 + $0x110] sm:$0xff] %v432
                  %v434 = vld [vmem:[%s362 + $0x1e0] sm:$0xff]
                  %435 = vst [vmem:[%s363 + $0x118] sm:$0xff] %v434
                  %v436 = vld [vmem:[%s362 + $0x1e8] sm:$0xff]
                  %437 = vst [vmem:[%s363 + $0x120] sm:$0xff] %v436
                  %v438 = vld [vmem:[%s362 + $0x1f0] sm:$0xff]
                  %439 = vst [vmem:[%s363 + $0x128] sm:$0xff] %v438
                  %v440 = vld [vmem:[%s362 + $0x1f8] sm:$0xff]
                  %441 = vst [vmem:[%s363 + $0x130] sm:$0xff] %v440
                  %v442 = vld [vmem:[%s362 + $0x200] sm:$0xff]
                  %443 = vst [vmem:[%s363 + $0x138] sm:$0xff] %v442
                  %v444 = vld [vmem:[%s362 + $0x208] sm:$0xff]
                  %445 = vst [vmem:[%s363 + $0x140] sm:$0xff] %v444
                  %v446 = vld [vmem:[%s362 + $0x210] sm:$0xff]
                  %447 = vst [vmem:[%s363 + $0x148] sm:$0xff] %v446
                  %v448 = vld [vmem:[%s362 + $0x218] sm:$0xff]
                  %449 = vst [vmem:[%s363 + $0x150] sm:$0xff] %v448
                  %v450 = vld [vmem:[%s362 + $0x220] sm:$0xff]
                  %451 = vst [vmem:[%s363 + $0x158] sm:$0xff] %v450
                  %v452 = vld [vmem:[%s362 + $0x228] sm:$0xff]
                  %453 = vst [vmem:[%s363 + $0x160] sm:$0xff] %v452
                  %v454 = vld [vmem:[%s362 + $0x230] sm:$0xff]
                  %455 = vst [vmem:[%s363 + $0x168] sm:$0xff] %v454
                  %v456 = vld [vmem:[%s362 + $0x238] sm:$0xff]
                  %457 = vst [vmem:[%s363 + $0x170] sm:$0xff] %v456
                  %v458 = vld [vmem:[%s362 + $0x240] sm:$0xff]
                  %459 = vst [vmem:[%s363 + $0x178] sm:$0xff] %v458
                  %v460 = vld [vmem:[%s362 + $0x248] sm:$0xff]
                  %461 = vst [vmem:[%s363 + $0x180] sm:$0xff] %v460
                  %v462 = vld [vmem:[%s362 + $0x250] sm:$0xff]
                  %463 = vst [vmem:[%s363 + $0x188] sm:$0xff] %v462
                  %v464 = vld [vmem:[%s362 + $0x320] sm:$0xff]
                  %465 = vst [vmem:[%s363 + $0x190] sm:$0xff] %v464
                  %v466 = vld [vmem:[%s362 + $0x328] sm:$0xff]
                  %467 = vst [vmem:[%s363 + $0x198] sm:$0xff] %v466
                  %v468 = vld [vmem:[%s362 + $0x330] sm:$0xff]
                  %469 = vst [vmem:[%s363 + $0x1a0] sm:$0xff] %v468
                  %v470 = vld [vmem:[%s362 + $0x338] sm:$0xff]
                  %471 = vst [vmem:[%s363 + $0x1a8] sm:$0xff] %v470
                  %v472 = vld [vmem:[%s362 + $0x340] sm:$0xff]
                  %473 = vst [vmem:[%s363 + $0x1b0] sm:$0xff] %v472
                  %v474 = vld [vmem:[%s362 + $0x348] sm:$0xff]
                  %475 = vst [vmem:[%s363 + $0x1b8] sm:$0xff] %v474
                  %v476 = vld [vmem:[%s362 + $0x350] sm:$0xff]
                  %477 = vst [vmem:[%s363 + $0x1c0] sm:$0xff] %v476
                  %v478 = vld [vmem:[%s362 + $0x358] sm:$0xff]
                  %479 = vst [vmem:[%s363 + $0x1c8] sm:$0xff] %v478
                  %v480 = vld [vmem:[%s362 + $0x360] sm:$0xff]
                  %481 = vst [vmem:[%s363 + $0x1d0] sm:$0xff] %v480
                  %v482 = vld [vmem:[%s362 + $0x368] sm:$0xff]
                  %483 = vst [vmem:[%s363 + $0x1d8] sm:$0xff] %v482
                  %v484 = vld [vmem:[%s362 + $0x370] sm:$0xff]
                  %485 = vst [vmem:[%s363 + $0x1e0] sm:$0xff] %v484
                  %v486 = vld [vmem:[%s362 + $0x378] sm:$0xff]
                  %487 = vst [vmem:[%s363 + $0x1e8] sm:$0xff] %v486
                  %v488 = vld [vmem:[%s362 + $0x380] sm:$0xff]
                  %489 = vst [vmem:[%s363 + $0x1f0] sm:$0xff] %v488
                  %v490 = vld [vmem:[%s362 + $0x388] sm:$0xff]
                  %491 = vst [vmem:[%s363 + $0x1f8] sm:$0xff] %v490
                  %v492 = vld [vmem:[%s362 + $0x390] sm:$0xff]
                  %493 = vst [vmem:[%s363 + $0x200] sm:$0xff] %v492
                  %v494 = vld [vmem:[%s362 + $0x398] sm:$0xff]
                  %495 = vst [vmem:[%s363 + $0x208] sm:$0xff] %v494
                  %v496 = vld [vmem:[%s362 + $0x3a0] sm:$0xff]
                  %497 = vst [vmem:[%s363 + $0x210] sm:$0xff] %v496
                  %v498 = vld [vmem:[%s362 + $0x3a8] sm:$0xff]
                  %499 = vst [vmem:[%s363 + $0x218] sm:$0xff] %v498
                  %v500 = vld [vmem:[%s362 + $0x3b0] sm:$0xff]
                  %501 = vst [vmem:[%s363 + $0x220] sm:$0xff] %v500
                  %v502 = vld [vmem:[%s362 + $0x3b8] sm:$0xff]
                  %503 = vst [vmem:[%s363 + $0x228] sm:$0xff] %v502
                  %v504 = vld [vmem:[%s362 + $0x3c0] sm:$0xff]
                  %505 = vst [vmem:[%s363 + $0x230] sm:$0xff] %v504
                  %v506 = vld [vmem:[%s362 + $0x3c8] sm:$0xff]
                  %507 = vst [vmem:[%s363 + $0x238] sm:$0xff] %v506
                  %v508 = vld [vmem:[%s362 + $0x3d0] sm:$0xff]
                  %509 = vst [vmem:[%s363 + $0x240] sm:$0xff] %v508
                  %v510 = vld [vmem:[%s362 + $0x3d8] sm:$0xff]
                  %511 = vst [vmem:[%s363 + $0x248] sm:$0xff] %v510
                  %v512 = vld [vmem:[%s362 + $0x3e0] sm:$0xff]
                  %513 = vst [vmem:[%s363 + $0x250] sm:$0xff] %v512
                  %v514 = vld [vmem:[%s362 + $0x4b0] sm:$0xff]
                  %515 = vst [vmem:[%s363 + $0x258] sm:$0xff] %v514
                  %v516 = vld [vmem:[%s362 + $0x4b8] sm:$0xff]
                  %517 = vst [vmem:[%s363 + $0x260] sm:$0xff] %v516
                  %v518 = vld [vmem:[%s362 + $0x4c0] sm:$0xff]
                  %519 = vst [vmem:[%s363 + $0x268] sm:$0xff] %v518
                  %v520 = vld [vmem:[%s362 + $0x4c8] sm:$0xff]
                  %521 = vst [vmem:[%s363 + $0x270] sm:$0xff] %v520
                  %v522 = vld [vmem:[%s362 + $0x4d0] sm:$0xff]
                  %523 = vst [vmem:[%s363 + $0x278] sm:$0xff] %v522
                  %v524 = vld [vmem:[%s362 + $0x4d8] sm:$0xff]
                  %525 = vst [vmem:[%s363 + $0x280] sm:$0xff] %v524
                  %v526 = vld [vmem:[%s362 + $0x4e0] sm:$0xff]
                  %527 = vst [vmem:[%s363 + $0x288] sm:$0xff] %v526
                  %v528 = vld [vmem:[%s362 + $0x4e8] sm:$0xff]
                  %529 = vst [vmem:[%s363 + $0x290] sm:$0xff] %v528
                  %v530 = vld [vmem:[%s362 + $0x4f0] sm:$0xff]
                  %531 = vst [vmem:[%s363 + $0x298] sm:$0xff] %v530
                  %v532 = vld [vmem:[%s362 + $0x4f8] sm:$0xff]
                  %533 = vst [vmem:[%s363 + $0x2a0] sm:$0xff] %v532
                  %v534 = vld [vmem:[%s362 + $0x500] sm:$0xff]
                  %535 = vst [vmem:[%s363 + $0x2a8] sm:$0xff] %v534
                  %v536 = vld [vmem:[%s362 + $0x508] sm:$0xff]
                  %537 = vst [vmem:[%s363 + $0x2b0] sm:$0xff] %v536
                  %v538 = vld [vmem:[%s362 + $0x510] sm:$0xff]
                  %539 = vst [vmem:[%s363 + $0x2b8] sm:$0xff] %v538
                  %v540 = vld [vmem:[%s362 + $0x518] sm:$0xff]
                  %541 = vst [vmem:[%s363 + $0x2c0] sm:$0xff] %v540
                  %v542 = vld [vmem:[%s362 + $0x520] sm:$0xff]
                  %543 = vst [vmem:[%s363 + $0x2c8] sm:$0xff] %v542
                  %v544 = vld [vmem:[%s362 + $0x528] sm:$0xff]
                  %545 = vst [vmem:[%s363 + $0x2d0] sm:$0xff] %v544
                  %v546 = vld [vmem:[%s362 + $0x530] sm:$0xff]
                  %547 = vst [vmem:[%s363 + $0x2d8] sm:$0xff] %v546
                  %v548 = vld [vmem:[%s362 + $0x538] sm:$0xff]
                  %549 = vst [vmem:[%s363 + $0x2e0] sm:$0xff] %v548
                  %v550 = vld [vmem:[%s362 + $0x540] sm:$0xff]
                  %551 = vst [vmem:[%s363 + $0x2e8] sm:$0xff] %v550
                  %v552 = vld [vmem:[%s362 + $0x548] sm:$0xff]
                  %553 = vst [vmem:[%s363 + $0x2f0] sm:$0xff] %v552
                  %v554 = vld [vmem:[%s362 + $0x550] sm:$0xff]
                  %555 = vst [vmem:[%s363 + $0x2f8] sm:$0xff] %v554
                  %v556 = vld [vmem:[%s362 + $0x558] sm:$0xff]
                  %557 = vst [vmem:[%s363 + $0x300] sm:$0xff] %v556
                  %v558 = vld [vmem:[%s362 + $0x560] sm:$0xff]
                  %559 = vst [vmem:[%s363 + $0x308] sm:$0xff] %v558
                  %v560 = vld [vmem:[%s362 + $0x568] sm:$0xff]
                  %561 = vst [vmem:[%s363 + $0x310] sm:$0xff] %v560
                  %v562 = vld [vmem:[%s362 + $0x570] sm:$0xff]
                  %563 = vst [vmem:[%s363 + $0x318] sm:$0xff] %v562
                $region56: #{simple_model_forward.2} parent=50 // loop_footer
                  %s361 = sadd.s32 1, %s357
                $region57: #{simple_model_forward.2} parent=50 // loop_footer_branch
                  %356 = sbr.rel target = $region53
                $region58: #{simple_model_forward.2} parent=50 // loop_exit
                  _
              $region51: #{simple_model_forward.2} parent=35 // pred_fallthru
                _
              // Predicated region
              $region59: #{simple_model_forward.2} parent=35 // pred_check
                _
              $region60: #{simple_model_forward.2} parent=35 // pred_check_branch
                %565 = sbr.rel target = $region62
              $region61: #{simple_model_forward.2} parent=35 // pred_region
                _
              $region62: #{simple_model_forward.2} parent=35 // pred_fallthru
                _
            $region36: #{simple_model_forward.2} parent=31 // pred_fallthru
              _
            // Predicated region
            $region37: #{simple_model_forward.2} parent=31 // pred_check
              _
            $region38: #{simple_model_forward.2} parent=31 // pred_check_branch
              %143 = sbr.rel target = $region40
            $region39: #{simple_model_forward.2} parent=31 // pred_region
              %s145 = ssub.s32 256, 1
              loop: start=0, step=1, limit=1
              $region41: #{simple_model_forward.2} parent=39 // loop_pre_header
                _
              $region42: #{simple_model_forward.2} parent=39 // loop_header
                %s147 = sphi 0, %s151
                %p148 = scmp.ge.s32.totalorder %s147, 1
                %s152 = sphi %s137, %s137
                %s153 = sphi %s134, %s134
              $region43: #{simple_model_forward.2} parent=39 // loop_header_branch
                %150 = sbr.rel (%p148) target = $region47
              $region44: #{simple_model_forward.2} parent=39 // loop_body
                %v154 = vld [vmem:[%s152] sm:%s145]
                %155 = vst [vmem:[%s153] sm:%s145] %v154
                %v156 = vld [vmem:[%s152 + $0x8] sm:%s145]
                %157 = vst [vmem:[%s153 + $0x8] sm:%s145] %v156
                %v158 = vld [vmem:[%s152 + $0x10] sm:%s145]
                %159 = vst [vmem:[%s153 + $0x10] sm:%s145] %v158
                %v160 = vld [vmem:[%s152 + $0x18] sm:%s145]
                %161 = vst [vmem:[%s153 + $0x18] sm:%s145] %v160
                %v162 = vld [vmem:[%s152 + $0x20] sm:%s145]
                %163 = vst [vmem:[%s153 + $0x20] sm:%s145] %v162
                %v164 = vld [vmem:[%s152 + $0x28] sm:%s145]
                %165 = vst [vmem:[%s153 + $0x28] sm:%s145] %v164
                %v166 = vld [vmem:[%s152 + $0x30] sm:%s145]
                %167 = vst [vmem:[%s153 + $0x30] sm:%s145] %v166
                %v168 = vld [vmem:[%s152 + $0x38] sm:%s145]
                %169 = vst [vmem:[%s153 + $0x38] sm:%s145] %v168
                %v170 = vld [vmem:[%s152 + $0x40] sm:%s145]
                %171 = vst [vmem:[%s153 + $0x40] sm:%s145] %v170
                %v172 = vld [vmem:[%s152 + $0x48] sm:%s145]
                %173 = vst [vmem:[%s153 + $0x48] sm:%s145] %v172
                %v174 = vld [vmem:[%s152 + $0x50] sm:%s145]
                %175 = vst [vmem:[%s153 + $0x50] sm:%s145] %v174
                %v176 = vld [vmem:[%s152 + $0x58] sm:%s145]
                %177 = vst [vmem:[%s153 + $0x58] sm:%s145] %v176
                %v178 = vld [vmem:[%s152 + $0x60] sm:%s145]
                %179 = vst [vmem:[%s153 + $0x60] sm:%s145] %v178
                %v180 = vld [vmem:[%s152 + $0x68] sm:%s145]
                %181 = vst [vmem:[%s153 + $0x68] sm:%s145] %v180
                %v182 = vld [vmem:[%s152 + $0x70] sm:%s145]
                %183 = vst [vmem:[%s153 + $0x70] sm:%s145] %v182
                %v184 = vld [vmem:[%s152 + $0x78] sm:%s145]
                %185 = vst [vmem:[%s153 + $0x78] sm:%s145] %v184
                %v186 = vld [vmem:[%s152 + $0x80] sm:%s145]
                %187 = vst [vmem:[%s153 + $0x80] sm:%s145] %v186
                %v188 = vld [vmem:[%s152 + $0x88] sm:%s145]
                %189 = vst [vmem:[%s153 + $0x88] sm:%s145] %v188
                %v190 = vld [vmem:[%s152 + $0x90] sm:%s145]
                %191 = vst [vmem:[%s153 + $0x90] sm:%s145] %v190
                %v192 = vld [vmem:[%s152 + $0x98] sm:%s145]
                %193 = vst [vmem:[%s153 + $0x98] sm:%s145] %v192
                %v194 = vld [vmem:[%s152 + $0xa0] sm:%s145]
                %195 = vst [vmem:[%s153 + $0xa0] sm:%s145] %v194
                %v196 = vld [vmem:[%s152 + $0xa8] sm:%s145]
                %197 = vst [vmem:[%s153 + $0xa8] sm:%s145] %v196
                %v198 = vld [vmem:[%s152 + $0xb0] sm:%s145]
                %199 = vst [vmem:[%s153 + $0xb0] sm:%s145] %v198
                %v200 = vld [vmem:[%s152 + $0xb8] sm:%s145]
                %201 = vst [vmem:[%s153 + $0xb8] sm:%s145] %v200
                %v202 = vld [vmem:[%s152 + $0xc0] sm:%s145]
                %203 = vst [vmem:[%s153 + $0xc0] sm:%s145] %v202
                %v204 = vld [vmem:[%s152 + $0x190] sm:%s145]
                %205 = vst [vmem:[%s153 + $0xc8] sm:%s145] %v204
                %v206 = vld [vmem:[%s152 + $0x198] sm:%s145]
                %207 = vst [vmem:[%s153 + $0xd0] sm:%s145] %v206
                %v208 = vld [vmem:[%s152 + $0x1a0] sm:%s145]
                %209 = vst [vmem:[%s153 + $0xd8] sm:%s145] %v208
                %v210 = vld [vmem:[%s152 + $0x1a8] sm:%s145]
                %211 = vst [vmem:[%s153 + $0xe0] sm:%s145] %v210
                %v212 = vld [vmem:[%s152 + $0x1b0] sm:%s145]
                %213 = vst [vmem:[%s153 + $0xe8] sm:%s145] %v212
                %v214 = vld [vmem:[%s152 + $0x1b8] sm:%s145]
                %215 = vst [vmem:[%s153 + $0xf0] sm:%s145] %v214
                %v216 = vld [vmem:[%s152 + $0x1c0] sm:%s145]
                %217 = vst [vmem:[%s153 + $0xf8] sm:%s145] %v216
                %v218 = vld [vmem:[%s152 + $0x1c8] sm:%s145]
                %219 = vst [vmem:[%s153 + $0x100] sm:%s145] %v218
                %v220 = vld [vmem:[%s152 + $0x1d0] sm:%s145]
                %221 = vst [vmem:[%s153 + $0x108] sm:%s145] %v220
                %v222 = vld [vmem:[%s152 + $0x1d8] sm:%s145]
                %223 = vst [vmem:[%s153 + $0x110] sm:%s145] %v222
                %v224 = vld [vmem:[%s152 + $0x1e0] sm:%s145]
                %225 = vst [vmem:[%s153 + $0x118] sm:%s145] %v224
                %v226 = vld [vmem:[%s152 + $0x1e8] sm:%s145]
                %227 = vst [vmem:[%s153 + $0x120] sm:%s145] %v226
                %v228 = vld [vmem:[%s152 + $0x1f0] sm:%s145]
                %229 = vst [vmem:[%s153 + $0x128] sm:%s145] %v228
                %v230 = vld [vmem:[%s152 + $0x1f8] sm:%s145]
                %231 = vst [vmem:[%s153 + $0x130] sm:%s145] %v230
                %v232 = vld [vmem:[%s152 + $0x200] sm:%s145]
                %233 = vst [vmem:[%s153 + $0x138] sm:%s145] %v232
                %v234 = vld [vmem:[%s152 + $0x208] sm:%s145]
                %235 = vst [vmem:[%s153 + $0x140] sm:%s145] %v234
                %v236 = vld [vmem:[%s152 + $0x210] sm:%s145]
                %237 = vst [vmem:[%s153 + $0x148] sm:%s145] %v236
                %v238 = vld [vmem:[%s152 + $0x218] sm:%s145]
                %239 = vst [vmem:[%s153 + $0x150] sm:%s145] %v238
                %v240 = vld [vmem:[%s152 + $0x220] sm:%s145]
                %241 = vst [vmem:[%s153 + $0x158] sm:%s145] %v240
                %v242 = vld [vmem:[%s152 + $0x228] sm:%s145]
                %243 = vst [vmem:[%s153 + $0x160] sm:%s145] %v242
                %v244 = vld [vmem:[%s152 + $0x230] sm:%s145]
                %245 = vst [vmem:[%s153 + $0x168] sm:%s145] %v244
                %v246 = vld [vmem:[%s152 + $0x238] sm:%s145]
                %247 = vst [vmem:[%s153 + $0x170] sm:%s145] %v246
                %v248 = vld [vmem:[%s152 + $0x240] sm:%s145]
                %249 = vst [vmem:[%s153 + $0x178] sm:%s145] %v248
                %v250 = vld [vmem:[%s152 + $0x248] sm:%s145]
                %251 = vst [vmem:[%s153 + $0x180] sm:%s145] %v250
                %v252 = vld [vmem:[%s152 + $0x250] sm:%s145]
                %253 = vst [vmem:[%s153 + $0x188] sm:%s145] %v252
                %v254 = vld [vmem:[%s152 + $0x320] sm:%s145]
                %255 = vst [vmem:[%s153 + $0x190] sm:%s145] %v254
                %v256 = vld [vmem:[%s152 + $0x328] sm:%s145]
                %257 = vst [vmem:[%s153 + $0x198] sm:%s145] %v256
                %v258 = vld [vmem:[%s152 + $0x330] sm:%s145]
                %259 = vst [vmem:[%s153 + $0x1a0] sm:%s145] %v258
                %v260 = vld [vmem:[%s152 + $0x338] sm:%s145]
                %261 = vst [vmem:[%s153 + $0x1a8] sm:%s145] %v260
                %v262 = vld [vmem:[%s152 + $0x340] sm:%s145]
                %263 = vst [vmem:[%s153 + $0x1b0] sm:%s145] %v262
                %v264 = vld [vmem:[%s152 + $0x348] sm:%s145]
                %265 = vst [vmem:[%s153 + $0x1b8] sm:%s145] %v264
                %v266 = vld [vmem:[%s152 + $0x350] sm:%s145]
                %267 = vst [vmem:[%s153 + $0x1c0] sm:%s145] %v266
                %v268 = vld [vmem:[%s152 + $0x358] sm:%s145]
                %269 = vst [vmem:[%s153 + $0x1c8] sm:%s145] %v268
                %v270 = vld [vmem:[%s152 + $0x360] sm:%s145]
                %271 = vst [vmem:[%s153 + $0x1d0] sm:%s145] %v270
                %v272 = vld [vmem:[%s152 + $0x368] sm:%s145]
                %273 = vst [vmem:[%s153 + $0x1d8] sm:%s145] %v272
                %v274 = vld [vmem:[%s152 + $0x370] sm:%s145]
                %275 = vst [vmem:[%s153 + $0x1e0] sm:%s145] %v274
                %v276 = vld [vmem:[%s152 + $0x378] sm:%s145]
                %277 = vst [vmem:[%s153 + $0x1e8] sm:%s145] %v276
                %v278 = vld [vmem:[%s152 + $0x380] sm:%s145]
                %279 = vst [vmem:[%s153 + $0x1f0] sm:%s145] %v278
                %v280 = vld [vmem:[%s152 + $0x388] sm:%s145]
                %281 = vst [vmem:[%s153 + $0x1f8] sm:%s145] %v280
                %v282 = vld [vmem:[%s152 + $0x390] sm:%s145]
                %283 = vst [vmem:[%s153 + $0x200] sm:%s145] %v282
                %v284 = vld [vmem:[%s152 + $0x398] sm:%s145]
                %285 = vst [vmem:[%s153 + $0x208] sm:%s145] %v284
                %v286 = vld [vmem:[%s152 + $0x3a0] sm:%s145]
                %287 = vst [vmem:[%s153 + $0x210] sm:%s145] %v286
                %v288 = vld [vmem:[%s152 + $0x3a8] sm:%s145]
                %289 = vst [vmem:[%s153 + $0x218] sm:%s145] %v288
                %v290 = vld [vmem:[%s152 + $0x3b0] sm:%s145]
                %291 = vst [vmem:[%s153 + $0x220] sm:%s145] %v290
                %v292 = vld [vmem:[%s152 + $0x3b8] sm:%s145]
                %293 = vst [vmem:[%s153 + $0x228] sm:%s145] %v292
                %v294 = vld [vmem:[%s152 + $0x3c0] sm:%s145]
                %295 = vst [vmem:[%s153 + $0x230] sm:%s145] %v294
                %v296 = vld [vmem:[%s152 + $0x3c8] sm:%s145]
                %297 = vst [vmem:[%s153 + $0x238] sm:%s145] %v296
                %v298 = vld [vmem:[%s152 + $0x3d0] sm:%s145]
                %299 = vst [vmem:[%s153 + $0x240] sm:%s145] %v298
                %v300 = vld [vmem:[%s152 + $0x3d8] sm:%s145]
                %301 = vst [vmem:[%s153 + $0x248] sm:%s145] %v300
                %v302 = vld [vmem:[%s152 + $0x3e0] sm:%s145]
                %303 = vst [vmem:[%s153 + $0x250] sm:%s145] %v302
                %v304 = vld [vmem:[%s152 + $0x4b0] sm:%s145]
                %305 = vst [vmem:[%s153 + $0x258] sm:%s145] %v304
                %v306 = vld [vmem:[%s152 + $0x4b8] sm:%s145]
                %307 = vst [vmem:[%s153 + $0x260] sm:%s145] %v306
                %v308 = vld [vmem:[%s152 + $0x4c0] sm:%s145]
                %309 = vst [vmem:[%s153 + $0x268] sm:%s145] %v308
                %v310 = vld [vmem:[%s152 + $0x4c8] sm:%s145]
                %311 = vst [vmem:[%s153 + $0x270] sm:%s145] %v310
                %v312 = vld [vmem:[%s152 + $0x4d0] sm:%s145]
                %313 = vst [vmem:[%s153 + $0x278] sm:%s145] %v312
                %v314 = vld [vmem:[%s152 + $0x4d8] sm:%s145]
                %315 = vst [vmem:[%s153 + $0x280] sm:%s145] %v314
                %v316 = vld [vmem:[%s152 + $0x4e0] sm:%s145]
                %317 = vst [vmem:[%s153 + $0x288] sm:%s145] %v316
                %v318 = vld [vmem:[%s152 + $0x4e8] sm:%s145]
                %319 = vst [vmem:[%s153 + $0x290] sm:%s145] %v318
                %v320 = vld [vmem:[%s152 + $0x4f0] sm:%s145]
                %321 = vst [vmem:[%s153 + $0x298] sm:%s145] %v320
                %v322 = vld [vmem:[%s152 + $0x4f8] sm:%s145]
                %323 = vst [vmem:[%s153 + $0x2a0] sm:%s145] %v322
                %v324 = vld [vmem:[%s152 + $0x500] sm:%s145]
                %325 = vst [vmem:[%s153 + $0x2a8] sm:%s145] %v324
                %v326 = vld [vmem:[%s152 + $0x508] sm:%s145]
                %327 = vst [vmem:[%s153 + $0x2b0] sm:%s145] %v326
                %v328 = vld [vmem:[%s152 + $0x510] sm:%s145]
                %329 = vst [vmem:[%s153 + $0x2b8] sm:%s145] %v328
                %v330 = vld [vmem:[%s152 + $0x518] sm:%s145]
                %331 = vst [vmem:[%s153 + $0x2c0] sm:%s145] %v330
                %v332 = vld [vmem:[%s152 + $0x520] sm:%s145]
                %333 = vst [vmem:[%s153 + $0x2c8] sm:%s145] %v332
                %v334 = vld [vmem:[%s152 + $0x528] sm:%s145]
                %335 = vst [vmem:[%s153 + $0x2d0] sm:%s145] %v334
                %v336 = vld [vmem:[%s152 + $0x530] sm:%s145]
                %337 = vst [vmem:[%s153 + $0x2d8] sm:%s145] %v336
                %v338 = vld [vmem:[%s152 + $0x538] sm:%s145]
                %339 = vst [vmem:[%s153 + $0x2e0] sm:%s145] %v338
                %v340 = vld [vmem:[%s152 + $0x540] sm:%s145]
                %341 = vst [vmem:[%s153 + $0x2e8] sm:%s145] %v340
                %v342 = vld [vmem:[%s152 + $0x548] sm:%s145]
                %343 = vst [vmem:[%s153 + $0x2f0] sm:%s145] %v342
                %v344 = vld [vmem:[%s152 + $0x550] sm:%s145]
                %345 = vst [vmem:[%s153 + $0x2f8] sm:%s145] %v344
                %v346 = vld [vmem:[%s152 + $0x558] sm:%s145]
                %347 = vst [vmem:[%s153 + $0x300] sm:%s145] %v346
                %v348 = vld [vmem:[%s152 + $0x560] sm:%s145]
                %349 = vst [vmem:[%s153 + $0x308] sm:%s145] %v348
                %v350 = vld [vmem:[%s152 + $0x568] sm:%s145]
                %351 = vst [vmem:[%s153 + $0x310] sm:%s145] %v350
                %v352 = vld [vmem:[%s152 + $0x570] sm:%s145]
                %353 = vst [vmem:[%s153 + $0x318] sm:%s145] %v352
              $region45: #{simple_model_forward.2} parent=39 // loop_footer
                %s151 = sadd.s32 1, %s147
              $region46: #{simple_model_forward.2} parent=39 // loop_footer_branch
                %146 = sbr.rel target = $region42
              $region47: #{simple_model_forward.2} parent=39 // loop_exit
                _
            $region40: #{simple_model_forward.2} parent=31 // pred_fallthru
              _
          $region32: #{simple_model_forward.2} parent=27 // pred_fallthru
            _
          %566 = vnop
        $region28: #{simple_model_forward.2} parent=23 // pred_fallthru
          _
      $region24: #{simple_model_forward.2} parent=5 // pred_fallthru
        _
      %p567 = scmp.le.s32.totalorder 1, %s9
      %p568 = scmp.lt.s32.totalorder %s9, 3
      %p569 = pnand %p567, %p568
      %p570 = pneg %p569
      // Predicated region
      $region63: #{simple_model_forward.2} parent=5 // pred_check
        _
      $region64: #{simple_model_forward.2} parent=5 // pred_check_branch
        %572 = sbr.rel (%p569) target = $region66
      $region65: #{simple_model_forward.2} parent=5 // pred_region
        %s573 = ssub.s32 %s9, 1
        %s574 = sand.u32 %s22, 1
        %s575 = sand.u32 %s22, 1
        %s576 = smul.addr %s575, 800
        %s577 = scalar_lea.vmem [#allocation2], %s576
        // Predicated region
        $region67: #{simple_model_forward.2} parent=65 // pred_check
          %p578 = pneg %p35
        $region68: #{simple_model_forward.2} parent=65 // pred_check_branch
          %580 = sbr.rel (%p578) target = $region70
        $region69: #{simple_model_forward.2} parent=65 // pred_region
          _
        $region70: #{simple_model_forward.2} parent=65 // pred_fallthru
          _
        %s581 = sand.u32 %s22, 1
        %s582 = sand.u32 %s22, 1
        %s583 = smul.addr %s582, 800
        %s584 = scalar_lea.vmem [#allocation2], %s583
        %p585 = pneg %p35
        %p586 = pneg %p32
        %p587 = pneg %p56
        %p588 = pneg %p53
        %p589 = pneg %p77
        %p590 = pneg %p74
        %p591 = pneg %p103
        %p592 = pneg %p100
        %p593 = scmp.lt.s32.totalorder %s14, 1
        %s594 = scalar_select %p593, %s14, 1
        %s595 = smul.addr %s594, 25
        %s596 = smul.addr %s595, 8
        %s597 = scalar_lea.vmem %s3, %s596
        %p598 = scmp.lt.s32.totalorder %s14, 1
        %s599 = scalar_select %p598, %s14, 1
        %s600 = smul.addr %s599, 25
        %s601 = smul.addr %s600, 8
        %s602 = scalar_lea.vmem %s3, %s601
        %v603 = vld [vmem:[%s1] sm:$0xff]
        %v604 = vld [vmem:[%s1 + $0x8] sm:$0xff]
        %v605 = vld [vmem:[%s1 + $0x10] sm:$0xff]
        %v606 = vld [vmem:[%s1 + $0x18] sm:$0xff]
        %v607 = vld [vmem:[%s1 + $0x20] sm:$0xff]
        %v608 = vld [vmem:[%s1 + $0x28] sm:$0xff]
        %v609 = vld [vmem:[%s1 + $0x30] sm:$0xff]
        %v610 = vld [vmem:[%s1 + $0x38] sm:$0xff]
        %v611 = vld [vmem:[%s1 + $0x40] sm:$0xff]
        %v612 = vld [vmem:[%s1 + $0x48] sm:$0x7]
        %v613 = vld [vmem:[%s577] sm:$0xff]
        %v614 = vld [vmem:[%s577 + $0x8] sm:$0xff]
        %v615 = vld [vmem:[%s577 + $0x10] sm:$0xff]
        %v616 = vld [vmem:[%s577 + $0x18] sm:$0xff]
        %v617 = vld [vmem:[%s577 + $0x20] sm:$0xff]
        %v618 = vld [vmem:[%s577 + $0x28] sm:$0xff]
        %v619 = vld [vmem:[%s577 + $0x30] sm:$0xff]
        %v620 = vld [vmem:[%s577 + $0x38] sm:$0xff]
        %v621 = vld [vmem:[%s577 + $0x40] sm:$0xff]
        %v622 = vld [vmem:[%s577 + $0x48] sm:$0xff]
        %v623 = vld [vmem:[%s577 + $0x50] sm:$0xff]
        %v624 = vld [vmem:[%s577 + $0x58] sm:$0xff]
        %v625 = vld [vmem:[%s577 + $0x60] sm:$0xff]
        %v626 = vld [vmem:[%s577 + $0x68] sm:$0xff]
        %v627 = vld [vmem:[%s577 + $0x70] sm:$0xff]
        %v628 = vld [vmem:[%s577 + $0x78] sm:$0xff]
        %v629 = vld [vmem:[%s577 + $0x80] sm:$0xff]
        %v630 = vld [vmem:[%s577 + $0x88] sm:$0xff]
        %v631 = vld [vmem:[%s577 + $0x90] sm:$0xff]
        %v632 = vld [vmem:[%s577 + $0x98] sm:$0xff]
        %v633 = vld [vmem:[%s577 + $0xa0] sm:$0xff]
        %v634 = vld [vmem:[%s577 + $0xa8] sm:$0xff]
        %v635 = vld [vmem:[%s577 + $0xb0] sm:$0xff]
        %v636 = vld [vmem:[%s577 + $0xb8] sm:$0xff]
        %v637 = vld [vmem:[%s577 + $0xc0] sm:$0xff]
        %vm638 = vcmask 613376
        %v640 = vsel %vm638, %v613, 0
        %v643 = vsel %vm638, %v614, 0
        %v646 = vsel %vm638, %v615, 0
        %v649 = vsel %vm638, %v616, 0
        %v652 = vsel %vm638, %v617, 0
        %v655 = vsel %vm638, %v618, 0
        %v658 = vsel %vm638, %v619, 0
        %v661 = vsel %vm638, %v620, 0
        %v664 = vsel %vm638, %v621, 0
        %v667 = vsel %vm638, %v622, 0
        %v670 = vsel %vm638, %v623, 0
        %v673 = vsel %vm638, %v624, 0
        %v676 = vsel %vm638, %v625, 0
        %v679 = vsel %vm638, %v626, 0
        %v682 = vsel %vm638, %v627, 0
        %v685 = vsel %vm638, %v628, 0
        %v688 = vsel %vm638, %v629, 0
        %v691 = vsel %vm638, %v630, 0
        %v694 = vsel %vm638, %v631, 0
        %v697 = vsel %vm638, %v632, 0
        %v700 = vsel %vm638, %v633, 0
        %v703 = vsel %vm638, %v634, 0
        %v706 = vsel %vm638, %v635, 0
        %v709 = vsel %vm638, %v636, 0
        %v712 = vsel %vm638, %v637, 0
        %vm714 = vcmask 1042432
        %v716 = vsel %vm714, %v612, 0
        %718 = vmatpush.msra.mxu0 0.0
        %719 = vmatpush.msra.mxu0 0.0
        %720 = vmatpush.msra.mxu0 0.0
        %721 = vmatpush.msra.mxu0 0.0
        %722 = vmatpush.msra.mxu0 0.0
        %723 = vmatpush.msra.mxu0 0.0
        %724 = vmatpush.msra.mxu0 %v716
        %725 = vmatpush.msra.mxu0 %v611
        %726 = vmatpush.msra.mxu0 %v610
        %727 = vmatpush.msra.mxu0 %v609
        %728 = vmatpush.msra.mxu0 %v608
        %729 = vmatpush.msra.mxu0 %v607
        %730 = vmatpush.msra.mxu0 %v606
        %731 = vmatpush.msra.mxu0 %v605
        %732 = vmatpush.msra.mxu0 %v604
        %733 = vmatpush.msra.mxu0 %v603
        %734 = vmatmul.f32.gmra.mxu0 %v640
        %v735 = vpop.f32.mrf.mxu0
        %v736 = vadd.f32 0.0, %v735
        %737 = vmatmul.f32.gmra.mxu0 %v643
        %v738 = vpop.f32.mrf.mxu0
        %v739 = vadd.f32 0.0, %v738
        %740 = vmatmul.f32.gmra.mxu0 %v646
        %v741 = vpop.f32.mrf.mxu0
        %v742 = vadd.f32 0.0, %v741
        %743 = vmatmul.f32.gmra.mxu0 %v649
        %v744 = vpop.f32.mrf.mxu0
        %v745 = vadd.f32 0.0, %v744
        %746 = vmatmul.f32.gmra.mxu0 %v652
        %v747 = vpop.f32.mrf.mxu0
        %v748 = vadd.f32 0.0, %v747
        %749 = vmatmul.f32.gmra.mxu0 %v655
        %v750 = vpop.f32.mrf.mxu0
        %v751 = vadd.f32 0.0, %v750
        %752 = vmatmul.f32.gmra.mxu0 %v658
        %v753 = vpop.f32.mrf.mxu0
        %v754 = vadd.f32 0.0, %v753
        %755 = vmatmul.f32.gmra.mxu0 %v661
        %v756 = vpop.f32.mrf.mxu0
        %v757 = vadd.f32 0.0, %v756
        %758 = vmatmul.f32.gmra.mxu0 %v664
        %v759 = vpop.f32.mrf.mxu0
        %v760 = vadd.f32 0.0, %v759
        %761 = vmatmul.f32.gmra.mxu0 %v667
        %v762 = vpop.f32.mrf.mxu0
        %v763 = vadd.f32 0.0, %v762
        %764 = vmatmul.f32.gmra.mxu0 %v670
        %v765 = vpop.f32.mrf.mxu0
        %v766 = vadd.f32 0.0, %v765
        %767 = vmatmul.f32.gmra.mxu0 %v673
        %v768 = vpop.f32.mrf.mxu0
        %v769 = vadd.f32 0.0, %v768
        %770 = vmatmul.f32.gmra.mxu0 %v676
        %v771 = vpop.f32.mrf.mxu0
        %v772 = vadd.f32 0.0, %v771
        %773 = vmatmul.f32.gmra.mxu0 %v679
        %v774 = vpop.f32.mrf.mxu0
        %v775 = vadd.f32 0.0, %v774
        %776 = vmatmul.f32.gmra.mxu0 %v682
        %v777 = vpop.f32.mrf.mxu0
        %v778 = vadd.f32 0.0, %v777
        %779 = vmatmul.f32.gmra.mxu0 %v685
        %v780 = vpop.f32.mrf.mxu0
        %v781 = vadd.f32 0.0, %v780
        %782 = vmatmul.f32.gmra.mxu0 %v688
        %v783 = vpop.f32.mrf.mxu0
        %v784 = vadd.f32 0.0, %v783
        %785 = vmatmul.f32.gmra.mxu0 %v691
        %v786 = vpop.f32.mrf.mxu0
        %v787 = vadd.f32 0.0, %v786
        %788 = vmatmul.f32.gmra.mxu0 %v694
        %v789 = vpop.f32.mrf.mxu0
        %v790 = vadd.f32 0.0, %v789
        %791 = vmatmul.f32.gmra.mxu0 %v697
        %v792 = vpop.f32.mrf.mxu0
        %v793 = vadd.f32 0.0, %v792
        %794 = vmatmul.f32.gmra.mxu0 %v700
        %v795 = vpop.f32.mrf.mxu0
        %v796 = vadd.f32 0.0, %v795
        %797 = vmatmul.f32.gmra.mxu0 %v703
        %v798 = vpop.f32.mrf.mxu0
        %v799 = vadd.f32 0.0, %v798
        %800 = vmatmul.f32.gmra.mxu0 %v706
        %v801 = vpop.f32.mrf.mxu0
        %v802 = vadd.f32 0.0, %v801
        %803 = vmatmul.f32.gmra.mxu0 %v709
        %v804 = vpop.f32.mrf.mxu0
        %v805 = vadd.f32 0.0, %v804
        %806 = vmatmul.f32.gmra.mxu0 %v712
        %v807 = vpop.f32.mrf.mxu0
        %v808 = vadd.f32 0.0, %v807
        %809 = vdwg.mxu0
        %s810 = scalar_lea.vmem %s577, 200 [#allocation2]
        %v811 = vld [vmem:[%s810] sm:$0xff]
        %v812 = vld [vmem:[%s810 + $0x8] sm:$0xff]
        %v813 = vld [vmem:[%s810 + $0x10] sm:$0xff]
        %v814 = vld [vmem:[%s810 + $0x18] sm:$0xff]
        %v815 = vld [vmem:[%s810 + $0x20] sm:$0xff]
        %v816 = vld [vmem:[%s810 + $0x28] sm:$0xff]
        %v817 = vld [vmem:[%s810 + $0x30] sm:$0xff]
        %v818 = vld [vmem:[%s810 + $0x38] sm:$0xff]
        %v819 = vld [vmem:[%s810 + $0x40] sm:$0xff]
        %v820 = vld [vmem:[%s810 + $0x48] sm:$0xff]
        %v821 = vld [vmem:[%s810 + $0x50] sm:$0xff]
        %v822 = vld [vmem:[%s810 + $0x58] sm:$0xff]
        %v823 = vld [vmem:[%s810 + $0x60] sm:$0xff]
        %v824 = vld [vmem:[%s810 + $0x68] sm:$0xff]
        %v825 = vld [vmem:[%s810 + $0x70] sm:$0xff]
        %v826 = vld [vmem:[%s810 + $0x78] sm:$0xff]
        %v827 = vld [vmem:[%s810 + $0x80] sm:$0xff]
        %v828 = vld [vmem:[%s810 + $0x88] sm:$0xff]
        %v829 = vld [vmem:[%s810 + $0x90] sm:$0xff]
        %v830 = vld [vmem:[%s810 + $0x98] sm:$0xff]
        %v831 = vld [vmem:[%s810 + $0xa0] sm:$0xff]
        %v832 = vld [vmem:[%s810 + $0xa8] sm:$0xff]
        %v833 = vld [vmem:[%s810 + $0xb0] sm:$0xff]
        %v834 = vld [vmem:[%s810 + $0xb8] sm:$0xff]
        %v835 = vld [vmem:[%s810 + $0xc0] sm:$0xff]
        %v837 = vsel %vm638, %v811, 0
        %v840 = vsel %vm638, %v812, 0
        %v843 = vsel %vm638, %v813, 0
        %v846 = vsel %vm638, %v814, 0
        %v849 = vsel %vm638, %v815, 0
        %v852 = vsel %vm638, %v816, 0
        %v855 = vsel %vm638, %v817, 0
        %v858 = vsel %vm638, %v818, 0
        %v861 = vsel %vm638, %v819, 0
        %v864 = vsel %vm638, %v820, 0
        %v867 = vsel %vm638, %v821, 0
        %v870 = vsel %vm638, %v822, 0
        %v873 = vsel %vm638, %v823, 0
        %v876 = vsel %vm638, %v824, 0
        %v879 = vsel %vm638, %v825, 0
        %v882 = vsel %vm638, %v826, 0
        %v885 = vsel %vm638, %v827, 0
        %v888 = vsel %vm638, %v828, 0
        %v891 = vsel %vm638, %v829, 0
        %v894 = vsel %vm638, %v830, 0
        %v897 = vsel %vm638, %v831, 0
        %v900 = vsel %vm638, %v832, 0
        %v903 = vsel %vm638, %v833, 0
        %v906 = vsel %vm638, %v834, 0
        %v909 = vsel %vm638, %v835, 0
        %911 = vmatpush.msra.mxu0 0.0
        %912 = vmatpush.msra.mxu0 0.0
        %913 = vmatpush.msra.mxu0 0.0
        %914 = vmatpush.msra.mxu0 0.0
        %915 = vmatpush.msra.mxu0 0.0
        %916 = vmatpush.msra.mxu0 0.0
        %917 = vmatpush.msra.mxu0 %v716
        %918 = vmatpush.msra.mxu0 %v611
        %919 = vmatpush.msra.mxu0 %v610
        %920 = vmatpush.msra.mxu0 %v609
        %921 = vmatpush.msra.mxu0 %v608
        %922 = vmatpush.msra.mxu0 %v607
        %923 = vmatpush.msra.mxu0 %v606
        %924 = vmatpush.msra.mxu0 %v605
        %925 = vmatpush.msra.mxu0 %v604
        %926 = vmatpush.msra.mxu0 %v603
        %927 = vmatmul.f32.gmra.mxu0 %v837
        %v928 = vpop.f32.mrf.mxu0
        %v929 = vadd.f32 0.0, %v928
        %930 = vmatmul.f32.gmra.mxu0 %v840
        %v931 = vpop.f32.mrf.mxu0
        %v932 = vadd.f32 0.0, %v931
        %933 = vmatmul.f32.gmra.mxu0 %v843
        %v934 = vpop.f32.mrf.mxu0
        %v935 = vadd.f32 0.0, %v934
        %936 = vmatmul.f32.gmra.mxu0 %v846
        %v937 = vpop.f32.mrf.mxu0
        %v938 = vadd.f32 0.0, %v937
        %939 = vmatmul.f32.gmra.mxu0 %v849
        %v940 = vpop.f32.mrf.mxu0
        %v941 = vadd.f32 0.0, %v940
        %942 = vmatmul.f32.gmra.mxu0 %v852
        %v943 = vpop.f32.mrf.mxu0
        %v944 = vadd.f32 0.0, %v943
        %945 = vmatmul.f32.gmra.mxu0 %v855
        %v946 = vpop.f32.mrf.mxu0
        %v947 = vadd.f32 0.0, %v946
        %948 = vmatmul.f32.gmra.mxu0 %v858
        %v949 = vpop.f32.mrf.mxu0
        %v950 = vadd.f32 0.0, %v949
        %951 = vmatmul.f32.gmra.mxu0 %v861
        %v952 = vpop.f32.mrf.mxu0
        %v953 = vadd.f32 0.0, %v952
        %954 = vmatmul.f32.gmra.mxu0 %v864
        %v955 = vpop.f32.mrf.mxu0
        %v956 = vadd.f32 0.0, %v955
        %957 = vmatmul.f32.gmra.mxu0 %v867
        %v958 = vpop.f32.mrf.mxu0
        %v959 = vadd.f32 0.0, %v958
        %960 = vmatmul.f32.gmra.mxu0 %v870
        %v961 = vpop.f32.mrf.mxu0
        %v962 = vadd.f32 0.0, %v961
        %963 = vmatmul.f32.gmra.mxu0 %v873
        %v964 = vpop.f32.mrf.mxu0
        %v965 = vadd.f32 0.0, %v964
        %966 = vmatmul.f32.gmra.mxu0 %v876
        %v967 = vpop.f32.mrf.mxu0
        %v968 = vadd.f32 0.0, %v967
        %969 = vmatmul.f32.gmra.mxu0 %v879
        %v970 = vpop.f32.mrf.mxu0
        %v971 = vadd.f32 0.0, %v970
        %972 = vmatmul.f32.gmra.mxu0 %v882
        %v973 = vpop.f32.mrf.mxu0
        %v974 = vadd.f32 0.0, %v973
        %975 = vmatmul.f32.gmra.mxu0 %v885
        %v976 = vpop.f32.mrf.mxu0
        %v977 = vadd.f32 0.0, %v976
        %978 = vmatmul.f32.gmra.mxu0 %v888
        %v979 = vpop.f32.mrf.mxu0
        %v980 = vadd.f32 0.0, %v979
        %981 = vmatmul.f32.gmra.mxu0 %v891
        %v982 = vpop.f32.mrf.mxu0
        %v983 = vadd.f32 0.0, %v982
        %984 = vmatmul.f32.gmra.mxu0 %v894
        %v985 = vpop.f32.mrf.mxu0
        %v986 = vadd.f32 0.0, %v985
        %987 = vmatmul.f32.gmra.mxu0 %v897
        %v988 = vpop.f32.mrf.mxu0
        %v989 = vadd.f32 0.0, %v988
        %990 = vmatmul.f32.gmra.mxu0 %v900
        %v991 = vpop.f32.mrf.mxu0
        %v992 = vadd.f32 0.0, %v991
        %993 = vmatmul.f32.gmra.mxu0 %v903
        %v994 = vpop.f32.mrf.mxu0
        %v995 = vadd.f32 0.0, %v994
        %996 = vmatmul.f32.gmra.mxu0 %v906
        %v997 = vpop.f32.mrf.mxu0
        %v998 = vadd.f32 0.0, %v997
        %999 = vmatmul.f32.gmra.mxu0 %v909
        %v1000 = vpop.f32.mrf.mxu0
        %v1001 = vadd.f32 0.0, %v1000
        %1002 = vdwg.mxu0
        %v1003 = vmax.f32 %v736, %v929
        %v1004 = vmax.f32 %v739, %v932
        %v1005 = vmax.f32 %v742, %v935
        %v1006 = vmax.f32 %v745, %v938
        %v1007 = vmax.f32 %v748, %v941
        %v1008 = vmax.f32 %v751, %v944
        %v1009 = vmax.f32 %v754, %v947
        %v1010 = vmax.f32 %v757, %v950
        %v1011 = vmax.f32 %v760, %v953
        %v1012 = vmax.f32 %v763, %v956
        %v1013 = vmax.f32 %v766, %v959
        %v1014 = vmax.f32 %v769, %v962
        %v1015 = vmax.f32 %v772, %v965
        %v1016 = vmax.f32 %v775, %v968
        %v1017 = vmax.f32 %v778, %v971
        %v1018 = vmax.f32 %v781, %v974
        %v1019 = vmax.f32 %v784, %v977
        %v1020 = vmax.f32 %v787, %v980
        %v1021 = vmax.f32 %v790, %v983
        %v1022 = vmax.f32 %v793, %v986
        %v1023 = vmax.f32 %v796, %v989
        %v1024 = vmax.f32 %v799, %v992
        %v1025 = vmax.f32 %v802, %v995
        %v1026 = vmax.f32 %v805, %v998
        %v1027 = vmax.f32 %v808, %v1001
        %s1028 = scalar_lea.vmem %s577, 400 [#allocation2]
        %v1029 = vld [vmem:[%s1028] sm:$0xff]
        %v1030 = vld [vmem:[%s1028 + $0x8] sm:$0xff]
        %v1031 = vld [vmem:[%s1028 + $0x10] sm:$0xff]
        %v1032 = vld [vmem:[%s1028 + $0x18] sm:$0xff]
        %v1033 = vld [vmem:[%s1028 + $0x20] sm:$0xff]
        %v1034 = vld [vmem:[%s1028 + $0x28] sm:$0xff]
        %v1035 = vld [vmem:[%s1028 + $0x30] sm:$0xff]
        %v1036 = vld [vmem:[%s1028 + $0x38] sm:$0xff]
        %v1037 = vld [vmem:[%s1028 + $0x40] sm:$0xff]
        %v1038 = vld [vmem:[%s1028 + $0x48] sm:$0xff]
        %v1039 = vld [vmem:[%s1028 + $0x50] sm:$0xff]
        %v1040 = vld [vmem:[%s1028 + $0x58] sm:$0xff]
        %v1041 = vld [vmem:[%s1028 + $0x60] sm:$0xff]
        %v1042 = vld [vmem:[%s1028 + $0x68] sm:$0xff]
        %v1043 = vld [vmem:[%s1028 + $0x70] sm:$0xff]
        %v1044 = vld [vmem:[%s1028 + $0x78] sm:$0xff]
        %v1045 = vld [vmem:[%s1028 + $0x80] sm:$0xff]
        %v1046 = vld [vmem:[%s1028 + $0x88] sm:$0xff]
        %v1047 = vld [vmem:[%s1028 + $0x90] sm:$0xff]
        %v1048 = vld [vmem:[%s1028 + $0x98] sm:$0xff]
        %v1049 = vld [vmem:[%s1028 + $0xa0] sm:$0xff]
        %v1050 = vld [vmem:[%s1028 + $0xa8] sm:$0xff]
        %v1051 = vld [vmem:[%s1028 + $0xb0] sm:$0xff]
        %v1052 = vld [vmem:[%s1028 + $0xb8] sm:$0xff]
        %v1053 = vld [vmem:[%s1028 + $0xc0] sm:$0xff]
        %v1055 = vsel %vm638, %v1029, 0
        %v1058 = vsel %vm638, %v1030, 0
        %v1061 = vsel %vm638, %v1031, 0
        %v1064 = vsel %vm638, %v1032, 0
        %v1067 = vsel %vm638, %v1033, 0
        %v1070 = vsel %vm638, %v1034, 0
        %v1073 = vsel %vm638, %v1035, 0
        %v1076 = vsel %vm638, %v1036, 0
        %v1079 = vsel %vm638, %v1037, 0
        %v1082 = vsel %vm638, %v1038, 0
        %v1085 = vsel %vm638, %v1039, 0
        %v1088 = vsel %vm638, %v1040, 0
        %v1091 = vsel %vm638, %v1041, 0
        %v1094 = vsel %vm638, %v1042, 0
        %v1097 = vsel %vm638, %v1043, 0
        %v1100 = vsel %vm638, %v1044, 0
        %v1103 = vsel %vm638, %v1045, 0
        %v1106 = vsel %vm638, %v1046, 0
        %v1109 = vsel %vm638, %v1047, 0
        %v1112 = vsel %vm638, %v1048, 0
        %v1115 = vsel %vm638, %v1049, 0
        %v1118 = vsel %vm638, %v1050, 0
        %v1121 = vsel %vm638, %v1051, 0
        %v1124 = vsel %vm638, %v1052, 0
        %v1127 = vsel %vm638, %v1053, 0
        %1129 = vmatpush.msra.mxu0 0.0
        %1130 = vmatpush.msra.mxu0 0.0
        %1131 = vmatpush.msra.mxu0 0.0
        %1132 = vmatpush.msra.mxu0 0.0
        %1133 = vmatpush.msra.mxu0 0.0
        %1134 = vmatpush.msra.mxu0 0.0
        %1135 = vmatpush.msra.mxu0 %v716
        %1136 = vmatpush.msra.mxu0 %v611
        %1137 = vmatpush.msra.mxu0 %v610
        %1138 = vmatpush.msra.mxu0 %v609
        %1139 = vmatpush.msra.mxu0 %v608
        %1140 = vmatpush.msra.mxu0 %v607
        %1141 = vmatpush.msra.mxu0 %v606
        %1142 = vmatpush.msra.mxu0 %v605
        %1143 = vmatpush.msra.mxu0 %v604
        %1144 = vmatpush.msra.mxu0 %v603
        %1145 = vmatmul.f32.gmra.mxu0 %v1055
        %v1146 = vpop.f32.mrf.mxu0
        %v1147 = vadd.f32 0.0, %v1146
        %1148 = vmatmul.f32.gmra.mxu0 %v1058
        %v1149 = vpop.f32.mrf.mxu0
        %v1150 = vadd.f32 0.0, %v1149
        %1151 = vmatmul.f32.gmra.mxu0 %v1061
        %v1152 = vpop.f32.mrf.mxu0
        %v1153 = vadd.f32 0.0, %v1152
        %1154 = vmatmul.f32.gmra.mxu0 %v1064
        %v1155 = vpop.f32.mrf.mxu0
        %v1156 = vadd.f32 0.0, %v1155
        %1157 = vmatmul.f32.gmra.mxu0 %v1067
        %v1158 = vpop.f32.mrf.mxu0
        %v1159 = vadd.f32 0.0, %v1158
        %1160 = vmatmul.f32.gmra.mxu0 %v1070
        %v1161 = vpop.f32.mrf.mxu0
        %v1162 = vadd.f32 0.0, %v1161
        %1163 = vmatmul.f32.gmra.mxu0 %v1073
        %v1164 = vpop.f32.mrf.mxu0
        %v1165 = vadd.f32 0.0, %v1164
        %1166 = vmatmul.f32.gmra.mxu0 %v1076
        %v1167 = vpop.f32.mrf.mxu0
        %v1168 = vadd.f32 0.0, %v1167
        %1169 = vmatmul.f32.gmra.mxu0 %v1079
        %v1170 = vpop.f32.mrf.mxu0
        %v1171 = vadd.f32 0.0, %v1170
        %1172 = vmatmul.f32.gmra.mxu0 %v1082
        %v1173 = vpop.f32.mrf.mxu0
        %v1174 = vadd.f32 0.0, %v1173
        %1175 = vmatmul.f32.gmra.mxu0 %v1085
        %v1176 = vpop.f32.mrf.mxu0
        %v1177 = vadd.f32 0.0, %v1176
        %1178 = vmatmul.f32.gmra.mxu0 %v1088
        %v1179 = vpop.f32.mrf.mxu0
        %v1180 = vadd.f32 0.0, %v1179
        %1181 = vmatmul.f32.gmra.mxu0 %v1091
        %v1182 = vpop.f32.mrf.mxu0
        %v1183 = vadd.f32 0.0, %v1182
        %1184 = vmatmul.f32.gmra.mxu0 %v1094
        %v1185 = vpop.f32.mrf.mxu0
        %v1186 = vadd.f32 0.0, %v1185
        %1187 = vmatmul.f32.gmra.mxu0 %v1097
        %v1188 = vpop.f32.mrf.mxu0
        %v1189 = vadd.f32 0.0, %v1188
        %1190 = vmatmul.f32.gmra.mxu0 %v1100
        %v1191 = vpop.f32.mrf.mxu0
        %v1192 = vadd.f32 0.0, %v1191
        %1193 = vmatmul.f32.gmra.mxu0 %v1103
        %v1194 = vpop.f32.mrf.mxu0
        %v1195 = vadd.f32 0.0, %v1194
        %1196 = vmatmul.f32.gmra.mxu0 %v1106
        %v1197 = vpop.f32.mrf.mxu0
        %v1198 = vadd.f32 0.0, %v1197
        %1199 = vmatmul.f32.gmra.mxu0 %v1109
        %v1200 = vpop.f32.mrf.mxu0
        %v1201 = vadd.f32 0.0, %v1200
        %1202 = vmatmul.f32.gmra.mxu0 %v1112
        %v1203 = vpop.f32.mrf.mxu0
        %v1204 = vadd.f32 0.0, %v1203
        %1205 = vmatmul.f32.gmra.mxu0 %v1115
        %v1206 = vpop.f32.mrf.mxu0
        %v1207 = vadd.f32 0.0, %v1206
        %1208 = vmatmul.f32.gmra.mxu0 %v1118
        %v1209 = vpop.f32.mrf.mxu0
        %v1210 = vadd.f32 0.0, %v1209
        %1211 = vmatmul.f32.gmra.mxu0 %v1121
        %v1212 = vpop.f32.mrf.mxu0
        %v1213 = vadd.f32 0.0, %v1212
        %1214 = vmatmul.f32.gmra.mxu0 %v1124
        %v1215 = vpop.f32.mrf.mxu0
        %v1216 = vadd.f32 0.0, %v1215
        %1217 = vmatmul.f32.gmra.mxu0 %v1127
        %v1218 = vpop.f32.mrf.mxu0
        %v1219 = vadd.f32 0.0, %v1218
        %1220 = vdwg.mxu0
        %s1221 = scalar_lea.vmem %s577, 600 [#allocation2]
        %v1222 = vld [vmem:[%s1221] sm:$0xff]
        %v1223 = vld [vmem:[%s1221 + $0x8] sm:$0xff]
        %v1224 = vld [vmem:[%s1221 + $0x10] sm:$0xff]
        %v1225 = vld [vmem:[%s1221 + $0x18] sm:$0xff]
        %v1226 = vld [vmem:[%s1221 + $0x20] sm:$0xff]
        %v1227 = vld [vmem:[%s1221 + $0x28] sm:$0xff]
        %v1228 = vld [vmem:[%s1221 + $0x30] sm:$0xff]
        %v1229 = vld [vmem:[%s1221 + $0x38] sm:$0xff]
        %v1230 = vld [vmem:[%s1221 + $0x40] sm:$0xff]
        %v1231 = vld [vmem:[%s1221 + $0x48] sm:$0xff]
        %v1232 = vld [vmem:[%s1221 + $0x50] sm:$0xff]
        %v1233 = vld [vmem:[%s1221 + $0x58] sm:$0xff]
        %v1234 = vld [vmem:[%s1221 + $0x60] sm:$0xff]
        %v1235 = vld [vmem:[%s1221 + $0x68] sm:$0xff]
        %v1236 = vld [vmem:[%s1221 + $0x70] sm:$0xff]
        %v1237 = vld [vmem:[%s1221 + $0x78] sm:$0xff]
        %v1238 = vld [vmem:[%s1221 + $0x80] sm:$0xff]
        %v1239 = vld [vmem:[%s1221 + $0x88] sm:$0xff]
        %v1240 = vld [vmem:[%s1221 + $0x90] sm:$0xff]
        %v1241 = vld [vmem:[%s1221 + $0x98] sm:$0xff]
        %v1242 = vld [vmem:[%s1221 + $0xa0] sm:$0xff]
        %v1243 = vld [vmem:[%s1221 + $0xa8] sm:$0xff]
        %v1244 = vld [vmem:[%s1221 + $0xb0] sm:$0xff]
        %v1245 = vld [vmem:[%s1221 + $0xb8] sm:$0xff]
        %v1246 = vld [vmem:[%s1221 + $0xc0] sm:$0xff]
        %v1248 = vsel %vm638, %v1222, 0
        %v1251 = vsel %vm638, %v1223, 0
        %v1254 = vsel %vm638, %v1224, 0
        %v1257 = vsel %vm638, %v1225, 0
        %v1260 = vsel %vm638, %v1226, 0
        %v1263 = vsel %vm638, %v1227, 0
        %v1266 = vsel %vm638, %v1228, 0
        %v1269 = vsel %vm638, %v1229, 0
        %v1272 = vsel %vm638, %v1230, 0
        %v1275 = vsel %vm638, %v1231, 0
        %v1278 = vsel %vm638, %v1232, 0
        %v1281 = vsel %vm638, %v1233, 0
        %v1284 = vsel %vm638, %v1234, 0
        %v1287 = vsel %vm638, %v1235, 0
        %v1290 = vsel %vm638, %v1236, 0
        %v1293 = vsel %vm638, %v1237, 0
        %v1296 = vsel %vm638, %v1238, 0
        %v1299 = vsel %vm638, %v1239, 0
        %v1302 = vsel %vm638, %v1240, 0
        %v1305 = vsel %vm638, %v1241, 0
        %v1308 = vsel %vm638, %v1242, 0
        %v1311 = vsel %vm638, %v1243, 0
        %v1314 = vsel %vm638, %v1244, 0
        %v1317 = vsel %vm638, %v1245, 0
        %v1320 = vsel %vm638, %v1246, 0
        %1322 = vmatpush.msra.mxu0 0.0
        %1323 = vmatpush.msra.mxu0 0.0
        %1324 = vmatpush.msra.mxu0 0.0
        %1325 = vmatpush.msra.mxu0 0.0
        %1326 = vmatpush.msra.mxu0 0.0
        %1327 = vmatpush.msra.mxu0 0.0
        %1328 = vmatpush.msra.mxu0 %v716
        %1329 = vmatpush.msra.mxu0 %v611
        %1330 = vmatpush.msra.mxu0 %v610
        %1331 = vmatpush.msra.mxu0 %v609
        %1332 = vmatpush.msra.mxu0 %v608
        %1333 = vmatpush.msra.mxu0 %v607
        %1334 = vmatpush.msra.mxu0 %v606
        %1335 = vmatpush.msra.mxu0 %v605
        %1336 = vmatpush.msra.mxu0 %v604
        %1337 = vmatpush.msra.mxu0 %v603
        %1338 = vmatmul.f32.gmra.mxu0 %v1248
        %v1339 = vpop.f32.mrf.mxu0
        %v1340 = vadd.f32 0.0, %v1339
        %1341 = vmatmul.f32.gmra.mxu0 %v1251
        %v1342 = vpop.f32.mrf.mxu0
        %v1343 = vadd.f32 0.0, %v1342
        %1344 = vmatmul.f32.gmra.mxu0 %v1254
        %v1345 = vpop.f32.mrf.mxu0
        %v1346 = vadd.f32 0.0, %v1345
        %1347 = vmatmul.f32.gmra.mxu0 %v1257
        %v1348 = vpop.f32.mrf.mxu0
        %v1349 = vadd.f32 0.0, %v1348
        %1350 = vmatmul.f32.gmra.mxu0 %v1260
        %v1351 = vpop.f32.mrf.mxu0
        %v1352 = vadd.f32 0.0, %v1351
        %1353 = vmatmul.f32.gmra.mxu0 %v1263
        %v1354 = vpop.f32.mrf.mxu0
        %v1355 = vadd.f32 0.0, %v1354
        %1356 = vmatmul.f32.gmra.mxu0 %v1266
        %v1357 = vpop.f32.mrf.mxu0
        %v1358 = vadd.f32 0.0, %v1357
        %1359 = vmatmul.f32.gmra.mxu0 %v1269
        %v1360 = vpop.f32.mrf.mxu0
        %v1361 = vadd.f32 0.0, %v1360
        %1362 = vmatmul.f32.gmra.mxu0 %v1272
        %v1363 = vpop.f32.mrf.mxu0
        %v1364 = vadd.f32 0.0, %v1363
        %1365 = vmatmul.f32.gmra.mxu0 %v1275
        %v1366 = vpop.f32.mrf.mxu0
        %v1367 = vadd.f32 0.0, %v1366
        %1368 = vmatmul.f32.gmra.mxu0 %v1278
        %v1369 = vpop.f32.mrf.mxu0
        %v1370 = vadd.f32 0.0, %v1369
        %1371 = vmatmul.f32.gmra.mxu0 %v1281
        %v1372 = vpop.f32.mrf.mxu0
        %v1373 = vadd.f32 0.0, %v1372
        %1374 = vmatmul.f32.gmra.mxu0 %v1284
        %v1375 = vpop.f32.mrf.mxu0
        %v1376 = vadd.f32 0.0, %v1375
        %1377 = vmatmul.f32.gmra.mxu0 %v1287
        %v1378 = vpop.f32.mrf.mxu0
        %v1379 = vadd.f32 0.0, %v1378
        %1380 = vmatmul.f32.gmra.mxu0 %v1290
        %v1381 = vpop.f32.mrf.mxu0
        %v1382 = vadd.f32 0.0, %v1381
        %1383 = vmatmul.f32.gmra.mxu0 %v1293
        %v1384 = vpop.f32.mrf.mxu0
        %v1385 = vadd.f32 0.0, %v1384
        %1386 = vmatmul.f32.gmra.mxu0 %v1296
        %v1387 = vpop.f32.mrf.mxu0
        %v1388 = vadd.f32 0.0, %v1387
        %1389 = vmatmul.f32.gmra.mxu0 %v1299
        %v1390 = vpop.f32.mrf.mxu0
        %v1391 = vadd.f32 0.0, %v1390
        %1392 = vmatmul.f32.gmra.mxu0 %v1302
        %v1393 = vpop.f32.mrf.mxu0
        %v1394 = vadd.f32 0.0, %v1393
        %1395 = vmatmul.f32.gmra.mxu0 %v1305
        %v1396 = vpop.f32.mrf.mxu0
        %v1397 = vadd.f32 0.0, %v1396
        %1398 = vmatmul.f32.gmra.mxu0 %v1308
        %v1399 = vpop.f32.mrf.mxu0
        %v1400 = vadd.f32 0.0, %v1399
        %1401 = vmatmul.f32.gmra.mxu0 %v1311
        %v1402 = vpop.f32.mrf.mxu0
        %v1403 = vadd.f32 0.0, %v1402
        %1404 = vmatmul.f32.gmra.mxu0 %v1314
        %v1405 = vpop.f32.mrf.mxu0
        %v1406 = vadd.f32 0.0, %v1405
        %1407 = vmatmul.f32.gmra.mxu0 %v1317
        %v1408 = vpop.f32.mrf.mxu0
        %v1409 = vadd.f32 0.0, %v1408
        %1410 = vmatmul.f32.gmra.mxu0 %v1320
        %v1411 = vpop.f32.mrf.mxu0
        %v1412 = vadd.f32 0.0, %v1411
        %1413 = vdwg.mxu0
        %v1414 = vmax.f32 %v1147, %v1340
        %v1415 = vmax.f32 %v1150, %v1343
        %v1416 = vmax.f32 %v1153, %v1346
        %v1417 = vmax.f32 %v1156, %v1349
        %v1418 = vmax.f32 %v1159, %v1352
        %v1419 = vmax.f32 %v1162, %v1355
        %v1420 = vmax.f32 %v1165, %v1358
        %v1421 = vmax.f32 %v1168, %v1361
        %v1422 = vmax.f32 %v1171, %v1364
        %v1423 = vmax.f32 %v1174, %v1367
        %v1424 = vmax.f32 %v1177, %v1370
        %v1425 = vmax.f32 %v1180, %v1373
        %v1426 = vmax.f32 %v1183, %v1376
        %v1427 = vmax.f32 %v1186, %v1379
        %v1428 = vmax.f32 %v1189, %v1382
        %v1429 = vmax.f32 %v1192, %v1385
        %v1430 = vmax.f32 %v1195, %v1388
        %v1431 = vmax.f32 %v1198, %v1391
        %v1432 = vmax.f32 %v1201, %v1394
        %v1433 = vmax.f32 %v1204, %v1397
        %v1434 = vmax.f32 %v1207, %v1400
        %v1435 = vmax.f32 %v1210, %v1403
        %v1436 = vmax.f32 %v1213, %v1406
        %v1437 = vmax.f32 %v1216, %v1409
        %v1438 = vmax.f32 %v1219, %v1412
        %v1439 = vmax.f32 %v1003, %v1414
        %v1440 = vmax.f32 %v1004, %v1415
        %v1441 = vmax.f32 %v1005, %v1416
        %v1442 = vmax.f32 %v1006, %v1417
        %v1443 = vmax.f32 %v1007, %v1418
        %v1444 = vmax.f32 %v1008, %v1419
        %v1445 = vmax.f32 %v1009, %v1420
        %v1446 = vmax.f32 %v1010, %v1421
        %v1447 = vmax.f32 %v1011, %v1422
        %v1448 = vmax.f32 %v1012, %v1423
        %v1449 = vmax.f32 %v1013, %v1424
        %v1450 = vmax.f32 %v1014, %v1425
        %v1451 = vmax.f32 %v1015, %v1426
        %v1452 = vmax.f32 %v1016, %v1427
        %v1453 = vmax.f32 %v1017, %v1428
        %v1454 = vmax.f32 %v1018, %v1429
        %v1455 = vmax.f32 %v1019, %v1430
        %v1456 = vmax.f32 %v1020, %v1431
        %v1457 = vmax.f32 %v1021, %v1432
        %v1458 = vmax.f32 %v1022, %v1433
        %v1459 = vmax.f32 %v1023, %v1434
        %v1460 = vmax.f32 %v1024, %v1435
        %v1461 = vmax.f32 %v1025, %v1436
        %v1462 = vmax.f32 %v1026, %v1437
        %v1463 = vmax.f32 %v1027, %v1438
        %v1464 = vld [vmem:[%s2] sm:$0x1]
        %v1466 = vperm.slane %v1464, 0
        %v1468 = vadd.f32 %v1439, %v1466
        %v1469 = vadd.f32 %v1440, %v1466
        %v1470 = vadd.f32 %v1441, %v1466
        %v1471 = vadd.f32 %v1442, %v1466
        %v1472 = vadd.f32 %v1443, %v1466
        %v1473 = vadd.f32 %v1444, %v1466
        %v1474 = vadd.f32 %v1445, %v1466
        %v1475 = vadd.f32 %v1446, %v1466
        %v1476 = vadd.f32 %v1447, %v1466
        %v1477 = vadd.f32 %v1448, %v1466
        %v1478 = vadd.f32 %v1449, %v1466
        %v1479 = vadd.f32 %v1450, %v1466
        %v1480 = vadd.f32 %v1451, %v1466
        %v1481 = vadd.f32 %v1452, %v1466
        %v1482 = vadd.f32 %v1453, %v1466
        %v1483 = vadd.f32 %v1454, %v1466
        %v1484 = vadd.f32 %v1455, %v1466
        %v1485 = vadd.f32 %v1456, %v1466
        %v1486 = vadd.f32 %v1457, %v1466
        %v1487 = vadd.f32 %v1458, %v1466
        %v1488 = vadd.f32 %v1459, %v1466
        %v1489 = vadd.f32 %v1460, %v1466
        %v1490 = vadd.f32 %v1461, %v1466
        %v1491 = vadd.f32 %v1462, %v1466
        %v1492 = vadd.f32 %v1463, %v1466
        %v1493 = vmax.f32 %v1468, 0.0
        %v1494 = vmax.f32 %v1469, 0.0
        %v1495 = vmax.f32 %v1470, 0.0
        %v1496 = vmax.f32 %v1471, 0.0
        %v1497 = vmax.f32 %v1472, 0.0
        %v1498 = vmax.f32 %v1473, 0.0
        %v1499 = vmax.f32 %v1474, 0.0
        %v1500 = vmax.f32 %v1475, 0.0
        %v1501 = vmax.f32 %v1476, 0.0
        %v1502 = vmax.f32 %v1477, 0.0
        %v1503 = vmax.f32 %v1478, 0.0
        %v1504 = vmax.f32 %v1479, 0.0
        %v1505 = vmax.f32 %v1480, 0.0
        %v1506 = vmax.f32 %v1481, 0.0
        %v1507 = vmax.f32 %v1482, 0.0
        %v1508 = vmax.f32 %v1483, 0.0
        %v1509 = vmax.f32 %v1484, 0.0
        %v1510 = vmax.f32 %v1485, 0.0
        %v1511 = vmax.f32 %v1486, 0.0
        %v1512 = vmax.f32 %v1487, 0.0
        %v1513 = vmax.f32 %v1488, 0.0
        %v1514 = vmax.f32 %v1489, 0.0
        %v1515 = vmax.f32 %v1490, 0.0
        %v1516 = vmax.f32 %v1491, 0.0
        %v1517 = vmax.f32 %v1492, 0.0
        %vm1518 = vcmask 64512
        %1519 = vst.msk [vmem:[%s602] sm:$0xff] %vm1518, %v1493
        %1520 = vst.msk [vmem:[%s602 + $0x8] sm:$0xff] %vm1518, %v1494
        %1521 = vst.msk [vmem:[%s602 + $0x10] sm:$0xff] %vm1518, %v1495
        %1522 = vst.msk [vmem:[%s602 + $0x18] sm:$0xff] %vm1518, %v1496
        %1523 = vst.msk [vmem:[%s602 + $0x20] sm:$0xff] %vm1518, %v1497
        %1524 = vst.msk [vmem:[%s602 + $0x28] sm:$0xff] %vm1518, %v1498
        %1525 = vst.msk [vmem:[%s602 + $0x30] sm:$0xff] %vm1518, %v1499
        %1526 = vst.msk [vmem:[%s602 + $0x38] sm:$0xff] %vm1518, %v1500
        %1527 = vst.msk [vmem:[%s602 + $0x40] sm:$0xff] %vm1518, %v1501
        %1528 = vst.msk [vmem:[%s602 + $0x48] sm:$0xff] %vm1518, %v1502
        %1529 = vst.msk [vmem:[%s602 + $0x50] sm:$0xff] %vm1518, %v1503
        %1530 = vst.msk [vmem:[%s602 + $0x58] sm:$0xff] %vm1518, %v1504
        %1531 = vst.msk [vmem:[%s602 + $0x60] sm:$0xff] %vm1518, %v1505
        %1532 = vst.msk [vmem:[%s602 + $0x68] sm:$0xff] %vm1518, %v1506
        %1533 = vst.msk [vmem:[%s602 + $0x70] sm:$0xff] %vm1518, %v1507
        %1534 = vst.msk [vmem:[%s602 + $0x78] sm:$0xff] %vm1518, %v1508
        %1535 = vst.msk [vmem:[%s602 + $0x80] sm:$0xff] %vm1518, %v1509
        %1536 = vst.msk [vmem:[%s602 + $0x88] sm:$0xff] %vm1518, %v1510
        %1537 = vst.msk [vmem:[%s602 + $0x90] sm:$0xff] %vm1518, %v1511
        %1538 = vst.msk [vmem:[%s602 + $0x98] sm:$0xff] %vm1518, %v1512
        %1539 = vst.msk [vmem:[%s602 + $0xa0] sm:$0xff] %vm1518, %v1513
        %1540 = vst.msk [vmem:[%s602 + $0xa8] sm:$0xff] %vm1518, %v1514
        %1541 = vst.msk [vmem:[%s602 + $0xb0] sm:$0xff] %vm1518, %v1515
        %1542 = vst.msk [vmem:[%s602 + $0xb8] sm:$0xff] %vm1518, %v1516
        %1543 = vst.msk [vmem:[%s602 + $0xc0] sm:$0xff] %vm1518, %v1517
        %p1544 = scmp.lt.s32.totalorder %s14, 1
        %s1545 = scalar_select %p1544, %s14, 1
        %s1546 = smul.addr %s1545, 25
        %s1547 = smul.addr %s1546, 8
        %s1548 = scalar_lea.vmem %s3, %s1547
        // Predicated region
        $region71: #{simple_model_forward.2} parent=65 // pred_check
          %p1549 = pneg %p100
        $region72: #{simple_model_forward.2} parent=65 // pred_check_branch
          %1551 = sbr.rel (%p1549) target = $region74
        $region73: #{simple_model_forward.2} parent=65 // pred_region
          _
        $region74: #{simple_model_forward.2} parent=65 // pred_fallthru
          _
      $region66: #{simple_model_forward.2} parent=5 // pred_fallthru
        _
      %p1552 = scmp.le.s32.totalorder 2, %s9
      // Predicated region
      $region75: #{simple_model_forward.2} parent=5 // pred_check
        %p1553 = pneg %p1552
      $region76: #{simple_model_forward.2} parent=5 // pred_check_branch
        %1555 = sbr.rel (%p1553) target = $region78
      $region77: #{simple_model_forward.2} parent=5 // pred_region
        %s1556 = ssub.s32 %s9, 2
        // Predicated region
        $region79: #{simple_model_forward.2} parent=77 // pred_check
          %p1557 = pneg %p106
        $region80: #{simple_model_forward.2} parent=77 // pred_check_branch
          %1559 = sbr.rel (%p1557) target = $region82
        $region81: #{simple_model_forward.2} parent=77 // pred_region
          %p1560 = scmp.lt.s32.totalorder %s15, 1
          %s1561 = scalar_select %p1560, %s15, 1
          %s1562 = smul.addr %s1561, 25
          %s1563 = smul.addr %s1562, 8
          %s1564 = scalar_lea.vmem %s3, %s1563
        $region82: #{simple_model_forward.2} parent=77 // pred_fallthru
          _
      $region78: #{simple_model_forward.2} parent=5 // pred_fallthru
        _
    $region6: #{simple_model_forward.2} parent=1 // loop_footer
      %s13 = sadd.s32 1, %s9
    $region7: #{simple_model_forward.2} parent=1 // loop_footer_branch
      %8 = sbr.rel target = $region3
    $region8: #{simple_model_forward.2} parent=1 // loop_exit
      _

// kernel: simple_model_forward.3
$region0: #{simple_model_forward.3}
  #allocation0 [shape = 'u32[]', space=smem, size = 0x4, offset = 0x4, fixed_abs, tag = 'smem constant byte address 0x4 - core index']
  #allocation1 [shape = 'u32[72,128]{1,0:T(1,128)}', space=vmem, size = 0x9000, scoped, tag = 'internal scratch']
  %s0 = inlined_call_operand.vmem [shape: f32[4,2,32,200], index: 0, kind: input, shape index: {}]
  %s1 = inlined_call_operand.vmem [shape: f32[200,128], index: 1, kind: input, shape index: {}]
  %s2 = inlined_call_operand.vmem [shape: f32[1,128], index: 2, kind: input, shape index: {}]
  %s3 = inlined_call_operand.vmem [shape: f32[25,16,128], index: 3, kind: input, shape index: {}]
  %s4 = inlined_call_operand.vmem [shape: f32[1,128], index: 4, kind: input, shape index: {}]
  %s5 = inlined_call_operand.hbm [shape: f32[2,1,128], index: 5, kind: output, shape index: {}]
  %s6 = sld [smem:[#allocation0]]
  $region76: #{simple_model_forward.3} parent=0
    _
  %s8 = ssub.s32 1, %s6
  %s9 = scalar_select 0, %s8, %s6
  $region1: #{simple_model_forward.3} parent=0
    #allocation2 [shape = 'u8[262144]{0}', space=vmem, size = 0x40000, scoped, tag = 'input window, operand 0']
    #allocation3 [shape = 'u8[1024]{0}', space=vmem, size = 0x400, scoped, tag = 'output window, operand 0']
    #allocation4 [shape = 's32[2]{0}', space=sflag, size = 0x8, scoped, tag = 'scoped memory for simple_model_forward.3']
    %10 = vsyncpa [#allocation4], 0
    %s11 = scalar_lea.sflag [#allocation4], 1
    %12 = vsyncpa %s11, 0
    loop: start=0, step=1, limit=4
    $region2: #{simple_model_forward.3} parent=1 // loop_pre_header
      _
    $region3: #{simple_model_forward.3} parent=1 // loop_header
      %s14 = sphi 0, %s18
      %p15 = scmp.ge.s32.totalorder %s14, 4
      %s24 = sphi 0, %s26
      %s27 = sphi 0, %s24
      %s28 = sphi 0, %s27
      %s44 = sphi 0, %s28
      %s48 = sphi 0, %s48
      %s50 = sphi 0, %s48
      %s51 = sphi 0, %s50
      %s65 = sphi 0, %s51
      %s69 = sphi 0, %s69
      %s71 = sphi 0, %s69
      %s72 = sphi 0, %s71
      %s86 = sphi 0, %s72
      %s90 = sphi 0, %s90
      %s92 = sphi 0, %s90
      %s93 = sphi 0, %s92
      %s107 = sphi 0, %s93
      %s111 = sphi 0, %s111
      %s113 = sphi 0, %s111
      %s114 = sphi 0, %s113
      %s128 = sphi 0, %s114
      %s134 = sphi 0, %s136
      %s137 = sphi 0, %s134
      %s138 = sphi 0, %s137
      %s154 = sphi 0, %s138
    $region4: #{simple_model_forward.3} parent=1 // loop_header_branch
      %17 = sbr.rel (%p15) target = $region8
    $region5: #{simple_model_forward.3} parent=1 // loop_body
      %s19 = ssub.s32 %s14, 1
      %s20 = ssub.s32 %s14, 2
      %s21 = sadd.s32 %s14, 1
      %s22 = ssub.s32 %s14, %s21
      %p23 = scmp.eq.s32.totalorder %s22, 0
      %s25 = sadd.s32 %s24, 1
      %s26 = scalar_select %p23, %s24, %s25
      %p29 = pneg %p23
      %p30 = scmp.eq.s32.totalorder %s14, 1
      %p31 = por %p29, %p30
      %p32 = scmp.ne.s32.totalorder %s24, %s27
      %p33 = scmp.eq.s32.totalorder %s14, 0
      %p34 = por %p32, %p33
      %p35 = scmp.ne.s32.totalorder %s24, %s27
      %p36 = scmp.eq.s32.totalorder %s19, 1
      %p37 = por %p35, %p36
      %p38 = scmp.ne.s32.totalorder %s27, %s28
      %p39 = scmp.eq.s32.totalorder %s19, 0
      %p40 = por %p38, %p39
      %p41 = scmp.ne.s32.totalorder %s27, %s28
      %p42 = scmp.eq.s32.totalorder %s20, 1
      %p43 = por %p41, %p42
      %p45 = scmp.ne.s32.totalorder %s28, %s44
      %p46 = scmp.eq.s32.totalorder %s20, 0
      %p47 = por %p45, %p46
      %s49 = sadd.s32 %s48, 1
      %p52 = scmp.eq.s32.totalorder %s14, 1
      %p53 = scmp.ne.s32.totalorder %s48, %s50
      %p54 = scmp.eq.s32.totalorder %s14, 0
      %p55 = por %p53, %p54
      %p56 = scmp.ne.s32.totalorder %s48, %s50
      %p57 = scmp.eq.s32.totalorder %s19, 1
      %p58 = por %p56, %p57
      %p59 = scmp.ne.s32.totalorder %s50, %s51
      %p60 = scmp.eq.s32.totalorder %s19, 0
      %p61 = por %p59, %p60
      %p62 = scmp.ne.s32.totalorder %s50, %s51
      %p63 = scmp.eq.s32.totalorder %s20, 1
      %p64 = por %p62, %p63
      %p66 = scmp.ne.s32.totalorder %s51, %s65
      %p67 = scmp.eq.s32.totalorder %s20, 0
      %p68 = por %p66, %p67
      %s70 = sadd.s32 %s69, 1
      %p73 = scmp.eq.s32.totalorder %s14, 1
      %p74 = scmp.ne.s32.totalorder %s69, %s71
      %p75 = scmp.eq.s32.totalorder %s14, 0
      %p76 = por %p74, %p75
      %p77 = scmp.ne.s32.totalorder %s69, %s71
      %p78 = scmp.eq.s32.totalorder %s19, 1
      %p79 = por %p77, %p78
      %p80 = scmp.ne.s32.totalorder %s71, %s72
      %p81 = scmp.eq.s32.totalorder %s19, 0
      %p82 = por %p80, %p81
      %p83 = scmp.ne.s32.totalorder %s71, %s72
      %p84 = scmp.eq.s32.totalorder %s20, 1
      %p85 = por %p83, %p84
      %p87 = scmp.ne.s32.totalorder %s72, %s86
      %p88 = scmp.eq.s32.totalorder %s20, 0
      %p89 = por %p87, %p88
      %s91 = sadd.s32 %s90, 1
      %p94 = scmp.eq.s32.totalorder %s14, 1
      %p95 = scmp.ne.s32.totalorder %s90, %s92
      %p96 = scmp.eq.s32.totalorder %s14, 0
      %p97 = por %p95, %p96
      %p98 = scmp.ne.s32.totalorder %s90, %s92
      %p99 = scmp.eq.s32.totalorder %s19, 1
      %p100 = por %p98, %p99
      %p101 = scmp.ne.s32.totalorder %s92, %s93
      %p102 = scmp.eq.s32.totalorder %s19, 0
      %p103 = por %p101, %p102
      %p104 = scmp.ne.s32.totalorder %s92, %s93
      %p105 = scmp.eq.s32.totalorder %s20, 1
      %p106 = por %p104, %p105
      %p108 = scmp.ne.s32.totalorder %s93, %s107
      %p109 = scmp.eq.s32.totalorder %s20, 0
      %p110 = por %p108, %p109
      %s112 = sadd.s32 %s111, 1
      %p115 = scmp.eq.s32.totalorder %s14, 1
      %p116 = scmp.ne.s32.totalorder %s111, %s113
      %p117 = scmp.eq.s32.totalorder %s14, 0
      %p118 = por %p116, %p117
      %p119 = scmp.ne.s32.totalorder %s111, %s113
      %p120 = scmp.eq.s32.totalorder %s19, 1
      %p121 = por %p119, %p120
      %p122 = scmp.ne.s32.totalorder %s113, %s114
      %p123 = scmp.eq.s32.totalorder %s19, 0
      %p124 = por %p122, %p123
      %p125 = scmp.ne.s32.totalorder %s113, %s114
      %p126 = scmp.eq.s32.totalorder %s20, 1
      %p127 = por %p125, %p126
      %p129 = scmp.ne.s32.totalorder %s114, %s128
      %p130 = scmp.eq.s32.totalorder %s20, 0
      %p131 = por %p129, %p130
      %s132 = ssub.s32 %s14, %s21
      %p133 = scmp.eq.s32.totalorder %s132, 0
      %s135 = sadd.s32 %s134, 1
      %s136 = scalar_select %p133, %s134, %s135
      %p139 = pneg %p133
      %p140 = scmp.eq.s32.totalorder %s14, 1
      %p141 = por %p139, %p140
      %p142 = scmp.ne.s32.totalorder %s134, %s137
      %p143 = scmp.eq.s32.totalorder %s14, 0
      %p144 = por %p142, %p143
      %p145 = scmp.ne.s32.totalorder %s134, %s137
      %p146 = scmp.eq.s32.totalorder %s19, 1
      %p147 = por %p145, %p146
      %p148 = scmp.ne.s32.totalorder %s137, %s138
      %p149 = scmp.eq.s32.totalorder %s19, 0
      %p150 = por %p148, %p149
      %p151 = scmp.ne.s32.totalorder %s137, %s138
      %p152 = scmp.eq.s32.totalorder %s20, 1
      %p153 = por %p151, %p152
      %p155 = scmp.ne.s32.totalorder %s138, %s154
      %p156 = scmp.eq.s32.totalorder %s20, 0
      %p157 = por %p155, %p156
      %p158 = scmp.le.s32.totalorder 1, %s14
      %p159 = scmp.lt.s32.totalorder %s14, 3
      %p160 = pnand %p158, %p159
      %p161 = pneg %p160
      // Predicated region
      $region9: #{simple_model_forward.3} parent=5 // pred_check
        _
      $region10: #{simple_model_forward.3} parent=5 // pred_check_branch
        %163 = sbr.rel (%p160) target = $region12
      $region11: #{simple_model_forward.3} parent=5 // pred_region
        %s164 = ssub.s32 %s14, 1
        // Predicated region
        $region13: #{simple_model_forward.3} parent=11 // pred_check
          %p165 = pneg %p61
        $region14: #{simple_model_forward.3} parent=11 // pred_check_branch
          %167 = sbr.rel (%p165) target = $region16
        $region15: #{simple_model_forward.3} parent=11 // pred_region
          _
        $region16: #{simple_model_forward.3} parent=11 // pred_fallthru
          _
        // Predicated region
        $region17: #{simple_model_forward.3} parent=11 // pred_check
          %p168 = pneg %p82
        $region18: #{simple_model_forward.3} parent=11 // pred_check_branch
          %170 = sbr.rel (%p168) target = $region20
        $region19: #{simple_model_forward.3} parent=11 // pred_region
          _
        $region20: #{simple_model_forward.3} parent=11 // pred_fallthru
          _
        // Predicated region
        $region21: #{simple_model_forward.3} parent=11 // pred_check
          %p171 = pneg %p103
        $region22: #{simple_model_forward.3} parent=11 // pred_check_branch
          %173 = sbr.rel (%p171) target = $region24
        $region23: #{simple_model_forward.3} parent=11 // pred_region
          _
        $region24: #{simple_model_forward.3} parent=11 // pred_fallthru
          _
        // Predicated region
        $region25: #{simple_model_forward.3} parent=11 // pred_check
          %p174 = pneg %p124
        $region26: #{simple_model_forward.3} parent=11 // pred_check_branch
          %176 = sbr.rel (%p174) target = $region28
        $region27: #{simple_model_forward.3} parent=11 // pred_region
          _
        $region28: #{simple_model_forward.3} parent=11 // pred_fallthru
          _
      $region12: #{simple_model_forward.3} parent=5 // pred_fallthru
        _
      %p177 = scmp.lt.s32.totalorder %s14, 2
      // Predicated region
      $region29: #{simple_model_forward.3} parent=5 // pred_check
        %p178 = pneg %p177
      $region30: #{simple_model_forward.3} parent=5 // pred_check_branch
        %180 = sbr.rel (%p178) target = $region32
      $region31: #{simple_model_forward.3} parent=5 // pred_region
        // Predicated region
        $region33: #{simple_model_forward.3} parent=31 // pred_check
          %p181 = pneg %p34
        $region34: #{simple_model_forward.3} parent=31 // pred_check_branch
          %183 = sbr.rel (%p181) target = $region36
        $region35: #{simple_model_forward.3} parent=31 // pred_region
          %s184 = sand.u32 %s24, 1
          %s185 = sand.u32 %s24, 1
          %s186 = smul.addr %s185, 256
          %s187 = scalar_lea.vmem [#allocation2], %s186
          %s188 = smul.addr %s14, 8
          %s189 = smul.addr %s188, 8
          %s190 = scalar_lea.vmem %s0, %s189
          // Predicated region
          $region37: #{simple_model_forward.3} parent=35 // pred_check
            _
          $region38: #{simple_model_forward.3} parent=35 // pred_check_branch
            %192 = sbr.rel (0) target = $region40
          $region39: #{simple_model_forward.3} parent=35 // pred_region
            // Predicated region
            $region41: #{simple_model_forward.3} parent=39 // pred_check
              _
            $region42: #{simple_model_forward.3} parent=39 // pred_check_branch
              %194 = sbr.rel (0) target = $region44
            $region43: #{simple_model_forward.3} parent=39 // pred_region
              loop: start=0, step=1, limit=1
              $region45: #{simple_model_forward.3} parent=43 // loop_pre_header
                _
              $region46: #{simple_model_forward.3} parent=43 // loop_header
                %s196 = sphi 0, %s200
                %p197 = scmp.ge.s32.totalorder %s196, 1
                %s201 = sphi %s190, %s190
                %s202 = sphi %s187, %s187
              $region47: #{simple_model_forward.3} parent=43 // loop_header_branch
                %199 = sbr.rel (%p197) target = $region51
              $region48: #{simple_model_forward.3} parent=43 // loop_body
                %v203 = vld [vmem:[%s201] sm:$0xff]
                %204 = vst [vmem:[%s202] sm:$0xff] %v203
                %v205 = vld [vmem:[%s201 + $0x8] sm:$0xff]
                %206 = vst [vmem:[%s202 + $0x8] sm:$0xff] %v205
                %v207 = vld [vmem:[%s201 + $0x10] sm:$0xff]
                %208 = vst [vmem:[%s202 + $0x10] sm:$0xff] %v207
                %v209 = vld [vmem:[%s201 + $0x18] sm:$0xff]
                %210 = vst [vmem:[%s202 + $0x18] sm:$0xff] %v209
                %v211 = vld [vmem:[%s201 + $0x20] sm:$0xff]
                %212 = vst [vmem:[%s202 + $0x20] sm:$0xff] %v211
                %v213 = vld [vmem:[%s201 + $0x28] sm:$0xff]
                %214 = vst [vmem:[%s202 + $0x28] sm:$0xff] %v213
                %v215 = vld [vmem:[%s201 + $0x30] sm:$0xff]
                %216 = vst [vmem:[%s202 + $0x30] sm:$0xff] %v215
                %v217 = vld [vmem:[%s201 + $0x38] sm:$0xff]
                %218 = vst [vmem:[%s202 + $0x38] sm:$0xff] %v217
                %v219 = vld [vmem:[%s201 + $0x80] sm:$0xff]
                %220 = vst [vmem:[%s202 + $0x40] sm:$0xff] %v219
                %v221 = vld [vmem:[%s201 + $0x88] sm:$0xff]
                %222 = vst [vmem:[%s202 + $0x48] sm:$0xff] %v221
                %v223 = vld [vmem:[%s201 + $0x90] sm:$0xff]
                %224 = vst [vmem:[%s202 + $0x50] sm:$0xff] %v223
                %v225 = vld [vmem:[%s201 + $0x98] sm:$0xff]
                %226 = vst [vmem:[%s202 + $0x58] sm:$0xff] %v225
                %v227 = vld [vmem:[%s201 + $0xa0] sm:$0xff]
                %228 = vst [vmem:[%s202 + $0x60] sm:$0xff] %v227
                %v229 = vld [vmem:[%s201 + $0xa8] sm:$0xff]
                %230 = vst [vmem:[%s202 + $0x68] sm:$0xff] %v229
                %v231 = vld [vmem:[%s201 + $0xb0] sm:$0xff]
                %232 = vst [vmem:[%s202 + $0x70] sm:$0xff] %v231
                %v233 = vld [vmem:[%s201 + $0xb8] sm:$0xff]
                %234 = vst [vmem:[%s202 + $0x78] sm:$0xff] %v233
                %v235 = vld [vmem:[%s201 + $0x100] sm:$0xff]
                %236 = vst [vmem:[%s202 + $0x80] sm:$0xff] %v235
                %v237 = vld [vmem:[%s201 + $0x108] sm:$0xff]
                %238 = vst [vmem:[%s202 + $0x88] sm:$0xff] %v237
                %v239 = vld [vmem:[%s201 + $0x110] sm:$0xff]
                %240 = vst [vmem:[%s202 + $0x90] sm:$0xff] %v239
                %v241 = vld [vmem:[%s201 + $0x118] sm:$0xff]
                %242 = vst [vmem:[%s202 + $0x98] sm:$0xff] %v241
                %v243 = vld [vmem:[%s201 + $0x120] sm:$0xff]
                %244 = vst [vmem:[%s202 + $0xa0] sm:$0xff] %v243
                %v245 = vld [vmem:[%s201 + $0x128] sm:$0xff]
                %246 = vst [vmem:[%s202 + $0xa8] sm:$0xff] %v245
                %v247 = vld [vmem:[%s201 + $0x130] sm:$0xff]
                %248 = vst [vmem:[%s202 + $0xb0] sm:$0xff] %v247
                %v249 = vld [vmem:[%s201 + $0x138] sm:$0xff]
                %250 = vst [vmem:[%s202 + $0xb8] sm:$0xff] %v249
                %v251 = vld [vmem:[%s201 + $0x180] sm:$0xff]
                %252 = vst [vmem:[%s202 + $0xc0] sm:$0xff] %v251
                %v253 = vld [vmem:[%s201 + $0x188] sm:$0xff]
                %254 = vst [vmem:[%s202 + $0xc8] sm:$0xff] %v253
                %v255 = vld [vmem:[%s201 + $0x190] sm:$0xff]
                %256 = vst [vmem:[%s202 + $0xd0] sm:$0xff] %v255
                %v257 = vld [vmem:[%s201 + $0x198] sm:$0xff]
                %258 = vst [vmem:[%s202 + $0xd8] sm:$0xff] %v257
                %v259 = vld [vmem:[%s201 + $0x1a0] sm:$0xff]
                %260 = vst [vmem:[%s202 + $0xe0] sm:$0xff] %v259
                %v261 = vld [vmem:[%s201 + $0x1a8] sm:$0xff]
                %262 = vst [vmem:[%s202 + $0xe8] sm:$0xff] %v261
                %v263 = vld [vmem:[%s201 + $0x1b0] sm:$0xff]
                %264 = vst [vmem:[%s202 + $0xf0] sm:$0xff] %v263
                %v265 = vld [vmem:[%s201 + $0x1b8] sm:$0xff]
                %266 = vst [vmem:[%s202 + $0xf8] sm:$0xff] %v265
              $region49: #{simple_model_forward.3} parent=43 // loop_footer
                %s200 = sadd.s32 1, %s196
              $region50: #{simple_model_forward.3} parent=43 // loop_footer_branch
                %195 = sbr.rel target = $region46
              $region51: #{simple_model_forward.3} parent=43 // loop_exit
                _
            $region44: #{simple_model_forward.3} parent=39 // pred_fallthru
              _
            // Predicated region
            $region52: #{simple_model_forward.3} parent=39 // pred_check
              _
            $region53: #{simple_model_forward.3} parent=39 // pred_check_branch
              %268 = sbr.rel target = $region55
            $region54: #{simple_model_forward.3} parent=39 // pred_region
              _
            $region55: #{simple_model_forward.3} parent=39 // pred_fallthru
              _
          $region40: #{simple_model_forward.3} parent=35 // pred_fallthru
            _
          %269 = vnop
        $region36: #{simple_model_forward.3} parent=31 // pred_fallthru
          _
      $region32: #{simple_model_forward.3} parent=5 // pred_fallthru
        _
      %p270 = scmp.le.s32.totalorder 1, %s14
      %p271 = scmp.lt.s32.totalorder %s14, 3
      %p272 = pnand %p270, %p271
      %p273 = pneg %p272
      // Predicated region
      $region56: #{simple_model_forward.3} parent=5 // pred_check
        _
      $region57: #{simple_model_forward.3} parent=5 // pred_check_branch
        %275 = sbr.rel (%p272) target = $region59
      $region58: #{simple_model_forward.3} parent=5 // pred_region
        %s276 = ssub.s32 %s14, 1
        %s277 = sand.u32 %s27, 1
        %s278 = sand.u32 %s27, 1
        %s279 = smul.addr %s278, 256
        %s280 = scalar_lea.vmem [#allocation2], %s279
        // Predicated region
        $region60: #{simple_model_forward.3} parent=58 // pred_check
          %p281 = pneg %p40
        $region61: #{simple_model_forward.3} parent=58 // pred_check_branch
          %283 = sbr.rel (%p281) target = $region63
        $region62: #{simple_model_forward.3} parent=58 // pred_region
          _
        $region63: #{simple_model_forward.3} parent=58 // pred_fallthru
          _
        %s284 = sand.u32 %s27, 1
        %s285 = sand.u32 %s27, 1
        %s286 = smul.addr %s285, 256
        %s287 = scalar_lea.vmem [#allocation2], %s286
        %p288 = pneg %p40
        %p289 = pneg %p37
        %p290 = pneg %p61
        %p291 = pneg %p58
        %p292 = pneg %p82
        %p293 = pneg %p79
        %p294 = pneg %p103
        %p295 = pneg %p100
        %p296 = pneg %p124
        %p297 = pneg %p121
        %p298 = pneg %p150
        %p299 = pneg %p147
        %s300 = sand.u32 %s137, 1
        %s301 = scalar_lea.sflag [#allocation4], %s300
        %s302 = sand.u32 %s137, 1
        %s303 = scalar_lea.vmem [#allocation3], %s302
        %v304 = vld [vmem:[%s1] sm:$0xff]
        %v305 = vld [vmem:[%s1 + $0x8] sm:$0xff]
        %v306 = vld [vmem:[%s1 + $0x10] sm:$0xff]
        %v307 = vld [vmem:[%s1 + $0x18] sm:$0xff]
        %v308 = vld [vmem:[%s1 + $0x20] sm:$0xff]
        %v309 = vld [vmem:[%s1 + $0x28] sm:$0xff]
        %v310 = vld [vmem:[%s1 + $0x30] sm:$0xff]
        %v311 = vld [vmem:[%s1 + $0x38] sm:$0xff]
        %v312 = vld [vmem:[%s1 + $0x40] sm:$0xff]
        %v313 = vld [vmem:[%s1 + $0x48] sm:$0xff]
        %v314 = vld [vmem:[%s1 + $0x50] sm:$0xff]
        %v315 = vld [vmem:[%s1 + $0x58] sm:$0xff]
        %v316 = vld [vmem:[%s1 + $0x60] sm:$0xff]
        %v317 = vld [vmem:[%s1 + $0x68] sm:$0xff]
        %v318 = vld [vmem:[%s1 + $0x70] sm:$0xff]
        %v319 = vld [vmem:[%s1 + $0x78] sm:$0xff]
        %v320 = vld [vmem:[%s1 + $0x80] sm:$0xff]
        %v321 = vld [vmem:[%s1 + $0x88] sm:$0xff]
        %v322 = vld [vmem:[%s1 + $0x90] sm:$0xff]
        %v323 = vld [vmem:[%s1 + $0x98] sm:$0xff]
        %v324 = vld [vmem:[%s1 + $0xa0] sm:$0xff]
        %v325 = vld [vmem:[%s1 + $0xa8] sm:$0xff]
        %v326 = vld [vmem:[%s1 + $0xb0] sm:$0xff]
        %v327 = vld [vmem:[%s1 + $0xb8] sm:$0xff]
        %v328 = vld [vmem:[%s1 + $0xc0] sm:$0xff]
        %v329 = vld [vmem:[%s280] sm:$0xff]
        %v330 = vld [vmem:[%s280 + $0x8] sm:$0xff]
        %v331 = vld [vmem:[%s280 + $0x10] sm:$0xff]
        %v332 = vld [vmem:[%s280 + $0x18] sm:$0xff]
        %v333 = vld [vmem:[%s280 + $0x20] sm:$0xff]
        %v334 = vld [vmem:[%s280 + $0x28] sm:$0xff]
        %v335 = vld [vmem:[%s280 + $0x30] sm:$0xff]
        %v336 = vld [vmem:[%s280 + $0x38] sm:$0xff]
        %vm337 = vcmask 588800
        %v339 = vsel %vm337, %v330, 0
        %v342 = vsel %vm337, %v332, 0
        %v345 = vsel %vm337, %v334, 0
        %v348 = vsel %vm337, %v336, 0
        %350 = vmatpush.msra.mxu0 %v319
        %351 = vmatpush.msra.mxu0 %v318
        %352 = vmatpush.msra.mxu0 %v317
        %353 = vmatpush.msra.mxu0 %v316
        %354 = vmatpush.msra.mxu0 %v315
        %355 = vmatpush.msra.mxu0 %v314
        %356 = vmatpush.msra.mxu0 %v313
        %357 = vmatpush.msra.mxu0 %v312
        %358 = vmatpush.msra.mxu0 %v311
        %359 = vmatpush.msra.mxu0 %v310
        %360 = vmatpush.msra.mxu0 %v309
        %361 = vmatpush.msra.mxu0 %v308
        %362 = vmatpush.msra.mxu0 %v307
        %363 = vmatpush.msra.mxu0 %v306
        %364 = vmatpush.msra.mxu0 %v305
        %365 = vmatpush.msra.mxu0 %v304
        %366 = vmatmul.f32.gmra.mxu0 %v329
        %v367 = vpop.f32.mrf.mxu0
        %v368 = vadd.f32 0.0, %v367
        %369 = vmatmul.f32.gmra.mxu0 %v331
        %v370 = vpop.f32.mrf.mxu0
        %v371 = vadd.f32 0.0, %v370
        %372 = vmatmul.f32.gmra.mxu0 %v333
        %v373 = vpop.f32.mrf.mxu0
        %v374 = vadd.f32 0.0, %v373
        %375 = vmatmul.f32.gmra.mxu0 %v335
        %v376 = vpop.f32.mrf.mxu0
        %v377 = vadd.f32 0.0, %v376
        %378 = vdwg.mxu0
        %379 = vmatpush.msra.mxu0 0.0
        %380 = vmatpush.msra.mxu0 0.0
        %381 = vmatpush.msra.mxu0 0.0
        %382 = vmatpush.msra.mxu0 0.0
        %383 = vmatpush.msra.mxu0 0.0
        %384 = vmatpush.msra.mxu0 0.0
        %385 = vmatpush.msra.mxu0 0.0
        %386 = vmatpush.msra.mxu0 %v328
        %387 = vmatpush.msra.mxu0 %v327
        %388 = vmatpush.msra.mxu0 %v326
        %389 = vmatpush.msra.mxu0 %v325
        %390 = vmatpush.msra.mxu0 %v324
        %391 = vmatpush.msra.mxu0 %v323
        %392 = vmatpush.msra.mxu0 %v322
        %393 = vmatpush.msra.mxu0 %v321
        %394 = vmatpush.msra.mxu0 %v320
        %395 = vmatmul.f32.gmra.mxu0 %v339
        %v396 = vpop.f32.mrf.mxu0
        %v397 = vadd.f32 %v368, %v396
        %398 = vmatmul.f32.gmra.mxu0 %v342
        %v399 = vpop.f32.mrf.mxu0
        %v400 = vadd.f32 %v371, %v399
        %401 = vmatmul.f32.gmra.mxu0 %v345
        %v402 = vpop.f32.mrf.mxu0
        %v403 = vadd.f32 %v374, %v402
        %404 = vmatmul.f32.gmra.mxu0 %v348
        %v405 = vpop.f32.mrf.mxu0
        %v406 = vadd.f32 %v377, %v405
        %407 = vdwg.mxu0
        %s408 = scalar_lea.vmem %s280, 64 [#allocation2]
        %v409 = vld [vmem:[%s408] sm:$0xff]
        %v410 = vld [vmem:[%s408 + $0x8] sm:$0xff]
        %v411 = vld [vmem:[%s408 + $0x10] sm:$0xff]
        %v412 = vld [vmem:[%s408 + $0x18] sm:$0xff]
        %v413 = vld [vmem:[%s408 + $0x20] sm:$0xff]
        %v414 = vld [vmem:[%s408 + $0x28] sm:$0xff]
        %v415 = vld [vmem:[%s408 + $0x30] sm:$0xff]
        %v416 = vld [vmem:[%s408 + $0x38] sm:$0xff]
        %v418 = vsel %vm337, %v410, 0
        %v421 = vsel %vm337, %v412, 0
        %v424 = vsel %vm337, %v414, 0
        %v427 = vsel %vm337, %v416, 0
        %429 = vmatpush.msra.mxu0 %v319
        %430 = vmatpush.msra.mxu0 %v318
        %431 = vmatpush.msra.mxu0 %v317
        %432 = vmatpush.msra.mxu0 %v316
        %433 = vmatpush.msra.mxu0 %v315
        %434 = vmatpush.msra.mxu0 %v314
        %435 = vmatpush.msra.mxu0 %v313
        %436 = vmatpush.msra.mxu0 %v312
        %437 = vmatpush.msra.mxu0 %v311
        %438 = vmatpush.msra.mxu0 %v310
        %439 = vmatpush.msra.mxu0 %v309
        %440 = vmatpush.msra.mxu0 %v308
        %441 = vmatpush.msra.mxu0 %v307
        %442 = vmatpush.msra.mxu0 %v306
        %443 = vmatpush.msra.mxu0 %v305
        %444 = vmatpush.msra.mxu0 %v304
        %445 = vmatmul.f32.gmra.mxu0 %v409
        %v446 = vpop.f32.mrf.mxu0
        %v447 = vadd.f32 0.0, %v446
        %448 = vmatmul.f32.gmra.mxu0 %v411
        %v449 = vpop.f32.mrf.mxu0
        %v450 = vadd.f32 0.0, %v449
        %451 = vmatmul.f32.gmra.mxu0 %v413
        %v452 = vpop.f32.mrf.mxu0
        %v453 = vadd.f32 0.0, %v452
        %454 = vmatmul.f32.gmra.mxu0 %v415
        %v455 = vpop.f32.mrf.mxu0
        %v456 = vadd.f32 0.0, %v455
        %457 = vdwg.mxu0
        %458 = vmatpush.msra.mxu0 0.0
        %459 = vmatpush.msra.mxu0 0.0
        %460 = vmatpush.msra.mxu0 0.0
        %461 = vmatpush.msra.mxu0 0.0
        %462 = vmatpush.msra.mxu0 0.0
        %463 = vmatpush.msra.mxu0 0.0
        %464 = vmatpush.msra.mxu0 0.0
        %465 = vmatpush.msra.mxu0 %v328
        %466 = vmatpush.msra.mxu0 %v327
        %467 = vmatpush.msra.mxu0 %v326
        %468 = vmatpush.msra.mxu0 %v325
        %469 = vmatpush.msra.mxu0 %v324
        %470 = vmatpush.msra.mxu0 %v323
        %471 = vmatpush.msra.mxu0 %v322
        %472 = vmatpush.msra.mxu0 %v321
        %473 = vmatpush.msra.mxu0 %v320
        %474 = vmatmul.f32.gmra.mxu0 %v418
        %v475 = vpop.f32.mrf.mxu0
        %v476 = vadd.f32 %v447, %v475
        %477 = vmatmul.f32.gmra.mxu0 %v421
        %v478 = vpop.f32.mrf.mxu0
        %v479 = vadd.f32 %v450, %v478
        %480 = vmatmul.f32.gmra.mxu0 %v424
        %v481 = vpop.f32.mrf.mxu0
        %v482 = vadd.f32 %v453, %v481
        %483 = vmatmul.f32.gmra.mxu0 %v427
        %v484 = vpop.f32.mrf.mxu0
        %v485 = vadd.f32 %v456, %v484
        %486 = vdwg.mxu0
        %v487 = vmax.f32 %v397, %v476
        %v488 = vmax.f32 %v400, %v479
        %v489 = vmax.f32 %v403, %v482
        %v490 = vmax.f32 %v406, %v485
        %s491 = scalar_lea.vmem %s280, 128 [#allocation2]
        %v492 = vld [vmem:[%s491] sm:$0xff]
        %v493 = vld [vmem:[%s491 + $0x8] sm:$0xff]
        %v494 = vld [vmem:[%s491 + $0x10] sm:$0xff]
        %v495 = vld [vmem:[%s491 + $0x18] sm:$0xff]
        %v496 = vld [vmem:[%s491 + $0x20] sm:$0xff]
        %v497 = vld [vmem:[%s491 + $0x28] sm:$0xff]
        %v498 = vld [vmem:[%s491 + $0x30] sm:$0xff]
        %v499 = vld [vmem:[%s491 + $0x38] sm:$0xff]
        %v501 = vsel %vm337, %v493, 0
        %v504 = vsel %vm337, %v495, 0
        %v507 = vsel %vm337, %v497, 0
        %v510 = vsel %vm337, %v499, 0
        %512 = vmatpush.msra.mxu0 %v319
        %513 = vmatpush.msra.mxu0 %v318
        %514 = vmatpush.msra.mxu0 %v317
        %515 = vmatpush.msra.mxu0 %v316
        %516 = vmatpush.msra.mxu0 %v315
        %517 = vmatpush.msra.mxu0 %v314
        %518 = vmatpush.msra.mxu0 %v313
        %519 = vmatpush.msra.mxu0 %v312
        %520 = vmatpush.msra.mxu0 %v311
        %521 = vmatpush.msra.mxu0 %v310
        %522 = vmatpush.msra.mxu0 %v309
        %523 = vmatpush.msra.mxu0 %v308
        %524 = vmatpush.msra.mxu0 %v307
        %525 = vmatpush.msra.mxu0 %v306
        %526 = vmatpush.msra.mxu0 %v305
        %527 = vmatpush.msra.mxu0 %v304
        %528 = vmatmul.f32.gmra.mxu0 %v492
        %v529 = vpop.f32.mrf.mxu0
        %v530 = vadd.f32 0.0, %v529
        %531 = vmatmul.f32.gmra.mxu0 %v494
        %v532 = vpop.f32.mrf.mxu0
        %v533 = vadd.f32 0.0, %v532
        %534 = vmatmul.f32.gmra.mxu0 %v496
        %v535 = vpop.f32.mrf.mxu0
        %v536 = vadd.f32 0.0, %v535
        %537 = vmatmul.f32.gmra.mxu0 %v498
        %v538 = vpop.f32.mrf.mxu0
        %v539 = vadd.f32 0.0, %v538
        %540 = vdwg.mxu0
        %541 = vmatpush.msra.mxu0 0.0
        %542 = vmatpush.msra.mxu0 0.0
        %543 = vmatpush.msra.mxu0 0.0
        %544 = vmatpush.msra.mxu0 0.0
        %545 = vmatpush.msra.mxu0 0.0
        %546 = vmatpush.msra.mxu0 0.0
        %547 = vmatpush.msra.mxu0 0.0
        %548 = vmatpush.msra.mxu0 %v328
        %549 = vmatpush.msra.mxu0 %v327
        %550 = vmatpush.msra.mxu0 %v326
        %551 = vmatpush.msra.mxu0 %v325
        %552 = vmatpush.msra.mxu0 %v324
        %553 = vmatpush.msra.mxu0 %v323
        %554 = vmatpush.msra.mxu0 %v322
        %555 = vmatpush.msra.mxu0 %v321
        %556 = vmatpush.msra.mxu0 %v320
        %557 = vmatmul.f32.gmra.mxu0 %v501
        %v558 = vpop.f32.mrf.mxu0
        %v559 = vadd.f32 %v530, %v558
        %560 = vmatmul.f32.gmra.mxu0 %v504
        %v561 = vpop.f32.mrf.mxu0
        %v562 = vadd.f32 %v533, %v561
        %563 = vmatmul.f32.gmra.mxu0 %v507
        %v564 = vpop.f32.mrf.mxu0
        %v565 = vadd.f32 %v536, %v564
        %566 = vmatmul.f32.gmra.mxu0 %v510
        %v567 = vpop.f32.mrf.mxu0
        %v568 = vadd.f32 %v539, %v567
        %569 = vdwg.mxu0
        %s570 = scalar_lea.vmem %s280, 192 [#allocation2]
        %v571 = vld [vmem:[%s570] sm:$0xff]
        %v572 = vld [vmem:[%s570 + $0x8] sm:$0xff]
        %v573 = vld [vmem:[%s570 + $0x10] sm:$0xff]
        %v574 = vld [vmem:[%s570 + $0x18] sm:$0xff]
        %v575 = vld [vmem:[%s570 + $0x20] sm:$0xff]
        %v576 = vld [vmem:[%s570 + $0x28] sm:$0xff]
        %v577 = vld [vmem:[%s570 + $0x30] sm:$0xff]
        %v578 = vld [vmem:[%s570 + $0x38] sm:$0xff]
        %v580 = vsel %vm337, %v572, 0
        %v583 = vsel %vm337, %v574, 0
        %v586 = vsel %vm337, %v576, 0
        %v589 = vsel %vm337, %v578, 0
        %591 = vmatpush.msra.mxu0 %v319
        %592 = vmatpush.msra.mxu0 %v318
        %593 = vmatpush.msra.mxu0 %v317
        %594 = vmatpush.msra.mxu0 %v316
        %595 = vmatpush.msra.mxu0 %v315
        %596 = vmatpush.msra.mxu0 %v314
        %597 = vmatpush.msra.mxu0 %v313
        %598 = vmatpush.msra.mxu0 %v312
        %599 = vmatpush.msra.mxu0 %v311
        %600 = vmatpush.msra.mxu0 %v310
        %601 = vmatpush.msra.mxu0 %v309
        %602 = vmatpush.msra.mxu0 %v308
        %603 = vmatpush.msra.mxu0 %v307
        %604 = vmatpush.msra.mxu0 %v306
        %605 = vmatpush.msra.mxu0 %v305
        %606 = vmatpush.msra.mxu0 %v304
        %607 = vmatmul.f32.gmra.mxu0 %v571
        %v608 = vpop.f32.mrf.mxu0
        %v609 = vadd.f32 0.0, %v608
        %610 = vmatmul.f32.gmra.mxu0 %v573
        %v611 = vpop.f32.mrf.mxu0
        %v612 = vadd.f32 0.0, %v611
        %613 = vmatmul.f32.gmra.mxu0 %v575
        %v614 = vpop.f32.mrf.mxu0
        %v615 = vadd.f32 0.0, %v614
        %616 = vmatmul.f32.gmra.mxu0 %v577
        %v617 = vpop.f32.mrf.mxu0
        %v618 = vadd.f32 0.0, %v617
        %619 = vdwg.mxu0
        %620 = vmatpush.msra.mxu0 0.0
        %621 = vmatpush.msra.mxu0 0.0
        %622 = vmatpush.msra.mxu0 0.0
        %623 = vmatpush.msra.mxu0 0.0
        %624 = vmatpush.msra.mxu0 0.0
        %625 = vmatpush.msra.mxu0 0.0
        %626 = vmatpush.msra.mxu0 0.0
        %627 = vmatpush.msra.mxu0 %v328
        %628 = vmatpush.msra.mxu0 %v327
        %629 = vmatpush.msra.mxu0 %v326
        %630 = vmatpush.msra.mxu0 %v325
        %631 = vmatpush.msra.mxu0 %v324
        %632 = vmatpush.msra.mxu0 %v323
        %633 = vmatpush.msra.mxu0 %v322
        %634 = vmatpush.msra.mxu0 %v321
        %635 = vmatpush.msra.mxu0 %v320
        %636 = vmatmul.f32.gmra.mxu0 %v580
        %v637 = vpop.f32.mrf.mxu0
        %v638 = vadd.f32 %v609, %v637
        %639 = vmatmul.f32.gmra.mxu0 %v583
        %v640 = vpop.f32.mrf.mxu0
        %v641 = vadd.f32 %v612, %v640
        %642 = vmatmul.f32.gmra.mxu0 %v586
        %v643 = vpop.f32.mrf.mxu0
        %v644 = vadd.f32 %v615, %v643
        %645 = vmatmul.f32.gmra.mxu0 %v589
        %v646 = vpop.f32.mrf.mxu0
        %v647 = vadd.f32 %v618, %v646
        %648 = vdwg.mxu0
        %v649 = vmax.f32 %v559, %v638
        %v650 = vmax.f32 %v562, %v641
        %v651 = vmax.f32 %v565, %v644
        %v652 = vmax.f32 %v568, %v647
        %v653 = vmax.f32 %v487, %v649
        %v654 = vmax.f32 %v488, %v650
        %v655 = vmax.f32 %v489, %v651
        %v656 = vmax.f32 %v490, %v652
        %v657 = vld [vmem:[%s2] sm:$0x1]
        %v659 = vperm.slane %v657, 0
        %v661 = vadd.f32 %v653, %v659
        %v662 = vadd.f32 %v654, %v659
        %v663 = vadd.f32 %v655, %v659
        %v664 = vadd.f32 %v656, %v659
        %v665 = vmax.f32 %v661, 0.0
        %v666 = vmax.f32 %v662, 0.0
        %v667 = vmax.f32 %v663, 0.0
        %v668 = vmax.f32 %v664, 0.0
        %v669 = vld [vmem:[%s4] sm:$0x1]
        %v670 = vld [vmem:[%s3] sm:$0xff]
        %v671 = vld [vmem:[%s3 + $0x8] sm:$0xff]
        %vm672 = vcmask 130048
        %v674 = vsel %vm672, %v665, 0
        %676 = vmatpush.msra.mxu0 0.0
        %677 = vmatpush.msra.mxu0 0.0
        %678 = vmatpush.msra.mxu0 0.0
        %679 = vmatpush.msra.mxu0 0.0
        %680 = vmatpush.msra.mxu0 0.0
        %681 = vmatpush.msra.mxu0 0.0
        %682 = vmatpush.msra.mxu0 0.0
        %683 = vmatpush.msra.mxu0 0.0
        %684 = vmatpush.msra.mxu0 0.0
        %685 = vmatpush.msra.mxu0 0.0
        %686 = vmatpush.msra.mxu0 0.0
        %687 = vmatpush.msra.mxu0 0.0
        %688 = vmatpush.msra.mxu0 0.0
        %689 = vmatpush.msra.mxu0 0.0
        %690 = vmatpush.msra.mxu0 %v671
        %691 = vmatpush.msra.mxu0 %v670
        %692 = vmatmul.f32.gmra.mxu0 %v674
        %v693 = vpop.f32.mrf.mxu0
        %v694 = vadd.f32 0.0, %v693
        %695 = vdwg.mxu0
        %v696 = vadd.f32 %v669, %v694
        %s697 = scalar_lea.vmem %s3, 16
        %v698 = vld [vmem:[%s697] sm:$0xff]
        %v699 = vld [vmem:[%s697 + $0x8] sm:$0xff]
        %v700 = vrot.slane %v665, 1
        %v701 = vsel %vm672, %v700, 0
        %703 = vmatpush.msra.mxu0 0.0
        %704 = vmatpush.msra.mxu0 0.0
        %705 = vmatpush.msra.mxu0 0.0
        %706 = vmatpush.msra.mxu0 0.0
        %707 = vmatpush.msra.mxu0 0.0
        %708 = vmatpush.msra.mxu0 0.0
        %709 = vmatpush.msra.mxu0 0.0
        %710 = vmatpush.msra.mxu0 0.0
        %711 = vmatpush.msra.mxu0 0.0
        %712 = vmatpush.msra.mxu0 0.0
        %713 = vmatpush.msra.mxu0 0.0
        %714 = vmatpush.msra.mxu0 0.0
        %715 = vmatpush.msra.mxu0 0.0
        %716 = vmatpush.msra.mxu0 0.0
        %717 = vmatpush.msra.mxu0 %v699
        %718 = vmatpush.msra.mxu0 %v698
        %719 = vmatmul.f32.gmra.mxu0 %v701
        %v720 = vpop.f32.mrf.mxu0
        %v721 = vadd.f32 0.0, %v720
        %722 = vdwg.mxu0
        %v723 = vadd.f32 %v696, %v721
        %s724 = scalar_lea.vmem %s3, 32
        %v725 = vld [vmem:[%s724] sm:$0xff]
        %v726 = vld [vmem:[%s724 + $0x8] sm:$0xff]
        %v727 = vrot.slane %v665, 2
        %v728 = vsel %vm672, %v727, 0
        %730 = vmatpush.msra.mxu0 0.0
        %731 = vmatpush.msra.mxu0 0.0
        %732 = vmatpush.msra.mxu0 0.0
        %733 = vmatpush.msra.mxu0 0.0
        %734 = vmatpush.msra.mxu0 0.0
        %735 = vmatpush.msra.mxu0 0.0
        %736 = vmatpush.msra.mxu0 0.0
        %737 = vmatpush.msra.mxu0 0.0
        %738 = vmatpush.msra.mxu0 0.0
        %739 = vmatpush.msra.mxu0 0.0
        %740 = vmatpush.msra.mxu0 0.0
        %741 = vmatpush.msra.mxu0 0.0
        %742 = vmatpush.msra.mxu0 0.0
        %743 = vmatpush.msra.mxu0 0.0
        %744 = vmatpush.msra.mxu0 %v726
        %745 = vmatpush.msra.mxu0 %v725
        %746 = vmatmul.f32.gmra.mxu0 %v728
        %v747 = vpop.f32.mrf.mxu0
        %v748 = vadd.f32 0.0, %v747
        %749 = vdwg.mxu0
        %v750 = vadd.f32 %v723, %v748
        %s751 = scalar_lea.vmem %s3, 48
        %v752 = vld [vmem:[%s751] sm:$0xff]
        %v753 = vld [vmem:[%s751 + $0x8] sm:$0xff]
        %v754 = vrot.slane %v665, 3
        %v755 = vsel %vm672, %v754, 0
        %757 = vmatpush.msra.mxu0 0.0
        %758 = vmatpush.msra.mxu0 0.0
        %759 = vmatpush.msra.mxu0 0.0
        %760 = vmatpush.msra.mxu0 0.0
        %761 = vmatpush.msra.mxu0 0.0
        %762 = vmatpush.msra.mxu0 0.0
        %763 = vmatpush.msra.mxu0 0.0
        %764 = vmatpush.msra.mxu0 0.0
        %765 = vmatpush.msra.mxu0 0.0
        %766 = vmatpush.msra.mxu0 0.0
        %767 = vmatpush.msra.mxu0 0.0
        %768 = vmatpush.msra.mxu0 0.0
        %769 = vmatpush.msra.mxu0 0.0
        %770 = vmatpush.msra.mxu0 0.0
        %771 = vmatpush.msra.mxu0 %v753
        %772 = vmatpush.msra.mxu0 %v752
        %773 = vmatmul.f32.gmra.mxu0 %v755
        %v774 = vpop.f32.mrf.mxu0
        %v775 = vadd.f32 0.0, %v774
        %776 = vdwg.mxu0
        %v777 = vadd.f32 %v750, %v775
        %s778 = scalar_lea.vmem %s3, 64
        %v779 = vld [vmem:[%s778] sm:$0xff]
        %v780 = vld [vmem:[%s778 + $0x8] sm:$0xff]
        %v781 = vrot.slane %v665, 4
        %v782 = vsel %vm672, %v781, 0
        %784 = vmatpush.msra.mxu0 0.0
        %785 = vmatpush.msra.mxu0 0.0
        %786 = vmatpush.msra.mxu0 0.0
        %787 = vmatpush.msra.mxu0 0.0
        %788 = vmatpush.msra.mxu0 0.0
        %789 = vmatpush.msra.mxu0 0.0
        %790 = vmatpush.msra.mxu0 0.0
        %791 = vmatpush.msra.mxu0 0.0
        %792 = vmatpush.msra.mxu0 0.0
        %793 = vmatpush.msra.mxu0 0.0
        %794 = vmatpush.msra.mxu0 0.0
        %795 = vmatpush.msra.mxu0 0.0
        %796 = vmatpush.msra.mxu0 0.0
        %797 = vmatpush.msra.mxu0 0.0
        %798 = vmatpush.msra.mxu0 %v780
        %799 = vmatpush.msra.mxu0 %v779
        %800 = vmatmul.f32.gmra.mxu0 %v782
        %v801 = vpop.f32.mrf.mxu0
        %v802 = vadd.f32 0.0, %v801
        %803 = vdwg.mxu0
        %v804 = vadd.f32 %v777, %v802
        %s805 = scalar_lea.vmem %s3, 80
        %v806 = vld [vmem:[%s805] sm:$0xff]
        %v807 = vld [vmem:[%s805 + $0x8] sm:$0xff]
        %v808 = vrot.slane %v665, 5
        %v809 = vsel %vm672, %v808, 0
        %811 = vmatpush.msra.mxu0 0.0
        %812 = vmatpush.msra.mxu0 0.0
        %813 = vmatpush.msra.mxu0 0.0
        %814 = vmatpush.msra.mxu0 0.0
        %815 = vmatpush.msra.mxu0 0.0
        %816 = vmatpush.msra.mxu0 0.0
        %817 = vmatpush.msra.mxu0 0.0
        %818 = vmatpush.msra.mxu0 0.0
        %819 = vmatpush.msra.mxu0 0.0
        %820 = vmatpush.msra.mxu0 0.0
        %821 = vmatpush.msra.mxu0 0.0
        %822 = vmatpush.msra.mxu0 0.0
        %823 = vmatpush.msra.mxu0 0.0
        %824 = vmatpush.msra.mxu0 0.0
        %825 = vmatpush.msra.mxu0 %v807
        %826 = vmatpush.msra.mxu0 %v806
        %827 = vmatmul.f32.gmra.mxu0 %v809
        %v828 = vpop.f32.mrf.mxu0
        %v829 = vadd.f32 0.0, %v828
        %830 = vdwg.mxu0
        %v831 = vadd.f32 %v804, %v829
        %s832 = scalar_lea.vmem %s3, 96
        %v833 = vld [vmem:[%s832] sm:$0xff]
        %v834 = vld [vmem:[%s832 + $0x8] sm:$0xff]
        %v835 = vrot.slane %v665, 6
        %v836 = vsel %vm672, %v835, 0
        %838 = vmatpush.msra.mxu0 0.0
        %839 = vmatpush.msra.mxu0 0.0
        %840 = vmatpush.msra.mxu0 0.0
        %841 = vmatpush.msra.mxu0 0.0
        %842 = vmatpush.msra.mxu0 0.0
        %843 = vmatpush.msra.mxu0 0.0
        %844 = vmatpush.msra.mxu0 0.0
        %845 = vmatpush.msra.mxu0 0.0
        %846 = vmatpush.msra.mxu0 0.0
        %847 = vmatpush.msra.mxu0 0.0
        %848 = vmatpush.msra.mxu0 0.0
        %849 = vmatpush.msra.mxu0 0.0
        %850 = vmatpush.msra.mxu0 0.0
        %851 = vmatpush.msra.mxu0 0.0
        %852 = vmatpush.msra.mxu0 %v834
        %853 = vmatpush.msra.mxu0 %v833
        %854 = vmatmul.f32.gmra.mxu0 %v836
        %v855 = vpop.f32.mrf.mxu0
        %v856 = vadd.f32 0.0, %v855
        %857 = vdwg.mxu0
        %v858 = vadd.f32 %v831, %v856
        %s859 = scalar_lea.vmem %s3, 112
        %v860 = vld [vmem:[%s859] sm:$0xff]
        %v861 = vld [vmem:[%s859 + $0x8] sm:$0xff]
        %v862 = vrot.slane %v665, 7
        %v863 = vsel %vm672, %v862, 0
        %865 = vmatpush.msra.mxu0 0.0
        %866 = vmatpush.msra.mxu0 0.0
        %867 = vmatpush.msra.mxu0 0.0
        %868 = vmatpush.msra.mxu0 0.0
        %869 = vmatpush.msra.mxu0 0.0
        %870 = vmatpush.msra.mxu0 0.0
        %871 = vmatpush.msra.mxu0 0.0
        %872 = vmatpush.msra.mxu0 0.0
        %873 = vmatpush.msra.mxu0 0.0
        %874 = vmatpush.msra.mxu0 0.0
        %875 = vmatpush.msra.mxu0 0.0
        %876 = vmatpush.msra.mxu0 0.0
        %877 = vmatpush.msra.mxu0 0.0
        %878 = vmatpush.msra.mxu0 0.0
        %879 = vmatpush.msra.mxu0 %v861
        %880 = vmatpush.msra.mxu0 %v860
        %881 = vmatmul.f32.gmra.mxu0 %v863
        %v882 = vpop.f32.mrf.mxu0
        %v883 = vadd.f32 0.0, %v882
        %884 = vdwg.mxu0
        %v885 = vadd.f32 %v858, %v883
        %s886 = scalar_lea.vmem %s3, 128
        %v887 = vld [vmem:[%s886] sm:$0xff]
        %v888 = vld [vmem:[%s886 + $0x8] sm:$0xff]
        %v890 = vsel %vm672, %v666, 0
        %892 = vmatpush.msra.mxu0 0.0
        %893 = vmatpush.msra.mxu0 0.0
        %894 = vmatpush.msra.mxu0 0.0
        %895 = vmatpush.msra.mxu0 0.0
        %896 = vmatpush.msra.mxu0 0.0
        %897 = vmatpush.msra.mxu0 0.0
        %898 = vmatpush.msra.mxu0 0.0
        %899 = vmatpush.msra.mxu0 0.0
        %900 = vmatpush.msra.mxu0 0.0
        %901 = vmatpush.msra.mxu0 0.0
        %902 = vmatpush.msra.mxu0 0.0
        %903 = vmatpush.msra.mxu0 0.0
        %904 = vmatpush.msra.mxu0 0.0
        %905 = vmatpush.msra.mxu0 0.0
        %906 = vmatpush.msra.mxu0 %v888
        %907 = vmatpush.msra.mxu0 %v887
        %908 = vmatmul.f32.gmra.mxu0 %v890
        %v909 = vpop.f32.mrf.mxu0
        %v910 = vadd.f32 0.0, %v909
        %911 = vdwg.mxu0
        %v912 = vadd.f32 %v885, %v910
        %s913 = scalar_lea.vmem %s3, 144
        %v914 = vld [vmem:[%s913] sm:$0xff]
        %v915 = vld [vmem:[%s913 + $0x8] sm:$0xff]
        %v916 = vrot.slane %v666, 1
        %v917 = vsel %vm672, %v916, 0
        %919 = vmatpush.msra.mxu0 0.0
        %920 = vmatpush.msra.mxu0 0.0
        %921 = vmatpush.msra.mxu0 0.0
        %922 = vmatpush.msra.mxu0 0.0
        %923 = vmatpush.msra.mxu0 0.0
        %924 = vmatpush.msra.mxu0 0.0
        %925 = vmatpush.msra.mxu0 0.0
        %926 = vmatpush.msra.mxu0 0.0
        %927 = vmatpush.msra.mxu0 0.0
        %928 = vmatpush.msra.mxu0 0.0
        %929 = vmatpush.msra.mxu0 0.0
        %930 = vmatpush.msra.mxu0 0.0
        %931 = vmatpush.msra.mxu0 0.0
        %932 = vmatpush.msra.mxu0 0.0
        %933 = vmatpush.msra.mxu0 %v915
        %934 = vmatpush.msra.mxu0 %v914
        %935 = vmatmul.f32.gmra.mxu0 %v917
        %v936 = vpop.f32.mrf.mxu0
        %v937 = vadd.f32 0.0, %v936
        %938 = vdwg.mxu0
        %v939 = vadd.f32 %v912, %v937
        %s940 = scalar_lea.vmem %s3, 160
        %v941 = vld [vmem:[%s940] sm:$0xff]
        %v942 = vld [vmem:[%s940 + $0x8] sm:$0xff]
        %v943 = vrot.slane %v666, 2
        %v944 = vsel %vm672, %v943, 0
        %946 = vmatpush.msra.mxu0 0.0
        %947 = vmatpush.msra.mxu0 0.0
        %948 = vmatpush.msra.mxu0 0.0
        %949 = vmatpush.msra.mxu0 0.0
        %950 = vmatpush.msra.mxu0 0.0
        %951 = vmatpush.msra.mxu0 0.0
        %952 = vmatpush.msra.mxu0 0.0
        %953 = vmatpush.msra.mxu0 0.0
        %954 = vmatpush.msra.mxu0 0.0
        %955 = vmatpush.msra.mxu0 0.0
        %956 = vmatpush.msra.mxu0 0.0
        %957 = vmatpush.msra.mxu0 0.0
        %958 = vmatpush.msra.mxu0 0.0
        %959 = vmatpush.msra.mxu0 0.0
        %960 = vmatpush.msra.mxu0 %v942
        %961 = vmatpush.msra.mxu0 %v941
        %962 = vmatmul.f32.gmra.mxu0 %v944
        %v963 = vpop.f32.mrf.mxu0
        %v964 = vadd.f32 0.0, %v963
        %965 = vdwg.mxu0
        %v966 = vadd.f32 %v939, %v964
        %s967 = scalar_lea.vmem %s3, 176
        %v968 = vld [vmem:[%s967] sm:$0xff]
        %v969 = vld [vmem:[%s967 + $0x8] sm:$0xff]
        %v970 = vrot.slane %v666, 3
        %v971 = vsel %vm672, %v970, 0
        %973 = vmatpush.msra.mxu0 0.0
        %974 = vmatpush.msra.mxu0 0.0
        %975 = vmatpush.msra.mxu0 0.0
        %976 = vmatpush.msra.mxu0 0.0
        %977 = vmatpush.msra.mxu0 0.0
        %978 = vmatpush.msra.mxu0 0.0
        %979 = vmatpush.msra.mxu0 0.0
        %980 = vmatpush.msra.mxu0 0.0
        %981 = vmatpush.msra.mxu0 0.0
        %982 = vmatpush.msra.mxu0 0.0
        %983 = vmatpush.msra.mxu0 0.0
        %984 = vmatpush.msra.mxu0 0.0
        %985 = vmatpush.msra.mxu0 0.0
        %986 = vmatpush.msra.mxu0 0.0
        %987 = vmatpush.msra.mxu0 %v969
        %988 = vmatpush.msra.mxu0 %v968
        %989 = vmatmul.f32.gmra.mxu0 %v971
        %v990 = vpop.f32.mrf.mxu0
        %v991 = vadd.f32 0.0, %v990
        %992 = vdwg.mxu0
        %v993 = vadd.f32 %v966, %v991
        %s994 = scalar_lea.vmem %s3, 192
        %v995 = vld [vmem:[%s994] sm:$0xff]
        %v996 = vld [vmem:[%s994 + $0x8] sm:$0xff]
        %v997 = vrot.slane %v666, 4
        %v998 = vsel %vm672, %v997, 0
        %1000 = vmatpush.msra.mxu0 0.0
        %1001 = vmatpush.msra.mxu0 0.0
        %1002 = vmatpush.msra.mxu0 0.0
        %1003 = vmatpush.msra.mxu0 0.0
        %1004 = vmatpush.msra.mxu0 0.0
        %1005 = vmatpush.msra.mxu0 0.0
        %1006 = vmatpush.msra.mxu0 0.0
        %1007 = vmatpush.msra.mxu0 0.0
        %1008 = vmatpush.msra.mxu0 0.0
        %1009 = vmatpush.msra.mxu0 0.0
        %1010 = vmatpush.msra.mxu0 0.0
        %1011 = vmatpush.msra.mxu0 0.0
        %1012 = vmatpush.msra.mxu0 0.0
        %1013 = vmatpush.msra.mxu0 0.0
        %1014 = vmatpush.msra.mxu0 %v996
        %1015 = vmatpush.msra.mxu0 %v995
        %1016 = vmatmul.f32.gmra.mxu0 %v998
        %v1017 = vpop.f32.mrf.mxu0
        %v1018 = vadd.f32 0.0, %v1017
        %1019 = vdwg.mxu0
        %v1020 = vadd.f32 %v993, %v1018
        %s1021 = scalar_lea.vmem %s3, 208
        %v1022 = vld [vmem:[%s1021] sm:$0xff]
        %v1023 = vld [vmem:[%s1021 + $0x8] sm:$0xff]
        %v1024 = vrot.slane %v666, 5
        %v1025 = vsel %vm672, %v1024, 0
        %1027 = vmatpush.msra.mxu0 0.0
        %1028 = vmatpush.msra.mxu0 0.0
        %1029 = vmatpush.msra.mxu0 0.0
        %1030 = vmatpush.msra.mxu0 0.0
        %1031 = vmatpush.msra.mxu0 0.0
        %1032 = vmatpush.msra.mxu0 0.0
        %1033 = vmatpush.msra.mxu0 0.0
        %1034 = vmatpush.msra.mxu0 0.0
        %1035 = vmatpush.msra.mxu0 0.0
        %1036 = vmatpush.msra.mxu0 0.0
        %1037 = vmatpush.msra.mxu0 0.0
        %1038 = vmatpush.msra.mxu0 0.0
        %1039 = vmatpush.msra.mxu0 0.0
        %1040 = vmatpush.msra.mxu0 0.0
        %1041 = vmatpush.msra.mxu0 %v1023
        %1042 = vmatpush.msra.mxu0 %v1022
        %1043 = vmatmul.f32.gmra.mxu0 %v1025
        %v1044 = vpop.f32.mrf.mxu0
        %v1045 = vadd.f32 0.0, %v1044
        %1046 = vdwg.mxu0
        %v1047 = vadd.f32 %v1020, %v1045
        %s1048 = scalar_lea.vmem %s3, 224
        %v1049 = vld [vmem:[%s1048] sm:$0xff]
        %v1050 = vld [vmem:[%s1048 + $0x8] sm:$0xff]
        %v1051 = vrot.slane %v666, 6
        %v1052 = vsel %vm672, %v1051, 0
        %1054 = vmatpush.msra.mxu0 0.0
        %1055 = vmatpush.msra.mxu0 0.0
        %1056 = vmatpush.msra.mxu0 0.0
        %1057 = vmatpush.msra.mxu0 0.0
        %1058 = vmatpush.msra.mxu0 0.0
        %1059 = vmatpush.msra.mxu0 0.0
        %1060 = vmatpush.msra.mxu0 0.0
        %1061 = vmatpush.msra.mxu0 0.0
        %1062 = vmatpush.msra.mxu0 0.0
        %1063 = vmatpush.msra.mxu0 0.0
        %1064 = vmatpush.msra.mxu0 0.0
        %1065 = vmatpush.msra.mxu0 0.0
        %1066 = vmatpush.msra.mxu0 0.0
        %1067 = vmatpush.msra.mxu0 0.0
        %1068 = vmatpush.msra.mxu0 %v1050
        %1069 = vmatpush.msra.mxu0 %v1049
        %1070 = vmatmul.f32.gmra.mxu0 %v1052
        %v1071 = vpop.f32.mrf.mxu0
        %v1072 = vadd.f32 0.0, %v1071
        %1073 = vdwg.mxu0
        %v1074 = vadd.f32 %v1047, %v1072
        %s1075 = scalar_lea.vmem %s3, 240
        %v1076 = vld [vmem:[%s1075] sm:$0xff]
        %v1077 = vld [vmem:[%s1075 + $0x8] sm:$0xff]
        %v1078 = vrot.slane %v666, 7
        %v1079 = vsel %vm672, %v1078, 0
        %1081 = vmatpush.msra.mxu0 0.0
        %1082 = vmatpush.msra.mxu0 0.0
        %1083 = vmatpush.msra.mxu0 0.0
        %1084 = vmatpush.msra.mxu0 0.0
        %1085 = vmatpush.msra.mxu0 0.0
        %1086 = vmatpush.msra.mxu0 0.0
        %1087 = vmatpush.msra.mxu0 0.0
        %1088 = vmatpush.msra.mxu0 0.0
        %1089 = vmatpush.msra.mxu0 0.0
        %1090 = vmatpush.msra.mxu0 0.0
        %1091 = vmatpush.msra.mxu0 0.0
        %1092 = vmatpush.msra.mxu0 0.0
        %1093 = vmatpush.msra.mxu0 0.0
        %1094 = vmatpush.msra.mxu0 0.0
        %1095 = vmatpush.msra.mxu0 %v1077
        %1096 = vmatpush.msra.mxu0 %v1076
        %1097 = vmatmul.f32.gmra.mxu0 %v1079
        %v1098 = vpop.f32.mrf.mxu0
        %v1099 = vadd.f32 0.0, %v1098
        %1100 = vdwg.mxu0
        %v1101 = vadd.f32 %v1074, %v1099
        %s1102 = scalar_lea.vmem %s3, 256
        %v1103 = vld [vmem:[%s1102] sm:$0xff]
        %v1104 = vld [vmem:[%s1102 + $0x8] sm:$0xff]
        %v1106 = vsel %vm672, %v667, 0
        %1108 = vmatpush.msra.mxu0 0.0
        %1109 = vmatpush.msra.mxu0 0.0
        %1110 = vmatpush.msra.mxu0 0.0
        %1111 = vmatpush.msra.mxu0 0.0
        %1112 = vmatpush.msra.mxu0 0.0
        %1113 = vmatpush.msra.mxu0 0.0
        %1114 = vmatpush.msra.mxu0 0.0
        %1115 = vmatpush.msra.mxu0 0.0
        %1116 = vmatpush.msra.mxu0 0.0
        %1117 = vmatpush.msra.mxu0 0.0
        %1118 = vmatpush.msra.mxu0 0.0
        %1119 = vmatpush.msra.mxu0 0.0
        %1120 = vmatpush.msra.mxu0 0.0
        %1121 = vmatpush.msra.mxu0 0.0
        %1122 = vmatpush.msra.mxu0 %v1104
        %1123 = vmatpush.msra.mxu0 %v1103
        %1124 = vmatmul.f32.gmra.mxu0 %v1106
        %v1125 = vpop.f32.mrf.mxu0
        %v1126 = vadd.f32 0.0, %v1125
        %1127 = vdwg.mxu0
        %v1128 = vadd.f32 %v1101, %v1126
        %s1129 = scalar_lea.vmem %s3, 272
        %v1130 = vld [vmem:[%s1129] sm:$0xff]
        %v1131 = vld [vmem:[%s1129 + $0x8] sm:$0xff]
        %v1132 = vrot.slane %v667, 1
        %v1133 = vsel %vm672, %v1132, 0
        %1135 = vmatpush.msra.mxu0 0.0
        %1136 = vmatpush.msra.mxu0 0.0
        %1137 = vmatpush.msra.mxu0 0.0
        %1138 = vmatpush.msra.mxu0 0.0
        %1139 = vmatpush.msra.mxu0 0.0
        %1140 = vmatpush.msra.mxu0 0.0
        %1141 = vmatpush.msra.mxu0 0.0
        %1142 = vmatpush.msra.mxu0 0.0
        %1143 = vmatpush.msra.mxu0 0.0
        %1144 = vmatpush.msra.mxu0 0.0
        %1145 = vmatpush.msra.mxu0 0.0
        %1146 = vmatpush.msra.mxu0 0.0
        %1147 = vmatpush.msra.mxu0 0.0
        %1148 = vmatpush.msra.mxu0 0.0
        %1149 = vmatpush.msra.mxu0 %v1131
        %1150 = vmatpush.msra.mxu0 %v1130
        %1151 = vmatmul.f32.gmra.mxu0 %v1133
        %v1152 = vpop.f32.mrf.mxu0
        %v1153 = vadd.f32 0.0, %v1152
        %1154 = vdwg.mxu0
        %v1155 = vadd.f32 %v1128, %v1153
        %s1156 = scalar_lea.vmem %s3, 288
        %v1157 = vld [vmem:[%s1156] sm:$0xff]
        %v1158 = vld [vmem:[%s1156 + $0x8] sm:$0xff]
        %v1159 = vrot.slane %v667, 2
        %v1160 = vsel %vm672, %v1159, 0
        %1162 = vmatpush.msra.mxu0 0.0
        %1163 = vmatpush.msra.mxu0 0.0
        %1164 = vmatpush.msra.mxu0 0.0
        %1165 = vmatpush.msra.mxu0 0.0
        %1166 = vmatpush.msra.mxu0 0.0
        %1167 = vmatpush.msra.mxu0 0.0
        %1168 = vmatpush.msra.mxu0 0.0
        %1169 = vmatpush.msra.mxu0 0.0
        %1170 = vmatpush.msra.mxu0 0.0
        %1171 = vmatpush.msra.mxu0 0.0
        %1172 = vmatpush.msra.mxu0 0.0
        %1173 = vmatpush.msra.mxu0 0.0
        %1174 = vmatpush.msra.mxu0 0.0
        %1175 = vmatpush.msra.mxu0 0.0
        %1176 = vmatpush.msra.mxu0 %v1158
        %1177 = vmatpush.msra.mxu0 %v1157
        %1178 = vmatmul.f32.gmra.mxu0 %v1160
        %v1179 = vpop.f32.mrf.mxu0
        %v1180 = vadd.f32 0.0, %v1179
        %1181 = vdwg.mxu0
        %v1182 = vadd.f32 %v1155, %v1180
        %s1183 = scalar_lea.vmem %s3, 304
        %v1184 = vld [vmem:[%s1183] sm:$0xff]
        %v1185 = vld [vmem:[%s1183 + $0x8] sm:$0xff]
        %v1186 = vrot.slane %v667, 3
        %v1187 = vsel %vm672, %v1186, 0
        %1189 = vmatpush.msra.mxu0 0.0
        %1190 = vmatpush.msra.mxu0 0.0
        %1191 = vmatpush.msra.mxu0 0.0
        %1192 = vmatpush.msra.mxu0 0.0
        %1193 = vmatpush.msra.mxu0 0.0
        %1194 = vmatpush.msra.mxu0 0.0
        %1195 = vmatpush.msra.mxu0 0.0
        %1196 = vmatpush.msra.mxu0 0.0
        %1197 = vmatpush.msra.mxu0 0.0
        %1198 = vmatpush.msra.mxu0 0.0
        %1199 = vmatpush.msra.mxu0 0.0
        %1200 = vmatpush.msra.mxu0 0.0
        %1201 = vmatpush.msra.mxu0 0.0
        %1202 = vmatpush.msra.mxu0 0.0
        %1203 = vmatpush.msra.mxu0 %v1185
        %1204 = vmatpush.msra.mxu0 %v1184
        %1205 = vmatmul.f32.gmra.mxu0 %v1187
        %v1206 = vpop.f32.mrf.mxu0
        %v1207 = vadd.f32 0.0, %v1206
        %1208 = vdwg.mxu0
        %v1209 = vadd.f32 %v1182, %v1207
        %s1210 = scalar_lea.vmem %s3, 320
        %v1211 = vld [vmem:[%s1210] sm:$0xff]
        %v1212 = vld [vmem:[%s1210 + $0x8] sm:$0xff]
        %v1213 = vrot.slane %v667, 4
        %v1214 = vsel %vm672, %v1213, 0
        %1216 = vmatpush.msra.mxu0 0.0
        %1217 = vmatpush.msra.mxu0 0.0
        %1218 = vmatpush.msra.mxu0 0.0
        %1219 = vmatpush.msra.mxu0 0.0
        %1220 = vmatpush.msra.mxu0 0.0
        %1221 = vmatpush.msra.mxu0 0.0
        %1222 = vmatpush.msra.mxu0 0.0
        %1223 = vmatpush.msra.mxu0 0.0
        %1224 = vmatpush.msra.mxu0 0.0
        %1225 = vmatpush.msra.mxu0 0.0
        %1226 = vmatpush.msra.mxu0 0.0
        %1227 = vmatpush.msra.mxu0 0.0
        %1228 = vmatpush.msra.mxu0 0.0
        %1229 = vmatpush.msra.mxu0 0.0
        %1230 = vmatpush.msra.mxu0 %v1212
        %1231 = vmatpush.msra.mxu0 %v1211
        %1232 = vmatmul.f32.gmra.mxu0 %v1214
        %v1233 = vpop.f32.mrf.mxu0
        %v1234 = vadd.f32 0.0, %v1233
        %1235 = vdwg.mxu0
        %v1236 = vadd.f32 %v1209, %v1234
        %s1237 = scalar_lea.vmem %s3, 336
        %v1238 = vld [vmem:[%s1237] sm:$0xff]
        %v1239 = vld [vmem:[%s1237 + $0x8] sm:$0xff]
        %v1240 = vrot.slane %v667, 5
        %v1241 = vsel %vm672, %v1240, 0
        %1243 = vmatpush.msra.mxu0 0.0
        %1244 = vmatpush.msra.mxu0 0.0
        %1245 = vmatpush.msra.mxu0 0.0
        %1246 = vmatpush.msra.mxu0 0.0
        %1247 = vmatpush.msra.mxu0 0.0
        %1248 = vmatpush.msra.mxu0 0.0
        %1249 = vmatpush.msra.mxu0 0.0
        %1250 = vmatpush.msra.mxu0 0.0
        %1251 = vmatpush.msra.mxu0 0.0
        %1252 = vmatpush.msra.mxu0 0.0
        %1253 = vmatpush.msra.mxu0 0.0
        %1254 = vmatpush.msra.mxu0 0.0
        %1255 = vmatpush.msra.mxu0 0.0
        %1256 = vmatpush.msra.mxu0 0.0
        %1257 = vmatpush.msra.mxu0 %v1239
        %1258 = vmatpush.msra.mxu0 %v1238
        %1259 = vmatmul.f32.gmra.mxu0 %v1241
        %v1260 = vpop.f32.mrf.mxu0
        %v1261 = vadd.f32 0.0, %v1260
        %1262 = vdwg.mxu0
        %v1263 = vadd.f32 %v1236, %v1261
        %s1264 = scalar_lea.vmem %s3, 352
        %v1265 = vld [vmem:[%s1264] sm:$0xff]
        %v1266 = vld [vmem:[%s1264 + $0x8] sm:$0xff]
        %v1267 = vrot.slane %v667, 6
        %v1268 = vsel %vm672, %v1267, 0
        %1270 = vmatpush.msra.mxu0 0.0
        %1271 = vmatpush.msra.mxu0 0.0
        %1272 = vmatpush.msra.mxu0 0.0
        %1273 = vmatpush.msra.mxu0 0.0
        %1274 = vmatpush.msra.mxu0 0.0
        %1275 = vmatpush.msra.mxu0 0.0
        %1276 = vmatpush.msra.mxu0 0.0
        %1277 = vmatpush.msra.mxu0 0.0
        %1278 = vmatpush.msra.mxu0 0.0
        %1279 = vmatpush.msra.mxu0 0.0
        %1280 = vmatpush.msra.mxu0 0.0
        %1281 = vmatpush.msra.mxu0 0.0
        %1282 = vmatpush.msra.mxu0 0.0
        %1283 = vmatpush.msra.mxu0 0.0
        %1284 = vmatpush.msra.mxu0 %v1266
        %1285 = vmatpush.msra.mxu0 %v1265
        %1286 = vmatmul.f32.gmra.mxu0 %v1268
        %v1287 = vpop.f32.mrf.mxu0
        %v1288 = vadd.f32 0.0, %v1287
        %1289 = vdwg.mxu0
        %v1290 = vadd.f32 %v1263, %v1288
        %s1291 = scalar_lea.vmem %s3, 368
        %v1292 = vld [vmem:[%s1291] sm:$0xff]
        %v1293 = vld [vmem:[%s1291 + $0x8] sm:$0xff]
        %v1294 = vrot.slane %v667, 7
        %v1295 = vsel %vm672, %v1294, 0
        %1297 = vmatpush.msra.mxu0 0.0
        %1298 = vmatpush.msra.mxu0 0.0
        %1299 = vmatpush.msra.mxu0 0.0
        %1300 = vmatpush.msra.mxu0 0.0
        %1301 = vmatpush.msra.mxu0 0.0
        %1302 = vmatpush.msra.mxu0 0.0
        %1303 = vmatpush.msra.mxu0 0.0
        %1304 = vmatpush.msra.mxu0 0.0
        %1305 = vmatpush.msra.mxu0 0.0
        %1306 = vmatpush.msra.mxu0 0.0
        %1307 = vmatpush.msra.mxu0 0.0
        %1308 = vmatpush.msra.mxu0 0.0
        %1309 = vmatpush.msra.mxu0 0.0
        %1310 = vmatpush.msra.mxu0 0.0
        %1311 = vmatpush.msra.mxu0 %v1293
        %1312 = vmatpush.msra.mxu0 %v1292
        %1313 = vmatmul.f32.gmra.mxu0 %v1295
        %v1314 = vpop.f32.mrf.mxu0
        %v1315 = vadd.f32 0.0, %v1314
        %1316 = vdwg.mxu0
        %v1317 = vadd.f32 %v1290, %v1315
        %s1318 = scalar_lea.vmem %s3, 384
        %v1319 = vld [vmem:[%s1318] sm:$0xff]
        %v1320 = vld [vmem:[%s1318 + $0x8] sm:$0xff]
        %v1322 = vsel %vm672, %v668, 0
        %1324 = vmatpush.msra.mxu0 0.0
        %1325 = vmatpush.msra.mxu0 0.0
        %1326 = vmatpush.msra.mxu0 0.0
        %1327 = vmatpush.msra.mxu0 0.0
        %1328 = vmatpush.msra.mxu0 0.0
        %1329 = vmatpush.msra.mxu0 0.0
        %1330 = vmatpush.msra.mxu0 0.0
        %1331 = vmatpush.msra.mxu0 0.0
        %1332 = vmatpush.msra.mxu0 0.0
        %1333 = vmatpush.msra.mxu0 0.0
        %1334 = vmatpush.msra.mxu0 0.0
        %1335 = vmatpush.msra.mxu0 0.0
        %1336 = vmatpush.msra.mxu0 0.0
        %1337 = vmatpush.msra.mxu0 0.0
        %1338 = vmatpush.msra.mxu0 %v1320
        %1339 = vmatpush.msra.mxu0 %v1319
        %1340 = vmatmul.f32.gmra.mxu0 %v1322
        %v1341 = vpop.f32.mrf.mxu0
        %v1342 = vadd.f32 0.0, %v1341
        %1343 = vdwg.mxu0
        %v1344 = vadd.f32 %v1317, %v1342
        %1345 = vst [vmem:[%s303] sm:$0x1] %v1344
        %s1346 = sand.u32 %s137, 1
        %s1347 = scalar_lea.sflag [#allocation4], %s1346
        %s1348 = sand.u32 %s137, 1
        %s1349 = scalar_lea.vmem [#allocation3], %s1348
        // Predicated region
        $region64: #{simple_model_forward.3} parent=58 // pred_check
          %p1350 = pneg %p147
        $region65: #{simple_model_forward.3} parent=58 // pred_check_branch
          %1352 = sbr.rel (%p1350) target = $region67
        $region66: #{simple_model_forward.3} parent=58 // pred_region
          %1354 = vsyncadd %s1347, 0
          %s1355 = scalar_lea.hbm %s5, %s19
          %s1357 = sshll.u32 %s1349, 4
          %s1358 = int_to_ptr.vmem [resolvable:$true] %s1357
          %s1359 = sshll.u32 %s1355, 4
          %s1360 = int_to_ptr.hbm [resolvable:$true] %s1359
          %1362 = dma.vmem_to_hbm [thread:$0]  %s1358, 16, %s1360, %s1347
        $region67: #{simple_model_forward.3} parent=58 // pred_fallthru
          _
      $region59: #{simple_model_forward.3} parent=5 // pred_fallthru
        _
      %p1363 = scmp.le.s32.totalorder 2, %s14
      // Predicated region
      $region68: #{simple_model_forward.3} parent=5 // pred_check
        %p1364 = pneg %p1363
      $region69: #{simple_model_forward.3} parent=5 // pred_check_branch
        %1366 = sbr.rel (%p1364) target = $region71
      $region70: #{simple_model_forward.3} parent=5 // pred_region
        %s1367 = ssub.s32 %s14, 2
        // Predicated region
        $region72: #{simple_model_forward.3} parent=70 // pred_check
          %p1368 = pneg %p153
        $region73: #{simple_model_forward.3} parent=70 // pred_check_branch
          %1370 = sbr.rel (%p1368) target = $region75
        $region74: #{simple_model_forward.3} parent=70 // pred_region
          %s1371 = sand.u32 %s138, 1
          %s1372 = scalar_lea.sflag [#allocation4], %s1371
          %s1373 = sand.u32 %s138, 1
          %s1374 = scalar_lea.vmem [#allocation3], %s1373
          %1376 = dma.done %s1372, 16
        $region75: #{simple_model_forward.3} parent=70 // pred_fallthru
          _
      $region71: #{simple_model_forward.3} parent=5 // pred_fallthru
        _
    $region6: #{simple_model_forward.3} parent=1 // loop_footer
      %s18 = sadd.s32 1, %s14
    $region7: #{simple_model_forward.3} parent=1 // loop_footer_branch
      %13 = sbr.rel target = $region3
    $region8: #{simple_model_forward.3} parent=1 // loop_exit
      _
    %1377 = vsyncpa [#allocation4], 1
    %s1378 = scalar_lea.sflag [#allocation4], 1
    %1379 = vsyncpa %s1378, 1

</llo_original>
